<compile_context>
chip_gen: v6e
topology: v6e:2x2x1
jax: 0.10.0
libtpu: 0.0.40
codegen_flags: <defaults>
</compile_context>

<pallas_src>
import math
import jax
import jax.numpy as jnp
from jax.experimental import pallas as pl
from jax.experimental.pallas import tpu as pltpu

INPUT_DIM = 784
H1 = 1024
H2 = 256
OUTPUT_DIM = 5
OUT_PAD = 128            # lane-dense output; slice back to 5 outside the kernel
MAX_TILE_B = 256         # fills the 256-row MXU on v6e/v7x; 2x128 issues on v5e


def _round_up(n, m):
    return -(-n // m) * m


def _pick_tile_b(B):
    """Adaptive batch tile: big tiles for throughput, >=2 tiles for v7x megacore
    on medium batches, a single minimal tile for tiny latency-bound batches."""
    if B >= 2 * MAX_TILE_B:
        return MAX_TILE_B
    if B > 128:
        # medium batch: split into 2 tiles so both v7x TensorCores get work
        return max(128, _round_up(-(-B // 2), 8))
    # tiny batch: one tile, minimal row padding, single TC (no duplicated
    # resident-weight DMA)
    return max(8, _round_up(B, 8))


def _mlp_kernel(x_ref, w1_ref, b1_ref, w2_ref, b2_ref, w3_ref, b3_ref, o_ref):
    # In-kernel f32 -> bf16 cast (removes the wrapper pad/cast prologue).
    x = x_ref[...].astype(jnp.bfloat16)
    # fc1 + ReLU   (bf16 x, bf16 w, f32 accumulate; contraction over K=784)
    h1 = jnp.dot(x, w1_ref[...], preferred_element_type=jnp.float32)
    h1 = jnp.maximum(h1 + b1_ref[...], 0.0)
    # fc2 + ReLU
    h2 = jnp.dot(h1.astype(jnp.bfloat16), w2_ref[...],
                 preferred_element_type=jnp.float32)
    h2 = jnp.maximum(h2 + b2_ref[...], 0.0)
    # fc3 (forward() does NOT apply relu3)
    o = jnp.dot(h2.astype(jnp.bfloat16), w3_ref[...],
                preferred_element_type=jnp.float32)
    o_ref[...] = (o + b3_ref[...]).astype(o_ref.dtype)


def mnist_encoder_forward(x, params):
    """x: (B, 784) float32. params: bf16 (in,out) weights + f32 (1,out) biases."""
    B = x.shape[0]
    tile_b = _pick_tile_b(B)
    n_tiles = pl.cdiv(B, tile_b)
    B_pad = n_tiles * tile_b
    if B_pad != B:
        # Only the last partial tile is padded; no-op when B divides evenly.
        x = jnp.pad(x, ((0, B_pad - B), (0, 0)))

    flops = 2 * B_pad * (INPUT_DIM * H1 + H1 * H2 + H2 * OUT_PAD)
    bytes_accessed = (
        B_pad * INPUT_DIM * 4                                          # x (f32)
        + (params["w1"].size + params["w2"].size + params["w3"].size) * 2
        + (H1 + H2 + OUT_PAD) * 4                                      # biases
        + B_pad * OUT_PAD * 4                                          # out
    )

    out_padded = pl.pallas_call(
        _mlp_kernel,
        out_shape=jax.ShapeDtypeStruct((B_pad, OUT_PAD), jnp.float32),
        grid=(n_tiles,),
        in_specs=[
            pl.BlockSpec((tile_b, INPUT_DIM), lambda i: (i, 0)),   # x tile (pipelined, f32)
            pl.BlockSpec((INPUT_DIM, H1), lambda i: (0, 0)),       # w1 (VMEM-resident)
            pl.BlockSpec((1, H1), lambda i: (0, 0)),               # b1
            pl.BlockSpec((H1, H2), lambda i: (0, 0)),              # w2
            pl.BlockSpec((1, H2), lambda i: (0, 0)),               # b2
            pl.BlockSpec((H2, OUT_PAD), lambda i: (0, 0)),         # w3
            pl.BlockSpec((1, OUT_PAD), lambda i: (0, 0)),          # b3
        ],
        out_specs=pl.BlockSpec((tile_b, OUT_PAD), lambda i: (i, 0)),
        compiler_params=pltpu.CompilerParams(
            dimension_semantics=("parallel",),
        ),
        cost_estimate=pl.CostEstimate(
            flops=flops, transcendentals=0, bytes_accessed=bytes_accessed),
    )(
        x,
        params["w1"], params["b1"],
        params["w2"], params["b2"],
        params["w3"], params["b3"],
    )
    return out_padded[:B, :OUTPUT_DIM]


def init_params(key):
    """Deterministic init matching nn.Module shapes.
    Weights: Xavier-normal (std = sqrt(2/(fan_in+fan_out))), stored (in, out), bf16.
    Biases: uniform(-1/sqrt(fan_in), 1/sqrt(fan_in)) like PyTorch Linear default, f32.
    w1 is unpadded (784, 1024); fc3 cols / b3 lanes padded 5 -> 128 with zeros."""
    keys = jax.random.split(key, 6)

    def xavier(k, fan_in, fan_out):
        std = math.sqrt(2.0 / (fan_in + fan_out))
        return std * jax.random.normal(k, (fan_in, fan_out), dtype=jnp.float32)

    def bias(k, fan_in, fan_out):
        bound = 1.0 / math.sqrt(fan_in)
        return jax.random.uniform(
            k, (1, fan_out), dtype=jnp.float32, minval=-bound, maxval=bound
        )

    w1 = xavier(keys[0], INPUT_DIM, H1)
    b1 = bias(keys[1], INPUT_DIM, H1)

    w2 = xavier(keys[2], H1, H2)
    b2 = bias(keys[3], H1, H2)

    w3_real = xavier(keys[4], H2, OUTPUT_DIM)
    b3_real = bias(keys[5], H2, OUTPUT_DIM)
    w3 = jnp.zeros((H2, OUT_PAD), jnp.float32).at[:, :OUTPUT_DIM].set(w3_real)
    b3 = jnp.zeros((1, OUT_PAD), jnp.float32).at[:, :OUTPUT_DIM].set(b3_real)

    return {
        "w1": w1.astype(jnp.bfloat16), "b1": b1,
        "w2": w2.astype(jnp.bfloat16), "b2": b2,
        "w3": w3.astype(jnp.bfloat16), "b3": b3,
    }


def reference_forward(x, params):
    """Pure-JAX reference performing the same bf16-in / f32-accumulate math."""
    xb = x.astype(jnp.bfloat16)
    h1 = jnp.maximum(
        jnp.dot(xb, params["w1"], preferred_element_type=jnp.float32) + params["b1"], 0.0)
    h2 = jnp.maximum(
        jnp.dot(h1.astype(jnp.bfloat16), params["w2"],
                preferred_element_type=jnp.float32) + params["b2"], 0.0)
    o = jnp.dot(h2.astype(jnp.bfloat16), params["w3"],
                preferred_element_type=jnp.float32) + params["b3"]
    return o[:, :OUTPUT_DIM]


if __name__ == "__main__":
    key = jax.random.PRNGKey(0)
    k_x, k_p, k_x2 = jax.random.split(key, 3)
    params = init_params(k_p)

    # Tiny latency-bound batch (single small tile path).
    B = 8
    x = jax.random.normal(k_x, (B, INPUT_DIM), dtype=jnp.float32)
    out = jax.block_until_ready(mnist_encoder_forward(x, params))
    ref = reference_forward(x, params)
    assert out.shape == (B, OUTPUT_DIM), out.shape
    assert jnp.allclose(out, ref, atol=1e-2, rtol=1e-2), "mismatch vs reference (B=8)"

    # Medium batch (multi-tile / megacore path with a partial last tile).
    B2 = 300
    x2 = jax.random.normal(k_x2, (B2, INPUT_DIM), dtype=jnp.float32)
    out2 = jax.block_until_ready(mnist_encoder_forward(x2, params))
    ref2 = reference_forward(x2, params)
    assert out2.shape == (B2, OUTPUT_DIM), out2.shape
    assert jnp.allclose(out2, ref2, atol=1e-2, rtol=1e-2), "mismatch vs reference (B=300)"

    print("KERNEL_OK")
</pallas_src>

<mosaic_0001>
module attributes {stable_mosaic.version = 11 : i64} {
  func.func @_mlp_kernel(%arg0: i32, %arg1: memref<8x784xf32, #tpu.memory_space<vmem>>, %arg2: memref<784x1024xbf16, #tpu.memory_space<vmem>>, %arg3: memref<1x1024xf32, #tpu.memory_space<vmem>>, %arg4: memref<1024x256xbf16, #tpu.memory_space<vmem>>, %arg5: memref<1x256xf32, #tpu.memory_space<vmem>>, %arg6: memref<256x128xbf16, #tpu.memory_space<vmem>>, %arg7: memref<1x128xf32, #tpu.memory_space<vmem>>, %arg8: memref<8x128xf32, #tpu.memory_space<vmem>>) attributes {dimension_semantics = [#tpu.dimension_semantics<parallel>], iteration_bounds = array<i64: 1>, scalar_prefetch = 0 : i64, scratch_operands = 0 : i64, tpu.core_type = #tpu.core_type<tc>, window_params = [{transform_indices = @transform_0, window_bounds = array<i64: 8, 784>}, {pipeline_mode = #tpu.pipeline_mode<synchronous>, transform_indices = @transform_1, window_bounds = array<i64: 784, 1024>}, {pipeline_mode = #tpu.pipeline_mode<synchronous>, transform_indices = @transform_2, window_bounds = array<i64: 1, 1024>}, {pipeline_mode = #tpu.pipeline_mode<synchronous>, transform_indices = @transform_3, window_bounds = array<i64: 1024, 256>}, {pipeline_mode = #tpu.pipeline_mode<synchronous>, transform_indices = @transform_4, window_bounds = array<i64: 1, 256>}, {pipeline_mode = #tpu.pipeline_mode<synchronous>, transform_indices = @transform_5, window_bounds = array<i64: 256, 128>}, {pipeline_mode = #tpu.pipeline_mode<synchronous>, transform_indices = @transform_6, window_bounds = array<i64: 1, 128>}, {transform_indices = @transform_7, window_bounds = array<i64: 8, 128>}]} {
    %c0 = arith.constant 0 : index
    %c0_0 = arith.constant 0 : index
    %0 = vector.load %arg1[%c0, %c0_0] : memref<8x784xf32, #tpu.memory_space<vmem>>, vector<8x784xf32>
    %1 = arith.truncf %0 : vector<8x784xf32> to vector<8x784xbf16>
    %c0_1 = arith.constant 0 : index
    %c0_2 = arith.constant 0 : index
    %2 = vector.load %arg2[%c0_1, %c0_2] : memref<784x1024xbf16, #tpu.memory_space<vmem>>, vector<784x1024xbf16>
    %cst = arith.constant dense<0.000000e+00> : vector<8x1024xf32>
    %3 = tpu.matmul %1, %2, %cst {dimension_numbers = #tpu.dot_dimension_numbers<[1], [0], [0], [1], [0, 0, 1, 1], [], []>} : vector<8x784xbf16>, vector<784x1024xbf16>, vector<8x1024xf32> -> vector<8x1024xf32>
    %c0_3 = arith.constant 0 : index
    %c0_4 = arith.constant 0 : index
    %4 = vector.load %arg3[%c0_3, %c0_4] : memref<1x1024xf32, #tpu.memory_space<vmem>>, vector<1x1024xf32>
    %5 = vector.broadcast %4 : vector<1x1024xf32> to vector<8x1024xf32>
    %6 = arith.addf %3, %5 : vector<8x1024xf32>
    %cst_5 = arith.constant 0.000000e+00 : f32
    %7 = vector.broadcast %cst_5 : f32 to vector<8x1024xf32>
    %8 = arith.maximumf %6, %7 : vector<8x1024xf32>
    %9 = arith.truncf %8 : vector<8x1024xf32> to vector<8x1024xbf16>
    %c0_6 = arith.constant 0 : index
    %c0_7 = arith.constant 0 : index
    %10 = vector.load %arg4[%c0_6, %c0_7] : memref<1024x256xbf16, #tpu.memory_space<vmem>>, vector<1024x256xbf16>
    %cst_8 = arith.constant dense<0.000000e+00> : vector<8x256xf32>
    %11 = tpu.matmul %9, %10, %cst_8 {dimension_numbers = #tpu.dot_dimension_numbers<[1], [0], [0], [1], [0, 0, 1, 1], [], []>} : vector<8x1024xbf16>, vector<1024x256xbf16>, vector<8x256xf32> -> vector<8x256xf32>
    %c0_9 = arith.constant 0 : index
    %c0_10 = arith.constant 0 : index
    %12 = vector.load %arg5[%c0_9, %c0_10] : memref<1x256xf32, #tpu.memory_space<vmem>>, vector<1x256xf32>
    %13 = vector.broadcast %12 : vector<1x256xf32> to vector<8x256xf32>
    %14 = arith.addf %11, %13 : vector<8x256xf32>
    %cst_11 = arith.constant 0.000000e+00 : f32
    %15 = vector.broadcast %cst_11 : f32 to vector<8x256xf32>
    %16 = arith.maximumf %14, %15 : vector<8x256xf32>
    %17 = arith.truncf %16 : vector<8x256xf32> to vector<8x256xbf16>
    %c0_12 = arith.constant 0 : index
    %c0_13 = arith.constant 0 : index
    %18 = vector.load %arg6[%c0_12, %c0_13] : memref<256x128xbf16, #tpu.memory_space<vmem>>, vector<256x128xbf16>
    %cst_14 = arith.constant dense<0.000000e+00> : vector<8x128xf32>
    %19 = tpu.matmul %17, %18, %cst_14 {dimension_numbers = #tpu.dot_dimension_numbers<[1], [0], [0], [1], [0, 0, 1, 1], [], []>} : vector<8x256xbf16>, vector<256x128xbf16>, vector<8x128xf32> -> vector<8x128xf32>
    %c0_15 = arith.constant 0 : index
    %c0_16 = arith.constant 0 : index
    %20 = vector.load %arg7[%c0_15, %c0_16] : memref<1x128xf32, #tpu.memory_space<vmem>>, vector<1x128xf32>
    %21 = vector.broadcast %20 : vector<1x128xf32> to vector<8x128xf32>
    %22 = arith.addf %19, %21 : vector<8x128xf32>
    %c0_17 = arith.constant 0 : index
    %c0_18 = arith.constant 0 : index
    %23 = vector.load %arg8[%c0_17, %c0_18] : memref<8x128xf32, #tpu.memory_space<vmem>>, vector<8x128xf32>
    tpu.vector_store %arg8[%c0_17, %c0_18], %22 {strides = array<i32>} : memref<8x128xf32, #tpu.memory_space<vmem>>, vector<8x128xf32>,
    return
  }
  func.func @transform_0(%arg0: i32) -> (i32, i32) {
    %c0_i32 = arith.constant 0 : i32
    %c0_i32_0 = arith.constant 0 : i32
    return %arg0, %c0_i32 : i32, i32
  }
  func.func @transform_1(%arg0: i32) -> (i32, i32) {
    %c0_i32 = arith.constant 0 : i32
    %c0_i32_0 = arith.constant 0 : i32
    %c0_i32_1 = arith.constant 0 : i32
    return %c0_i32, %c0_i32_0 : i32, i32
  }
  func.func @transform_2(%arg0: i32) -> (i32, i32) {
    %c0_i32 = arith.constant 0 : i32
    %c0_i32_0 = arith.constant 0 : i32
    %c0_i32_1 = arith.constant 0 : i32
    return %c0_i32, %c0_i32_0 : i32, i32
  }
  func.func @transform_3(%arg0: i32) -> (i32, i32) {
    %c0_i32 = arith.constant 0 : i32
    %c0_i32_0 = arith.constant 0 : i32
    %c0_i32_1 = arith.constant 0 : i32
    return %c0_i32, %c0_i32_0 : i32, i32
  }
  func.func @transform_4(%arg0: i32) -> (i32, i32) {
    %c0_i32 = arith.constant 0 : i32
    %c0_i32_0 = arith.constant 0 : i32
    %c0_i32_1 = arith.constant 0 : i32
    return %c0_i32, %c0_i32_0 : i32, i32
  }
  func.func @transform_5(%arg0: i32) -> (i32, i32) {
    %c0_i32 = arith.constant 0 : i32
    %c0_i32_0 = arith.constant 0 : i32
    %c0_i32_1 = arith.constant 0 : i32
    return %c0_i32, %c0_i32_0 : i32, i32
  }
  func.func @transform_6(%arg0: i32) -> (i32, i32) {
    %c0_i32 = arith.constant 0 : i32
    %c0_i32_0 = arith.constant 0 : i32
    %c0_i32_1 = arith.constant 0 : i32
    return %c0_i32, %c0_i32_0 : i32, i32
  }
  func.func @transform_7(%arg0: i32) -> (i32, i32) {
    %c0_i32 = arith.constant 0 : i32
    %c0_i32_0 = arith.constant 0 : i32
    return %arg0, %c0_i32 : i32, i32
  }
}

</mosaic_0001>

<llo_original>
// kernel: tpu_custom_call.1
$region0: #{tpu_custom_call.1}
  #allocation0 [shape = 'u32[]', space=smem, size = 0x4, offset = 0x4, fixed_abs, tag = 'smem constant byte address 0x4 - core index']
  #allocation1 [shape = 'u32[144,128]{1,0:T(1,128)}', space=vmem, size = 0x12000, scoped, tag = 'internal scratch']
  %s0 = inlined_call_operand.hbm [shape: f32[8,784], index: 0, kind: input, shape index: {}]
  %s1 = inlined_call_operand.hbm [shape: bf16[784,1024], index: 1, kind: input, shape index: {}]
  %s2 = inlined_call_operand.hbm [shape: f32[1,1024], index: 2, kind: input, shape index: {}]
  %s3 = inlined_call_operand.hbm [shape: bf16[1024,256], index: 3, kind: input, shape index: {}]
  %s4 = inlined_call_operand.hbm [shape: f32[1,256], index: 4, kind: input, shape index: {}]
  %s5 = inlined_call_operand.hbm [shape: bf16[256,128], index: 5, kind: input, shape index: {}]
  %s6 = inlined_call_operand.hbm [shape: f32[1,128], index: 6, kind: input, shape index: {}]
  %s7 = inlined_call_operand.hbm [shape: f32[8,128], index: 7, kind: output, shape index: {}]
  %s8 = sld [smem:[#allocation0]]
  $region66: #{tpu_custom_call.1} parent=0
    _
  %s10 = ssub.s32 1, %s8
  %s11 = scalar_select 0, %s10, %s8
  $region1: #{tpu_custom_call.1} parent=0
    #allocation2 [shape = 'u8[28672]{0}', space=vmem, size = 0x7000, scoped, tag = 'input window, operand 0, single buffered']
    #allocation3 [shape = 's32[1]{0}', space=sflag, size = 0x4, scoped, tag = 'scoped memory for tpu_custom_call.1']
    #allocation4 [shape = 's32[1]{0}', space=sflag, size = 0x4, scoped, tag = 'scoped memory for tpu_custom_call.1']
    #allocation5 [shape = 'u8[1605632]{0}', space=vmem, size = 0x188000, scoped, tag = 'input window, operand 1, single buffered']
    #allocation6 [shape = 's32[1]{0}', space=sflag, size = 0x4, scoped, tag = 'scoped memory for tpu_custom_call.1']
    #allocation7 [shape = 'u8[4096]{0}', space=vmem, size = 0x1000, scoped, tag = 'input window, operand 2, single buffered']
    #allocation8 [shape = 'u8[524288]{0}', space=vmem, size = 0x80000, scoped, tag = 'input window, operand 3, single buffered']
    #allocation9 [shape = 's32[1]{0}', space=sflag, size = 0x4, scoped, tag = 'scoped memory for tpu_custom_call.1']
    #allocation10 [shape = 'u8[1024]{0}', space=vmem, size = 0x400, scoped, tag = 'input window, operand 4, single buffered']
    #allocation11 [shape = 'u8[65536]{0}', space=vmem, size = 0x10000, scoped, tag = 'input window, operand 5, single buffered']
    #allocation12 [shape = 's32[1]{0}', space=sflag, size = 0x4, scoped, tag = 'scoped memory for tpu_custom_call.1']
    #allocation13 [shape = 'u8[512]{0}', space=vmem, size = 0x400, scoped, tag = 'input window, operand 6, single buffered']
    #allocation14 [shape = 'u8[4096]{0}', space=vmem, size = 0x1000, scoped, tag = 'output window, operand 0, single buffered']
    %12 = vsyncpa [#allocation3], 0
    %13 = vsyncpa [#allocation6], 0
    %14 = vsyncpa [#allocation9], 0
    %15 = vsyncpa [#allocation12], 0
    %16 = vsyncpa [#allocation4], 0
    // Predicated region
    $region2: #{tpu_custom_call.1} parent=1 // pred_check
      _
    $region3: #{tpu_custom_call.1} parent=1 // pred_check_branch
      %18 = sbr.rel (0) target = $region5
    $region4: #{tpu_custom_call.1} parent=1 // pred_region
      %s20 = ssub.s32 896, 896
      %21 = vsyncadd [#allocation3], %s20
      %s23 = sshll.u32 [#allocation2], 4
      %s24 = int_to_ptr.vmem [resolvable:$true] %s23
      %26 = dma.hbm_to_vmem [thread:$0]  %s0, 896, %s24, [#allocation3]
    $region5: #{tpu_custom_call.1} parent=1 // pred_fallthru
      _
    // Predicated region
    $region6: #{tpu_custom_call.1} parent=1 // pred_check
      _
    $region7: #{tpu_custom_call.1} parent=1 // pred_check_branch
      %28 = sbr.rel (0) target = $region9
    $region8: #{tpu_custom_call.1} parent=1 // pred_region
      %s30 = ssub.s32 50176, 50176
      %31 = vsyncadd [#allocation6], %s30
      %s32 = sshll.u32 [#allocation5], 4
      %s33 = int_to_ptr.vmem [resolvable:$true] %s32
      %38 = dma.hbm_to_vmem [thread:$0]  %s1, 50176, %s33, [#allocation6], 512, 512, 32
    $region9: #{tpu_custom_call.1} parent=1 // pred_fallthru
      _
    // Predicated region
    $region10: #{tpu_custom_call.1} parent=1 // pred_check
      _
    $region11: #{tpu_custom_call.1} parent=1 // pred_check_branch
      %40 = sbr.rel (0) target = $region13
    $region12: #{tpu_custom_call.1} parent=1 // pred_region
      %s42 = ssub.s32 128, 128
      %43 = vsyncadd [#allocation6], %s42
      %s45 = sshll.u32 [#allocation7], 4
      %s46 = int_to_ptr.vmem [resolvable:$true] %s45
      %48 = dma.hbm_to_vmem [thread:$0]  %s2, 128, %s46, [#allocation6]
    $region13: #{tpu_custom_call.1} parent=1 // pred_fallthru
      _
    // Predicated region
    $region14: #{tpu_custom_call.1} parent=1 // pred_check
      _
    $region15: #{tpu_custom_call.1} parent=1 // pred_check_branch
      %50 = sbr.rel (0) target = $region17
    $region16: #{tpu_custom_call.1} parent=1 // pred_region
      %s52 = ssub.s32 16384, 16384
      %53 = vsyncadd [#allocation9], %s52
      %s54 = sshll.u32 [#allocation8], 4
      %s55 = int_to_ptr.vmem [resolvable:$true] %s54
      %60 = dma.hbm_to_vmem [thread:$0]  %s3, 16384, %s55, [#allocation9], 128, 128, 8
    $region17: #{tpu_custom_call.1} parent=1 // pred_fallthru
      _
    // Predicated region
    $region18: #{tpu_custom_call.1} parent=1 // pred_check
      _
    $region19: #{tpu_custom_call.1} parent=1 // pred_check_branch
      %62 = sbr.rel (0) target = $region21
    $region20: #{tpu_custom_call.1} parent=1 // pred_region
      %s64 = ssub.s32 32, 32
      %65 = vsyncadd [#allocation9], %s64
      %s67 = sshll.u32 [#allocation10], 4
      %s68 = int_to_ptr.vmem [resolvable:$true] %s67
      %70 = dma.hbm_to_vmem [thread:$0]  %s4, 32, %s68, [#allocation9]
    $region21: #{tpu_custom_call.1} parent=1 // pred_fallthru
      _
    // Predicated region
    $region22: #{tpu_custom_call.1} parent=1 // pred_check
      _
    $region23: #{tpu_custom_call.1} parent=1 // pred_check_branch
      %72 = sbr.rel (0) target = $region25
    $region24: #{tpu_custom_call.1} parent=1 // pred_region
      %s74 = ssub.s32 2048, 2048
      %75 = vsyncadd [#allocation12], %s74
      %s76 = sshll.u32 [#allocation11], 4
      %s77 = int_to_ptr.vmem [resolvable:$true] %s76
      %82 = dma.hbm_to_vmem [thread:$0]  %s5, 2048, %s77, [#allocation12], 64, 64, 4
    $region25: #{tpu_custom_call.1} parent=1 // pred_fallthru
      _
    // Predicated region
    $region26: #{tpu_custom_call.1} parent=1 // pred_check
      _
    $region27: #{tpu_custom_call.1} parent=1 // pred_check_branch
      %84 = sbr.rel (0) target = $region29
    $region28: #{tpu_custom_call.1} parent=1 // pred_region
      %s86 = ssub.s32 16, 16
      %87 = vsyncadd [#allocation12], %s86
      %s89 = sshll.u32 [#allocation13], 4
      %s90 = int_to_ptr.vmem [resolvable:$true] %s89
      %92 = dma.hbm_to_vmem [thread:$0]  %s6, 16, %s90, [#allocation12]
    $region29: #{tpu_custom_call.1} parent=1 // pred_fallthru
      _
    // Predicated region
    $region30: #{tpu_custom_call.1} parent=1 // pred_check
      _
    $region31: #{tpu_custom_call.1} parent=1 // pred_check_branch
      %94 = sbr.rel (0) target = $region33
    $region32: #{tpu_custom_call.1} parent=1 // pred_region
      %95 = dma.done [#allocation3], 896
    $region33: #{tpu_custom_call.1} parent=1 // pred_fallthru
      _
    // Predicated region
    $region34: #{tpu_custom_call.1} parent=1 // pred_check
      _
    $region35: #{tpu_custom_call.1} parent=1 // pred_check_branch
      %97 = sbr.rel (0) target = $region37
    $region36: #{tpu_custom_call.1} parent=1 // pred_region
      %98 = dma.done [#allocation6], 50176
    $region37: #{tpu_custom_call.1} parent=1 // pred_fallthru
      _
    // Predicated region
    $region38: #{tpu_custom_call.1} parent=1 // pred_check
      _
    $region39: #{tpu_custom_call.1} parent=1 // pred_check_branch
      %100 = sbr.rel (0) target = $region41
    $region40: #{tpu_custom_call.1} parent=1 // pred_region
      %101 = dma.done [#allocation6], 128
    $region41: #{tpu_custom_call.1} parent=1 // pred_fallthru
      _
    // Predicated region
    $region42: #{tpu_custom_call.1} parent=1 // pred_check
      _
    $region43: #{tpu_custom_call.1} parent=1 // pred_check_branch
      %103 = sbr.rel (0) target = $region45
    $region44: #{tpu_custom_call.1} parent=1 // pred_region
      %104 = dma.done [#allocation9], 16384
    $region45: #{tpu_custom_call.1} parent=1 // pred_fallthru
      _
    // Predicated region
    $region46: #{tpu_custom_call.1} parent=1 // pred_check
      _
    $region47: #{tpu_custom_call.1} parent=1 // pred_check_branch
      %106 = sbr.rel (0) target = $region49
    $region48: #{tpu_custom_call.1} parent=1 // pred_region
      %107 = dma.done [#allocation9], 32
    $region49: #{tpu_custom_call.1} parent=1 // pred_fallthru
      _
    // Predicated region
    $region50: #{tpu_custom_call.1} parent=1 // pred_check
      _
    $region51: #{tpu_custom_call.1} parent=1 // pred_check_branch
      %109 = sbr.rel (0) target = $region53
    $region52: #{tpu_custom_call.1} parent=1 // pred_region
      %110 = dma.done [#allocation12], 2048
    $region53: #{tpu_custom_call.1} parent=1 // pred_fallthru
      _
    // Predicated region
    $region54: #{tpu_custom_call.1} parent=1 // pred_check
      _
    $region55: #{tpu_custom_call.1} parent=1 // pred_check_branch
      %112 = sbr.rel (0) target = $region57
    $region56: #{tpu_custom_call.1} parent=1 // pred_region
      %113 = dma.done [#allocation12], 16
    $region57: #{tpu_custom_call.1} parent=1 // pred_fallthru
      _
    %v115 = vld [vmem:[#allocation2] sm:$0xff]
    %v116 = vld [vmem:[#allocation2 + $0x8] sm:$0xff]
    %v117 = vld [vmem:[#allocation2 + $0x10] sm:$0xff]
    %v118 = vld [vmem:[#allocation2 + $0x18] sm:$0xff]
    %v119 = vld [vmem:[#allocation2 + $0x20] sm:$0xff]
    %v120 = vld [vmem:[#allocation2 + $0x28] sm:$0xff]
    %v121 = vld [vmem:[#allocation2 + $0x30] sm:$0xff]
    %v122 = vpack.c.bf16 %v115, %v115
    %v123 = vpack.c.bf16 %v116, %v116
    %v124 = vpack.c.bf16 %v117, %v117
    %v125 = vpack.c.bf16 %v118, %v118
    %v126 = vpack.c.bf16 %v119, %v119
    %v127 = vpack.c.bf16 %v120, %v120
    %v128 = vpack.c.bf16 %v121, %v121
    %v129 = vld [vmem:[#allocation5] sm:$0xff]
    %v130 = vld [vmem:[#allocation5 + $0x8] sm:$0xff]
    %v131 = vld [vmem:[#allocation5 + $0x10] sm:$0xff]
    %v132 = vld [vmem:[#allocation5 + $0x18] sm:$0xff]
    %v133 = vld [vmem:[#allocation5 + $0x20] sm:$0xff]
    %v134 = vld [vmem:[#allocation5 + $0x28] sm:$0xff]
    %v135 = vld [vmem:[#allocation5 + $0x30] sm:$0xff]
    %v136 = vld [vmem:[#allocation5 + $0x38] sm:$0xff]
    %v137 = vld [vmem:[#allocation5 + $0x40] sm:$0xff]
    %v138 = vld [vmem:[#allocation5 + $0x48] sm:$0xff]
    %v139 = vld [vmem:[#allocation5 + $0x50] sm:$0xff]
    %v140 = vld [vmem:[#allocation5 + $0x58] sm:$0xff]
    %v141 = vld [vmem:[#allocation5 + $0x60] sm:$0xff]
    %v142 = vld [vmem:[#allocation5 + $0x68] sm:$0xff]
    %v143 = vld [vmem:[#allocation5 + $0x70] sm:$0xff]
    %v144 = vld [vmem:[#allocation5 + $0x78] sm:$0xff]
    %v145 = vld [vmem:[#allocation5 + $0x80] sm:$0xff]
    %v146 = vld [vmem:[#allocation5 + $0x88] sm:$0xff]
    %v147 = vld [vmem:[#allocation5 + $0x90] sm:$0xff]
    %v148 = vld [vmem:[#allocation5 + $0x98] sm:$0xff]
    %v149 = vld [vmem:[#allocation5 + $0xa0] sm:$0xff]
    %v150 = vld [vmem:[#allocation5 + $0xa8] sm:$0xff]
    %v151 = vld [vmem:[#allocation5 + $0xb0] sm:$0xff]
    %v152 = vld [vmem:[#allocation5 + $0xb8] sm:$0xff]
    %v153 = vld [vmem:[#allocation5 + $0xc0] sm:$0xff]
    %v154 = vld [vmem:[#allocation5 + $0xc8] sm:$0xff]
    %v155 = vld [vmem:[#allocation5 + $0xd0] sm:$0xff]
    %v156 = vld [vmem:[#allocation5 + $0xd8] sm:$0xff]
    %v157 = vld [vmem:[#allocation5 + $0xe0] sm:$0xff]
    %v158 = vld [vmem:[#allocation5 + $0xe8] sm:$0xff]
    %v159 = vld [vmem:[#allocation5 + $0xf0] sm:$0xff]
    %v160 = vld [vmem:[#allocation5 + $0xf8] sm:$0xff]
    %v161 = vld [vmem:[#allocation5 + $0x100] sm:$0xff]
    %v162 = vld [vmem:[#allocation5 + $0x108] sm:$0xff]
    %v163 = vld [vmem:[#allocation5 + $0x110] sm:$0xff]
    %v164 = vld [vmem:[#allocation5 + $0x118] sm:$0xff]
    %v165 = vld [vmem:[#allocation5 + $0x120] sm:$0xff]
    %v166 = vld [vmem:[#allocation5 + $0x128] sm:$0xff]
    %v167 = vld [vmem:[#allocation5 + $0x130] sm:$0xff]
    %v168 = vld [vmem:[#allocation5 + $0x138] sm:$0xff]
    %v169 = vld [vmem:[#allocation5 + $0x140] sm:$0xff]
    %v170 = vld [vmem:[#allocation5 + $0x148] sm:$0xff]
    %v171 = vld [vmem:[#allocation5 + $0x150] sm:$0xff]
    %v172 = vld [vmem:[#allocation5 + $0x158] sm:$0xff]
    %v173 = vld [vmem:[#allocation5 + $0x160] sm:$0xff]
    %v174 = vld [vmem:[#allocation5 + $0x168] sm:$0xff]
    %v175 = vld [vmem:[#allocation5 + $0x170] sm:$0xff]
    %v176 = vld [vmem:[#allocation5 + $0x178] sm:$0xff]
    %v177 = vld [vmem:[#allocation5 + $0x180] sm:$0xff]
    %v178 = vld [vmem:[#allocation5 + $0x188] sm:$0xff]
    %v179 = vld [vmem:[#allocation5 + $0x190] sm:$0xff]
    %v180 = vld [vmem:[#allocation5 + $0x198] sm:$0xff]
    %v181 = vld [vmem:[#allocation5 + $0x1a0] sm:$0xff]
    %v182 = vld [vmem:[#allocation5 + $0x1a8] sm:$0xff]
    %v183 = vld [vmem:[#allocation5 + $0x1b0] sm:$0xff]
    %v184 = vld [vmem:[#allocation5 + $0x1b8] sm:$0xff]
    %v185 = vld [vmem:[#allocation5 + $0x1c0] sm:$0xff]
    %v186 = vld [vmem:[#allocation5 + $0x1c8] sm:$0xff]
    %v187 = vld [vmem:[#allocation5 + $0x1d0] sm:$0xff]
    %v188 = vld [vmem:[#allocation5 + $0x1d8] sm:$0xff]
    %v189 = vld [vmem:[#allocation5 + $0x1e0] sm:$0xff]
    %v190 = vld [vmem:[#allocation5 + $0x1e8] sm:$0xff]
    %v191 = vld [vmem:[#allocation5 + $0x1f0] sm:$0xff]
    %v192 = vld [vmem:[#allocation5 + $0x1f8] sm:$0xff]
    %v193 = vld [vmem:[#allocation5 + $0x200] sm:$0xff]
    %v194 = vld [vmem:[#allocation5 + $0x208] sm:$0xff]
    %v195 = vld [vmem:[#allocation5 + $0x210] sm:$0xff]
    %v196 = vld [vmem:[#allocation5 + $0x218] sm:$0xff]
    %v197 = vld [vmem:[#allocation5 + $0x220] sm:$0xff]
    %v198 = vld [vmem:[#allocation5 + $0x228] sm:$0xff]
    %v199 = vld [vmem:[#allocation5 + $0x230] sm:$0xff]
    %v200 = vld [vmem:[#allocation5 + $0x238] sm:$0xff]
    %v201 = vld [vmem:[#allocation5 + $0x240] sm:$0xff]
    %v202 = vld [vmem:[#allocation5 + $0x248] sm:$0xff]
    %v203 = vld [vmem:[#allocation5 + $0x250] sm:$0xff]
    %v204 = vld [vmem:[#allocation5 + $0x258] sm:$0xff]
    %v205 = vld [vmem:[#allocation5 + $0x260] sm:$0xff]
    %v206 = vld [vmem:[#allocation5 + $0x268] sm:$0xff]
    %v207 = vld [vmem:[#allocation5 + $0x270] sm:$0xff]
    %v208 = vld [vmem:[#allocation5 + $0x278] sm:$0xff]
    %v209 = vld [vmem:[#allocation5 + $0x280] sm:$0xff]
    %v210 = vld [vmem:[#allocation5 + $0x288] sm:$0xff]
    %v211 = vld [vmem:[#allocation5 + $0x290] sm:$0xff]
    %v212 = vld [vmem:[#allocation5 + $0x298] sm:$0xff]
    %v213 = vld [vmem:[#allocation5 + $0x2a0] sm:$0xff]
    %v214 = vld [vmem:[#allocation5 + $0x2a8] sm:$0xff]
    %v215 = vld [vmem:[#allocation5 + $0x2b0] sm:$0xff]
    %v216 = vld [vmem:[#allocation5 + $0x2b8] sm:$0xff]
    %v217 = vld [vmem:[#allocation5 + $0x2c0] sm:$0xff]
    %v218 = vld [vmem:[#allocation5 + $0x2c8] sm:$0xff]
    %v219 = vld [vmem:[#allocation5 + $0x2d0] sm:$0xff]
    %v220 = vld [vmem:[#allocation5 + $0x2d8] sm:$0xff]
    %v221 = vld [vmem:[#allocation5 + $0x2e0] sm:$0xff]
    %v222 = vld [vmem:[#allocation5 + $0x2e8] sm:$0xff]
    %v223 = vld [vmem:[#allocation5 + $0x2f0] sm:$0xff]
    %v224 = vld [vmem:[#allocation5 + $0x2f8] sm:$0xff]
    %v225 = vld [vmem:[#allocation5 + $0x300] sm:$0xff]
    %v226 = vld [vmem:[#allocation5 + $0x308] sm:$0xff]
    %v227 = vld [vmem:[#allocation5 + $0x310] sm:$0xff]
    %v228 = vld [vmem:[#allocation5 + $0x318] sm:$0xff]
    %v229 = vld [vmem:[#allocation5 + $0x320] sm:$0xff]
    %v230 = vld [vmem:[#allocation5 + $0x328] sm:$0xff]
    %v231 = vld [vmem:[#allocation5 + $0x330] sm:$0xff]
    %v232 = vld [vmem:[#allocation5 + $0x338] sm:$0xff]
    %v233 = vld [vmem:[#allocation5 + $0x340] sm:$0xff]
    %v234 = vld [vmem:[#allocation5 + $0x348] sm:$0xff]
    %v235 = vld [vmem:[#allocation5 + $0x350] sm:$0xff]
    %v236 = vld [vmem:[#allocation5 + $0x358] sm:$0xff]
    %v237 = vld [vmem:[#allocation5 + $0x360] sm:$0xff]
    %v238 = vld [vmem:[#allocation5 + $0x368] sm:$0xff]
    %v239 = vld [vmem:[#allocation5 + $0x370] sm:$0xff]
    %v240 = vld [vmem:[#allocation5 + $0x378] sm:$0xff]
    %v241 = vld [vmem:[#allocation5 + $0x380] sm:$0xff]
    %v242 = vld [vmem:[#allocation5 + $0x388] sm:$0xff]
    %v243 = vld [vmem:[#allocation5 + $0x390] sm:$0xff]
    %v244 = vld [vmem:[#allocation5 + $0x398] sm:$0xff]
    %v245 = vld [vmem:[#allocation5 + $0x3a0] sm:$0xff]
    %v246 = vld [vmem:[#allocation5 + $0x3a8] sm:$0xff]
    %v247 = vld [vmem:[#allocation5 + $0x3b0] sm:$0xff]
    %v248 = vld [vmem:[#allocation5 + $0x3b8] sm:$0xff]
    %v249 = vld [vmem:[#allocation5 + $0x3c0] sm:$0xff]
    %v250 = vld [vmem:[#allocation5 + $0x3c8] sm:$0xff]
    %v251 = vld [vmem:[#allocation5 + $0x3d0] sm:$0xff]
    %v252 = vld [vmem:[#allocation5 + $0x3d8] sm:$0xff]
    %v253 = vld [vmem:[#allocation5 + $0x3e0] sm:$0xff]
    %v254 = vld [vmem:[#allocation5 + $0x3e8] sm:$0xff]
    %v255 = vld [vmem:[#allocation5 + $0x3f0] sm:$0xff]
    %v256 = vld [vmem:[#allocation5 + $0x3f8] sm:$0xff]
    %v257 = vld [vmem:[#allocation5 + $0x400] sm:$0xff]
    %v258 = vld [vmem:[#allocation5 + $0x408] sm:$0xff]
    %v259 = vld [vmem:[#allocation5 + $0x410] sm:$0xff]
    %v260 = vld [vmem:[#allocation5 + $0x418] sm:$0xff]
    %v261 = vld [vmem:[#allocation5 + $0x420] sm:$0xff]
    %v262 = vld [vmem:[#allocation5 + $0x428] sm:$0xff]
    %v263 = vld [vmem:[#allocation5 + $0x430] sm:$0xff]
    %v264 = vld [vmem:[#allocation5 + $0x438] sm:$0xff]
    %v265 = vld [vmem:[#allocation5 + $0x440] sm:$0xff]
    %v266 = vld [vmem:[#allocation5 + $0x448] sm:$0xff]
    %v267 = vld [vmem:[#allocation5 + $0x450] sm:$0xff]
    %v268 = vld [vmem:[#allocation5 + $0x458] sm:$0xff]
    %v269 = vld [vmem:[#allocation5 + $0x460] sm:$0xff]
    %v270 = vld [vmem:[#allocation5 + $0x468] sm:$0xff]
    %v271 = vld [vmem:[#allocation5 + $0x470] sm:$0xff]
    %v272 = vld [vmem:[#allocation5 + $0x478] sm:$0xff]
    %v273 = vld [vmem:[#allocation5 + $0x480] sm:$0xff]
    %v274 = vld [vmem:[#allocation5 + $0x488] sm:$0xff]
    %v275 = vld [vmem:[#allocation5 + $0x490] sm:$0xff]
    %v276 = vld [vmem:[#allocation5 + $0x498] sm:$0xff]
    %v277 = vld [vmem:[#allocation5 + $0x4a0] sm:$0xff]
    %v278 = vld [vmem:[#allocation5 + $0x4a8] sm:$0xff]
    %v279 = vld [vmem:[#allocation5 + $0x4b0] sm:$0xff]
    %v280 = vld [vmem:[#allocation5 + $0x4b8] sm:$0xff]
    %v281 = vld [vmem:[#allocation5 + $0x4c0] sm:$0xff]
    %v282 = vld [vmem:[#allocation5 + $0x4c8] sm:$0xff]
    %v283 = vld [vmem:[#allocation5 + $0x4d0] sm:$0xff]
    %v284 = vld [vmem:[#allocation5 + $0x4d8] sm:$0xff]
    %v285 = vld [vmem:[#allocation5 + $0x4e0] sm:$0xff]
    %v286 = vld [vmem:[#allocation5 + $0x4e8] sm:$0xff]
    %v287 = vld [vmem:[#allocation5 + $0x4f0] sm:$0xff]
    %v288 = vld [vmem:[#allocation5 + $0x4f8] sm:$0xff]
    %v289 = vld [vmem:[#allocation5 + $0x500] sm:$0xff]
    %v290 = vld [vmem:[#allocation5 + $0x508] sm:$0xff]
    %v291 = vld [vmem:[#allocation5 + $0x510] sm:$0xff]
    %v292 = vld [vmem:[#allocation5 + $0x518] sm:$0xff]
    %v293 = vld [vmem:[#allocation5 + $0x520] sm:$0xff]
    %v294 = vld [vmem:[#allocation5 + $0x528] sm:$0xff]
    %v295 = vld [vmem:[#allocation5 + $0x530] sm:$0xff]
    %v296 = vld [vmem:[#allocation5 + $0x538] sm:$0xff]
    %v297 = vld [vmem:[#allocation5 + $0x540] sm:$0xff]
    %v298 = vld [vmem:[#allocation5 + $0x548] sm:$0xff]
    %v299 = vld [vmem:[#allocation5 + $0x550] sm:$0xff]
    %v300 = vld [vmem:[#allocation5 + $0x558] sm:$0xff]
    %v301 = vld [vmem:[#allocation5 + $0x560] sm:$0xff]
    %v302 = vld [vmem:[#allocation5 + $0x568] sm:$0xff]
    %v303 = vld [vmem:[#allocation5 + $0x570] sm:$0xff]
    %v304 = vld [vmem:[#allocation5 + $0x578] sm:$0xff]
    %v305 = vld [vmem:[#allocation5 + $0x580] sm:$0xff]
    %v306 = vld [vmem:[#allocation5 + $0x588] sm:$0xff]
    %v307 = vld [vmem:[#allocation5 + $0x590] sm:$0xff]
    %v308 = vld [vmem:[#allocation5 + $0x598] sm:$0xff]
    %v309 = vld [vmem:[#allocation5 + $0x5a0] sm:$0xff]
    %v310 = vld [vmem:[#allocation5 + $0x5a8] sm:$0xff]
    %v311 = vld [vmem:[#allocation5 + $0x5b0] sm:$0xff]
    %v312 = vld [vmem:[#allocation5 + $0x5b8] sm:$0xff]
    %v313 = vld [vmem:[#allocation5 + $0x5c0] sm:$0xff]
    %v314 = vld [vmem:[#allocation5 + $0x5c8] sm:$0xff]
    %v315 = vld [vmem:[#allocation5 + $0x5d0] sm:$0xff]
    %v316 = vld [vmem:[#allocation5 + $0x5d8] sm:$0xff]
    %v317 = vld [vmem:[#allocation5 + $0x5e0] sm:$0xff]
    %v318 = vld [vmem:[#allocation5 + $0x5e8] sm:$0xff]
    %v319 = vld [vmem:[#allocation5 + $0x5f0] sm:$0xff]
    %v320 = vld [vmem:[#allocation5 + $0x5f8] sm:$0xff]
    %v321 = vld [vmem:[#allocation5 + $0x600] sm:$0xff]
    %v322 = vld [vmem:[#allocation5 + $0x608] sm:$0xff]
    %v323 = vld [vmem:[#allocation5 + $0x610] sm:$0xff]
    %v324 = vld [vmem:[#allocation5 + $0x618] sm:$0xff]
    %v325 = vld [vmem:[#allocation5 + $0x620] sm:$0xff]
    %v326 = vld [vmem:[#allocation5 + $0x628] sm:$0xff]
    %v327 = vld [vmem:[#allocation5 + $0x630] sm:$0xff]
    %v328 = vld [vmem:[#allocation5 + $0x638] sm:$0xff]
    %v329 = vld [vmem:[#allocation5 + $0x640] sm:$0xff]
    %v330 = vld [vmem:[#allocation5 + $0x648] sm:$0xff]
    %v331 = vld [vmem:[#allocation5 + $0x650] sm:$0xff]
    %v332 = vld [vmem:[#allocation5 + $0x658] sm:$0xff]
    %v333 = vld [vmem:[#allocation5 + $0x660] sm:$0xff]
    %v334 = vld [vmem:[#allocation5 + $0x668] sm:$0xff]
    %v335 = vld [vmem:[#allocation5 + $0x670] sm:$0xff]
    %v336 = vld [vmem:[#allocation5 + $0x678] sm:$0xff]
    %v337 = vld [vmem:[#allocation5 + $0x680] sm:$0xff]
    %v338 = vld [vmem:[#allocation5 + $0x688] sm:$0xff]
    %v339 = vld [vmem:[#allocation5 + $0x690] sm:$0xff]
    %v340 = vld [vmem:[#allocation5 + $0x698] sm:$0xff]
    %v341 = vld [vmem:[#allocation5 + $0x6a0] sm:$0xff]
    %v342 = vld [vmem:[#allocation5 + $0x6a8] sm:$0xff]
    %v343 = vld [vmem:[#allocation5 + $0x6b0] sm:$0xff]
    %v344 = vld [vmem:[#allocation5 + $0x6b8] sm:$0xff]
    %v345 = vld [vmem:[#allocation5 + $0x6c0] sm:$0xff]
    %v346 = vld [vmem:[#allocation5 + $0x6c8] sm:$0xff]
    %v347 = vld [vmem:[#allocation5 + $0x6d0] sm:$0xff]
    %v348 = vld [vmem:[#allocation5 + $0x6d8] sm:$0xff]
    %v349 = vld [vmem:[#allocation5 + $0x6e0] sm:$0xff]
    %v350 = vld [vmem:[#allocation5 + $0x6e8] sm:$0xff]
    %v351 = vld [vmem:[#allocation5 + $0x6f0] sm:$0xff]
    %v352 = vld [vmem:[#allocation5 + $0x6f8] sm:$0xff]
    %v353 = vld [vmem:[#allocation5 + $0x700] sm:$0xff]
    %v354 = vld [vmem:[#allocation5 + $0x708] sm:$0xff]
    %v355 = vld [vmem:[#allocation5 + $0x710] sm:$0xff]
    %v356 = vld [vmem:[#allocation5 + $0x718] sm:$0xff]
    %v357 = vld [vmem:[#allocation5 + $0x720] sm:$0xff]
    %v358 = vld [vmem:[#allocation5 + $0x728] sm:$0xff]
    %v359 = vld [vmem:[#allocation5 + $0x730] sm:$0xff]
    %v360 = vld [vmem:[#allocation5 + $0x738] sm:$0xff]
    %v361 = vld [vmem:[#allocation5 + $0x740] sm:$0xff]
    %v362 = vld [vmem:[#allocation5 + $0x748] sm:$0xff]
    %v363 = vld [vmem:[#allocation5 + $0x750] sm:$0xff]
    %v364 = vld [vmem:[#allocation5 + $0x758] sm:$0xff]
    %v365 = vld [vmem:[#allocation5 + $0x760] sm:$0xff]
    %v366 = vld [vmem:[#allocation5 + $0x768] sm:$0xff]
    %v367 = vld [vmem:[#allocation5 + $0x770] sm:$0xff]
    %v368 = vld [vmem:[#allocation5 + $0x778] sm:$0xff]
    %v369 = vld [vmem:[#allocation5 + $0x780] sm:$0xff]
    %v370 = vld [vmem:[#allocation5 + $0x788] sm:$0xff]
    %v371 = vld [vmem:[#allocation5 + $0x790] sm:$0xff]
    %v372 = vld [vmem:[#allocation5 + $0x798] sm:$0xff]
    %v373 = vld [vmem:[#allocation5 + $0x7a0] sm:$0xff]
    %v374 = vld [vmem:[#allocation5 + $0x7a8] sm:$0xff]
    %v375 = vld [vmem:[#allocation5 + $0x7b0] sm:$0xff]
    %v376 = vld [vmem:[#allocation5 + $0x7b8] sm:$0xff]
    %v377 = vld [vmem:[#allocation5 + $0x7c0] sm:$0xff]
    %v378 = vld [vmem:[#allocation5 + $0x7c8] sm:$0xff]
    %v379 = vld [vmem:[#allocation5 + $0x7d0] sm:$0xff]
    %v380 = vld [vmem:[#allocation5 + $0x7d8] sm:$0xff]
    %v381 = vld [vmem:[#allocation5 + $0x7e0] sm:$0xff]
    %v382 = vld [vmem:[#allocation5 + $0x7e8] sm:$0xff]
    %v383 = vld [vmem:[#allocation5 + $0x7f0] sm:$0xff]
    %v384 = vld [vmem:[#allocation5 + $0x7f8] sm:$0xff]
    %v385 = vld [vmem:[#allocation5 + $0x800] sm:$0xff]
    %v386 = vld [vmem:[#allocation5 + $0x808] sm:$0xff]
    %v387 = vld [vmem:[#allocation5 + $0x810] sm:$0xff]
    %v388 = vld [vmem:[#allocation5 + $0x818] sm:$0xff]
    %v389 = vld [vmem:[#allocation5 + $0x820] sm:$0xff]
    %v390 = vld [vmem:[#allocation5 + $0x828] sm:$0xff]
    %v391 = vld [vmem:[#allocation5 + $0x830] sm:$0xff]
    %v392 = vld [vmem:[#allocation5 + $0x838] sm:$0xff]
    %v393 = vld [vmem:[#allocation5 + $0x840] sm:$0xff]
    %v394 = vld [vmem:[#allocation5 + $0x848] sm:$0xff]
    %v395 = vld [vmem:[#allocation5 + $0x850] sm:$0xff]
    %v396 = vld [vmem:[#allocation5 + $0x858] sm:$0xff]
    %v397 = vld [vmem:[#allocation5 + $0x860] sm:$0xff]
    %v398 = vld [vmem:[#allocation5 + $0x868] sm:$0xff]
    %v399 = vld [vmem:[#allocation5 + $0x870] sm:$0xff]
    %v400 = vld [vmem:[#allocation5 + $0x878] sm:$0xff]
    %v401 = vld [vmem:[#allocation5 + $0x880] sm:$0xff]
    %v402 = vld [vmem:[#allocation5 + $0x888] sm:$0xff]
    %v403 = vld [vmem:[#allocation5 + $0x890] sm:$0xff]
    %v404 = vld [vmem:[#allocation5 + $0x898] sm:$0xff]
    %v405 = vld [vmem:[#allocation5 + $0x8a0] sm:$0xff]
    %v406 = vld [vmem:[#allocation5 + $0x8a8] sm:$0xff]
    %v407 = vld [vmem:[#allocation5 + $0x8b0] sm:$0xff]
    %v408 = vld [vmem:[#allocation5 + $0x8b8] sm:$0xff]
    %v409 = vld [vmem:[#allocation5 + $0x8c0] sm:$0xff]
    %v410 = vld [vmem:[#allocation5 + $0x8c8] sm:$0xff]
    %v411 = vld [vmem:[#allocation5 + $0x8d0] sm:$0xff]
    %v412 = vld [vmem:[#allocation5 + $0x8d8] sm:$0xff]
    %v413 = vld [vmem:[#allocation5 + $0x8e0] sm:$0xff]
    %v414 = vld [vmem:[#allocation5 + $0x8e8] sm:$0xff]
    %v415 = vld [vmem:[#allocation5 + $0x8f0] sm:$0xff]
    %v416 = vld [vmem:[#allocation5 + $0x8f8] sm:$0xff]
    %v417 = vld [vmem:[#allocation5 + $0x900] sm:$0xff]
    %v418 = vld [vmem:[#allocation5 + $0x908] sm:$0xff]
    %v419 = vld [vmem:[#allocation5 + $0x910] sm:$0xff]
    %v420 = vld [vmem:[#allocation5 + $0x918] sm:$0xff]
    %v421 = vld [vmem:[#allocation5 + $0x920] sm:$0xff]
    %v422 = vld [vmem:[#allocation5 + $0x928] sm:$0xff]
    %v423 = vld [vmem:[#allocation5 + $0x930] sm:$0xff]
    %v424 = vld [vmem:[#allocation5 + $0x938] sm:$0xff]
    %v425 = vld [vmem:[#allocation5 + $0x940] sm:$0xff]
    %v426 = vld [vmem:[#allocation5 + $0x948] sm:$0xff]
    %v427 = vld [vmem:[#allocation5 + $0x950] sm:$0xff]
    %v428 = vld [vmem:[#allocation5 + $0x958] sm:$0xff]
    %v429 = vld [vmem:[#allocation5 + $0x960] sm:$0xff]
    %v430 = vld [vmem:[#allocation5 + $0x968] sm:$0xff]
    %v431 = vld [vmem:[#allocation5 + $0x970] sm:$0xff]
    %v432 = vld [vmem:[#allocation5 + $0x978] sm:$0xff]
    %v433 = vld [vmem:[#allocation5 + $0x980] sm:$0xff]
    %v434 = vld [vmem:[#allocation5 + $0x988] sm:$0xff]
    %v435 = vld [vmem:[#allocation5 + $0x990] sm:$0xff]
    %v436 = vld [vmem:[#allocation5 + $0x998] sm:$0xff]
    %v437 = vld [vmem:[#allocation5 + $0x9a0] sm:$0xff]
    %v438 = vld [vmem:[#allocation5 + $0x9a8] sm:$0xff]
    %v439 = vld [vmem:[#allocation5 + $0x9b0] sm:$0xff]
    %v440 = vld [vmem:[#allocation5 + $0x9b8] sm:$0xff]
    %v441 = vld [vmem:[#allocation5 + $0x9c0] sm:$0xff]
    %v442 = vld [vmem:[#allocation5 + $0x9c8] sm:$0xff]
    %v443 = vld [vmem:[#allocation5 + $0x9d0] sm:$0xff]
    %v444 = vld [vmem:[#allocation5 + $0x9d8] sm:$0xff]
    %v445 = vld [vmem:[#allocation5 + $0x9e0] sm:$0xff]
    %v446 = vld [vmem:[#allocation5 + $0x9e8] sm:$0xff]
    %v447 = vld [vmem:[#allocation5 + $0x9f0] sm:$0xff]
    %v448 = vld [vmem:[#allocation5 + $0x9f8] sm:$0xff]
    %v449 = vld [vmem:[#allocation5 + $0xa00] sm:$0xff]
    %v450 = vld [vmem:[#allocation5 + $0xa08] sm:$0xff]
    %v451 = vld [vmem:[#allocation5 + $0xa10] sm:$0xff]
    %v452 = vld [vmem:[#allocation5 + $0xa18] sm:$0xff]
    %v453 = vld [vmem:[#allocation5 + $0xa20] sm:$0xff]
    %v454 = vld [vmem:[#allocation5 + $0xa28] sm:$0xff]
    %v455 = vld [vmem:[#allocation5 + $0xa30] sm:$0xff]
    %v456 = vld [vmem:[#allocation5 + $0xa38] sm:$0xff]
    %v457 = vld [vmem:[#allocation5 + $0xa40] sm:$0xff]
    %v458 = vld [vmem:[#allocation5 + $0xa48] sm:$0xff]
    %v459 = vld [vmem:[#allocation5 + $0xa50] sm:$0xff]
    %v460 = vld [vmem:[#allocation5 + $0xa58] sm:$0xff]
    %v461 = vld [vmem:[#allocation5 + $0xa60] sm:$0xff]
    %v462 = vld [vmem:[#allocation5 + $0xa68] sm:$0xff]
    %v463 = vld [vmem:[#allocation5 + $0xa70] sm:$0xff]
    %v464 = vld [vmem:[#allocation5 + $0xa78] sm:$0xff]
    %v465 = vld [vmem:[#allocation5 + $0xa80] sm:$0xff]
    %v466 = vld [vmem:[#allocation5 + $0xa88] sm:$0xff]
    %v467 = vld [vmem:[#allocation5 + $0xa90] sm:$0xff]
    %v468 = vld [vmem:[#allocation5 + $0xa98] sm:$0xff]
    %v469 = vld [vmem:[#allocation5 + $0xaa0] sm:$0xff]
    %v470 = vld [vmem:[#allocation5 + $0xaa8] sm:$0xff]
    %v471 = vld [vmem:[#allocation5 + $0xab0] sm:$0xff]
    %v472 = vld [vmem:[#allocation5 + $0xab8] sm:$0xff]
    %v473 = vld [vmem:[#allocation5 + $0xac0] sm:$0xff]
    %v474 = vld [vmem:[#allocation5 + $0xac8] sm:$0xff]
    %v475 = vld [vmem:[#allocation5 + $0xad0] sm:$0xff]
    %v476 = vld [vmem:[#allocation5 + $0xad8] sm:$0xff]
    %v477 = vld [vmem:[#allocation5 + $0xae0] sm:$0xff]
    %v478 = vld [vmem:[#allocation5 + $0xae8] sm:$0xff]
    %v479 = vld [vmem:[#allocation5 + $0xaf0] sm:$0xff]
    %v480 = vld [vmem:[#allocation5 + $0xaf8] sm:$0xff]
    %v481 = vld [vmem:[#allocation5 + $0xb00] sm:$0xff]
    %v482 = vld [vmem:[#allocation5 + $0xb08] sm:$0xff]
    %v483 = vld [vmem:[#allocation5 + $0xb10] sm:$0xff]
    %v484 = vld [vmem:[#allocation5 + $0xb18] sm:$0xff]
    %v485 = vld [vmem:[#allocation5 + $0xb20] sm:$0xff]
    %v486 = vld [vmem:[#allocation5 + $0xb28] sm:$0xff]
    %v487 = vld [vmem:[#allocation5 + $0xb30] sm:$0xff]
    %v488 = vld [vmem:[#allocation5 + $0xb38] sm:$0xff]
    %v489 = vld [vmem:[#allocation5 + $0xb40] sm:$0xff]
    %v490 = vld [vmem:[#allocation5 + $0xb48] sm:$0xff]
    %v491 = vld [vmem:[#allocation5 + $0xb50] sm:$0xff]
    %v492 = vld [vmem:[#allocation5 + $0xb58] sm:$0xff]
    %v493 = vld [vmem:[#allocation5 + $0xb60] sm:$0xff]
    %v494 = vld [vmem:[#allocation5 + $0xb68] sm:$0xff]
    %v495 = vld [vmem:[#allocation5 + $0xb70] sm:$0xff]
    %v496 = vld [vmem:[#allocation5 + $0xb78] sm:$0xff]
    %v497 = vld [vmem:[#allocation5 + $0xb80] sm:$0xff]
    %v498 = vld [vmem:[#allocation5 + $0xb88] sm:$0xff]
    %v499 = vld [vmem:[#allocation5 + $0xb90] sm:$0xff]
    %v500 = vld [vmem:[#allocation5 + $0xb98] sm:$0xff]
    %v501 = vld [vmem:[#allocation5 + $0xba0] sm:$0xff]
    %v502 = vld [vmem:[#allocation5 + $0xba8] sm:$0xff]
    %v503 = vld [vmem:[#allocation5 + $0xbb0] sm:$0xff]
    %v504 = vld [vmem:[#allocation5 + $0xbb8] sm:$0xff]
    %v505 = vld [vmem:[#allocation5 + $0xbc0] sm:$0xff]
    %v506 = vld [vmem:[#allocation5 + $0xbc8] sm:$0xff]
    %v507 = vld [vmem:[#allocation5 + $0xbd0] sm:$0xff]
    %v508 = vld [vmem:[#allocation5 + $0xbd8] sm:$0xff]
    %v509 = vld [vmem:[#allocation5 + $0xbe0] sm:$0xff]
    %v510 = vld [vmem:[#allocation5 + $0xbe8] sm:$0xff]
    %v511 = vld [vmem:[#allocation5 + $0xbf0] sm:$0xff]
    %v512 = vld [vmem:[#allocation5 + $0xbf8] sm:$0xff]
    %v513 = vld [vmem:[#allocation5 + $0xc00] sm:$0xff]
    %v514 = vld [vmem:[#allocation5 + $0xc08] sm:$0xff]
    %v515 = vld [vmem:[#allocation5 + $0xc10] sm:$0xff]
    %v516 = vld [vmem:[#allocation5 + $0xc18] sm:$0xff]
    %v517 = vld [vmem:[#allocation5 + $0xc20] sm:$0xff]
    %v518 = vld [vmem:[#allocation5 + $0xc28] sm:$0xff]
    %v519 = vld [vmem:[#allocation5 + $0xc30] sm:$0xff]
    %v520 = vld [vmem:[#allocation5 + $0xc38] sm:$0xff]
    %v521 = vld [vmem:[#allocation7] sm:$0xff]
    %v523 = vlaneseq
    %v524 = vshrl.u32 %v523, 7
    %v525 = vsub.s32 0, %v524
    %v526 = vrot.slane %v521, %v525
    %v527 = vlaneseq
    %v528 = vshrl.u32 %v527, 7
    %v529 = vsub.s32 1, %v528
    %v530 = vrot.slane %v521, %v529
    %v531 = vlaneseq
    %v532 = vshrl.u32 %v531, 7
    %v533 = vsub.s32 2, %v532
    %v534 = vrot.slane %v521, %v533
    %v535 = vlaneseq
    %v536 = vshrl.u32 %v535, 7
    %v537 = vsub.s32 3, %v536
    %v538 = vrot.slane %v521, %v537
    %v539 = vlaneseq
    %v540 = vshrl.u32 %v539, 7
    %v541 = vsub.s32 4, %v540
    %v542 = vrot.slane %v521, %v541
    %v543 = vlaneseq
    %v544 = vshrl.u32 %v543, 7
    %v545 = vsub.s32 5, %v544
    %v546 = vrot.slane %v521, %v545
    %v547 = vlaneseq
    %v548 = vshrl.u32 %v547, 7
    %v549 = vsub.s32 6, %v548
    %v550 = vrot.slane %v521, %v549
    %v551 = vlaneseq
    %v552 = vshrl.u32 %v551, 7
    %v553 = vsub.s32 7, %v552
    %v554 = vrot.slane %v521, %v553
    %v955 = vunpack.c.l.b16 %v129
    %v956 = vunpack.c.h.b16 %v129
    %v957 = vunpack.c.l.b16 %v130
    %v958 = vunpack.c.h.b16 %v130
    %v959 = vunpack.c.l.b16 %v131
    %v960 = vunpack.c.h.b16 %v131
    %v961 = vunpack.c.l.b16 %v132
    %v962 = vunpack.c.h.b16 %v132
    %v963 = vunpack.c.l.b16 %v133
    %v964 = vunpack.c.h.b16 %v133
    %v965 = vunpack.c.l.b16 %v134
    %v966 = vunpack.c.h.b16 %v134
    %v967 = vunpack.c.l.b16 %v135
    %v968 = vunpack.c.h.b16 %v135
    %v969 = vunpack.c.l.b16 %v136
    %v970 = vunpack.c.h.b16 %v136
    %v971 = vunpack.c.l.b16 %v137
    %v972 = vunpack.c.h.b16 %v137
    %v973 = vunpack.c.l.b16 %v138
    %v974 = vunpack.c.h.b16 %v138
    %v975 = vunpack.c.l.b16 %v139
    %v976 = vunpack.c.h.b16 %v139
    %v977 = vunpack.c.l.b16 %v140
    %v978 = vunpack.c.h.b16 %v140
    %v979 = vunpack.c.l.b16 %v141
    %v980 = vunpack.c.h.b16 %v141
    %v981 = vunpack.c.l.b16 %v142
    %v982 = vunpack.c.h.b16 %v142
    %v983 = vunpack.c.l.b16 %v143
    %v984 = vunpack.c.h.b16 %v143
    %v985 = vunpack.c.l.b16 %v144
    %v986 = vunpack.c.h.b16 %v144
    %v987 = vunpack.c.l.b16 %v145
    %v988 = vunpack.c.h.b16 %v145
    %v989 = vunpack.c.l.b16 %v146
    %v990 = vunpack.c.h.b16 %v146
    %v991 = vunpack.c.l.b16 %v147
    %v992 = vunpack.c.h.b16 %v147
    %v993 = vunpack.c.l.b16 %v148
    %v994 = vunpack.c.h.b16 %v148
    %v995 = vunpack.c.l.b16 %v149
    %v996 = vunpack.c.h.b16 %v149
    %v997 = vunpack.c.l.b16 %v150
    %v998 = vunpack.c.h.b16 %v150
    %v999 = vunpack.c.l.b16 %v151
    %v1000 = vunpack.c.h.b16 %v151
    %v1001 = vunpack.c.l.b16 %v152
    %v1002 = vunpack.c.h.b16 %v152
    %v1003 = vunpack.c.l.b16 %v153
    %v1004 = vunpack.c.h.b16 %v153
    %v1005 = vunpack.c.l.b16 %v154
    %v1006 = vunpack.c.h.b16 %v154
    %v1007 = vunpack.c.l.b16 %v155
    %v1008 = vunpack.c.h.b16 %v155
    %v1009 = vunpack.c.l.b16 %v156
    %v1010 = vunpack.c.h.b16 %v156
    %v1011 = vunpack.c.l.b16 %v157
    %v1012 = vunpack.c.h.b16 %v157
    %v1013 = vunpack.c.l.b16 %v158
    %v1014 = vunpack.c.h.b16 %v158
    %v1015 = vunpack.c.l.b16 %v159
    %v1016 = vunpack.c.h.b16 %v159
    %v1017 = vunpack.c.l.b16 %v160
    %v1018 = vunpack.c.h.b16 %v160
    %v1019 = vunpack.c.l.b16 %v161
    %v1020 = vunpack.c.h.b16 %v161
    %v1021 = vunpack.c.l.b16 %v162
    %v1022 = vunpack.c.h.b16 %v162
    %v1023 = vunpack.c.l.b16 %v163
    %v1024 = vunpack.c.h.b16 %v163
    %v1025 = vunpack.c.l.b16 %v164
    %v1026 = vunpack.c.h.b16 %v164
    %v1027 = vunpack.c.l.b16 %v165
    %v1028 = vunpack.c.h.b16 %v165
    %v1029 = vunpack.c.l.b16 %v166
    %v1030 = vunpack.c.h.b16 %v166
    %v1031 = vunpack.c.l.b16 %v167
    %v1032 = vunpack.c.h.b16 %v167
    %v1033 = vunpack.c.l.b16 %v168
    %v1034 = vunpack.c.h.b16 %v168
    %v1035 = vunpack.c.l.b16 %v169
    %v1036 = vunpack.c.h.b16 %v169
    %v1037 = vunpack.c.l.b16 %v170
    %v1038 = vunpack.c.h.b16 %v170
    %v1039 = vunpack.c.l.b16 %v171
    %v1040 = vunpack.c.h.b16 %v171
    %v1041 = vunpack.c.l.b16 %v172
    %v1042 = vunpack.c.h.b16 %v172
    %v1043 = vunpack.c.l.b16 %v173
    %v1044 = vunpack.c.h.b16 %v173
    %v1045 = vunpack.c.l.b16 %v174
    %v1046 = vunpack.c.h.b16 %v174
    %v1047 = vunpack.c.l.b16 %v175
    %v1048 = vunpack.c.h.b16 %v175
    %v1049 = vunpack.c.l.b16 %v176
    %v1050 = vunpack.c.h.b16 %v176
    %v1051 = vunpack.c.l.b16 %v177
    %v1052 = vunpack.c.h.b16 %v177
    %v1053 = vunpack.c.l.b16 %v178
    %v1054 = vunpack.c.h.b16 %v178
    %v1055 = vunpack.c.l.b16 %v179
    %v1056 = vunpack.c.h.b16 %v179
    %v1057 = vunpack.c.l.b16 %v180
    %v1058 = vunpack.c.h.b16 %v180
    %v1059 = vunpack.c.l.b16 %v181
    %v1060 = vunpack.c.h.b16 %v181
    %v1061 = vunpack.c.l.b16 %v182
    %v1062 = vunpack.c.h.b16 %v182
    %v1063 = vunpack.c.l.b16 %v183
    %v1064 = vunpack.c.h.b16 %v183
    %v1065 = vunpack.c.l.b16 %v184
    %v1066 = vunpack.c.h.b16 %v184
    %v1067 = vunpack.c.l.b16 %v185
    %v1068 = vunpack.c.h.b16 %v185
    %v1069 = vunpack.c.l.b16 %v186
    %v1070 = vunpack.c.h.b16 %v186
    %v1071 = vunpack.c.l.b16 %v187
    %v1072 = vunpack.c.h.b16 %v187
    %v1073 = vunpack.c.l.b16 %v188
    %v1074 = vunpack.c.h.b16 %v188
    %v1075 = vunpack.c.l.b16 %v189
    %v1076 = vunpack.c.h.b16 %v189
    %v1077 = vunpack.c.l.b16 %v190
    %v1078 = vunpack.c.h.b16 %v190
    %v1079 = vunpack.c.l.b16 %v191
    %v1080 = vunpack.c.h.b16 %v191
    %v1081 = vunpack.c.l.b16 %v192
    %v1082 = vunpack.c.h.b16 %v192
    %v1083 = vunpack.c.l.b16 %v193
    %v1084 = vunpack.c.h.b16 %v193
    %v1085 = vunpack.c.l.b16 %v194
    %v1086 = vunpack.c.h.b16 %v194
    %v1087 = vunpack.c.l.b16 %v195
    %v1088 = vunpack.c.h.b16 %v195
    %v1089 = vunpack.c.l.b16 %v196
    %v1090 = vunpack.c.h.b16 %v196
    %v1091 = vunpack.c.l.b16 %v197
    %v1092 = vunpack.c.h.b16 %v197
    %v1093 = vunpack.c.l.b16 %v198
    %v1094 = vunpack.c.h.b16 %v198
    %v1095 = vunpack.c.l.b16 %v199
    %v1096 = vunpack.c.h.b16 %v199
    %v1097 = vunpack.c.l.b16 %v200
    %v1098 = vunpack.c.h.b16 %v200
    %v1099 = vunpack.c.l.b16 %v201
    %v1100 = vunpack.c.h.b16 %v201
    %v1101 = vunpack.c.l.b16 %v202
    %v1102 = vunpack.c.h.b16 %v202
    %v1103 = vunpack.c.l.b16 %v203
    %v1104 = vunpack.c.h.b16 %v203
    %v1105 = vunpack.c.l.b16 %v204
    %v1106 = vunpack.c.h.b16 %v204
    %v1107 = vunpack.c.l.b16 %v205
    %v1108 = vunpack.c.h.b16 %v205
    %v1109 = vunpack.c.l.b16 %v206
    %v1110 = vunpack.c.h.b16 %v206
    %v1111 = vunpack.c.l.b16 %v207
    %v1112 = vunpack.c.h.b16 %v207
    %v1113 = vunpack.c.l.b16 %v208
    %v1114 = vunpack.c.h.b16 %v208
    %v1115 = vunpack.c.l.b16 %v209
    %v1116 = vunpack.c.h.b16 %v209
    %v1117 = vunpack.c.l.b16 %v210
    %v1118 = vunpack.c.h.b16 %v210
    %v1119 = vunpack.c.l.b16 %v211
    %v1120 = vunpack.c.h.b16 %v211
    %v1121 = vunpack.c.l.b16 %v212
    %v1122 = vunpack.c.h.b16 %v212
    %v1123 = vunpack.c.l.b16 %v213
    %v1124 = vunpack.c.h.b16 %v213
    %v1125 = vunpack.c.l.b16 %v214
    %v1126 = vunpack.c.h.b16 %v214
    %v1127 = vunpack.c.l.b16 %v215
    %v1128 = vunpack.c.h.b16 %v215
    %v1129 = vunpack.c.l.b16 %v216
    %v1130 = vunpack.c.h.b16 %v216
    %v1131 = vunpack.c.l.b16 %v217
    %v1132 = vunpack.c.h.b16 %v217
    %v1133 = vunpack.c.l.b16 %v218
    %v1134 = vunpack.c.h.b16 %v218
    %v1135 = vunpack.c.l.b16 %v219
    %v1136 = vunpack.c.h.b16 %v219
    %v1137 = vunpack.c.l.b16 %v220
    %v1138 = vunpack.c.h.b16 %v220
    %v1139 = vunpack.c.l.b16 %v221
    %v1140 = vunpack.c.h.b16 %v221
    %v1141 = vunpack.c.l.b16 %v222
    %v1142 = vunpack.c.h.b16 %v222
    %v1143 = vunpack.c.l.b16 %v223
    %v1144 = vunpack.c.h.b16 %v223
    %v1145 = vunpack.c.l.b16 %v224
    %v1146 = vunpack.c.h.b16 %v224
    %v1147 = vunpack.c.l.b16 %v225
    %v1148 = vunpack.c.h.b16 %v225
    %v1149 = vunpack.c.l.b16 %v226
    %v1150 = vunpack.c.h.b16 %v226
    %v1151 = vunpack.c.l.b16 %v227
    %v1152 = vunpack.c.h.b16 %v227
    %v1153 = vunpack.c.l.b16 %v228
    %v1154 = vunpack.c.h.b16 %v228
    %v1155 = vunpack.c.l.b16 %v229
    %v1156 = vunpack.c.h.b16 %v229
    %v1157 = vunpack.c.l.b16 %v230
    %v1158 = vunpack.c.h.b16 %v230
    %v1159 = vunpack.c.l.b16 %v231
    %v1160 = vunpack.c.h.b16 %v231
    %v1161 = vunpack.c.l.b16 %v232
    %v1162 = vunpack.c.h.b16 %v232
    %v1163 = vunpack.c.l.b16 %v233
    %v1164 = vunpack.c.h.b16 %v233
    %v1165 = vunpack.c.l.b16 %v234
    %v1166 = vunpack.c.h.b16 %v234
    %v1167 = vunpack.c.l.b16 %v235
    %v1168 = vunpack.c.h.b16 %v235
    %v1169 = vunpack.c.l.b16 %v236
    %v1170 = vunpack.c.h.b16 %v236
    %v1171 = vunpack.c.l.b16 %v237
    %v1172 = vunpack.c.h.b16 %v237
    %v1173 = vunpack.c.l.b16 %v238
    %v1174 = vunpack.c.h.b16 %v238
    %v1175 = vunpack.c.l.b16 %v239
    %v1176 = vunpack.c.h.b16 %v239
    %v1177 = vunpack.c.l.b16 %v240
    %v1178 = vunpack.c.h.b16 %v240
    %v1179 = vunpack.c.l.b16 %v241
    %v1180 = vunpack.c.h.b16 %v241
    %v1181 = vunpack.c.l.b16 %v242
    %v1182 = vunpack.c.h.b16 %v242
    %v1183 = vunpack.c.l.b16 %v243
    %v1184 = vunpack.c.h.b16 %v243
    %v1185 = vunpack.c.l.b16 %v244
    %v1186 = vunpack.c.h.b16 %v244
    %v1187 = vunpack.c.l.b16 %v245
    %v1188 = vunpack.c.h.b16 %v245
    %v1189 = vunpack.c.l.b16 %v246
    %v1190 = vunpack.c.h.b16 %v246
    %v1191 = vunpack.c.l.b16 %v247
    %v1192 = vunpack.c.h.b16 %v247
    %v1193 = vunpack.c.l.b16 %v248
    %v1194 = vunpack.c.h.b16 %v248
    %v1195 = vunpack.c.l.b16 %v249
    %v1196 = vunpack.c.h.b16 %v249
    %v1197 = vunpack.c.l.b16 %v250
    %v1198 = vunpack.c.h.b16 %v250
    %v1199 = vunpack.c.l.b16 %v251
    %v1200 = vunpack.c.h.b16 %v251
    %v1201 = vunpack.c.l.b16 %v252
    %v1202 = vunpack.c.h.b16 %v252
    %v1203 = vunpack.c.l.b16 %v253
    %v1204 = vunpack.c.h.b16 %v253
    %v1205 = vunpack.c.l.b16 %v254
    %v1206 = vunpack.c.h.b16 %v254
    %v1207 = vunpack.c.l.b16 %v255
    %v1208 = vunpack.c.h.b16 %v255
    %v1209 = vunpack.c.l.b16 %v256
    %v1210 = vunpack.c.h.b16 %v256
    %v1211 = vunpack.c.l.b16 %v257
    %v1212 = vunpack.c.h.b16 %v257
    %v1213 = vunpack.c.l.b16 %v258
    %v1214 = vunpack.c.h.b16 %v258
    %v1215 = vunpack.c.l.b16 %v259
    %v1216 = vunpack.c.h.b16 %v259
    %v1217 = vunpack.c.l.b16 %v260
    %v1218 = vunpack.c.h.b16 %v260
    %v1219 = vunpack.c.l.b16 %v261
    %v1220 = vunpack.c.h.b16 %v261
    %v1221 = vunpack.c.l.b16 %v262
    %v1222 = vunpack.c.h.b16 %v262
    %v1223 = vunpack.c.l.b16 %v263
    %v1224 = vunpack.c.h.b16 %v263
    %v1225 = vunpack.c.l.b16 %v264
    %v1226 = vunpack.c.h.b16 %v264
    %v1227 = vunpack.c.l.b16 %v265
    %v1228 = vunpack.c.h.b16 %v265
    %v1229 = vunpack.c.l.b16 %v266
    %v1230 = vunpack.c.h.b16 %v266
    %v1231 = vunpack.c.l.b16 %v267
    %v1232 = vunpack.c.h.b16 %v267
    %v1233 = vunpack.c.l.b16 %v268
    %v1234 = vunpack.c.h.b16 %v268
    %v1235 = vunpack.c.l.b16 %v269
    %v1236 = vunpack.c.h.b16 %v269
    %v1237 = vunpack.c.l.b16 %v270
    %v1238 = vunpack.c.h.b16 %v270
    %v1239 = vunpack.c.l.b16 %v271
    %v1240 = vunpack.c.h.b16 %v271
    %v1241 = vunpack.c.l.b16 %v272
    %v1242 = vunpack.c.h.b16 %v272
    %v1243 = vunpack.c.l.b16 %v273
    %v1244 = vunpack.c.h.b16 %v273
    %v1245 = vunpack.c.l.b16 %v274
    %v1246 = vunpack.c.h.b16 %v274
    %v1247 = vunpack.c.l.b16 %v275
    %v1248 = vunpack.c.h.b16 %v275
    %v1249 = vunpack.c.l.b16 %v276
    %v1250 = vunpack.c.h.b16 %v276
    %v1251 = vunpack.c.l.b16 %v277
    %v1252 = vunpack.c.h.b16 %v277
    %v1253 = vunpack.c.l.b16 %v278
    %v1254 = vunpack.c.h.b16 %v278
    %v1255 = vunpack.c.l.b16 %v279
    %v1256 = vunpack.c.h.b16 %v279
    %v1257 = vunpack.c.l.b16 %v280
    %v1258 = vunpack.c.h.b16 %v280
    %v1259 = vunpack.c.l.b16 %v281
    %v1260 = vunpack.c.h.b16 %v281
    %v1261 = vunpack.c.l.b16 %v282
    %v1262 = vunpack.c.h.b16 %v282
    %v1263 = vunpack.c.l.b16 %v283
    %v1264 = vunpack.c.h.b16 %v283
    %v1265 = vunpack.c.l.b16 %v284
    %v1266 = vunpack.c.h.b16 %v284
    %v1267 = vunpack.c.l.b16 %v285
    %v1268 = vunpack.c.h.b16 %v285
    %v1269 = vunpack.c.l.b16 %v286
    %v1270 = vunpack.c.h.b16 %v286
    %v1271 = vunpack.c.l.b16 %v287
    %v1272 = vunpack.c.h.b16 %v287
    %v1273 = vunpack.c.l.b16 %v288
    %v1274 = vunpack.c.h.b16 %v288
    %v1275 = vunpack.c.l.b16 %v289
    %v1276 = vunpack.c.h.b16 %v289
    %v1277 = vunpack.c.l.b16 %v290
    %v1278 = vunpack.c.h.b16 %v290
    %v1279 = vunpack.c.l.b16 %v291
    %v1280 = vunpack.c.h.b16 %v291
    %v1281 = vunpack.c.l.b16 %v292
    %v1282 = vunpack.c.h.b16 %v292
    %v1283 = vunpack.c.l.b16 %v293
    %v1284 = vunpack.c.h.b16 %v293
    %v1285 = vunpack.c.l.b16 %v294
    %v1286 = vunpack.c.h.b16 %v294
    %v1287 = vunpack.c.l.b16 %v295
    %v1288 = vunpack.c.h.b16 %v295
    %v1289 = vunpack.c.l.b16 %v296
    %v1290 = vunpack.c.h.b16 %v296
    %v1291 = vunpack.c.l.b16 %v297
    %v1292 = vunpack.c.h.b16 %v297
    %v1293 = vunpack.c.l.b16 %v298
    %v1294 = vunpack.c.h.b16 %v298
    %v1295 = vunpack.c.l.b16 %v299
    %v1296 = vunpack.c.h.b16 %v299
    %v1297 = vunpack.c.l.b16 %v300
    %v1298 = vunpack.c.h.b16 %v300
    %v1299 = vunpack.c.l.b16 %v301
    %v1300 = vunpack.c.h.b16 %v301
    %v1301 = vunpack.c.l.b16 %v302
    %v1302 = vunpack.c.h.b16 %v302
    %v1303 = vunpack.c.l.b16 %v303
    %v1304 = vunpack.c.h.b16 %v303
    %v1305 = vunpack.c.l.b16 %v304
    %v1306 = vunpack.c.h.b16 %v304
    %v1307 = vunpack.c.l.b16 %v305
    %v1308 = vunpack.c.h.b16 %v305
    %v1309 = vunpack.c.l.b16 %v306
    %v1310 = vunpack.c.h.b16 %v306
    %v1311 = vunpack.c.l.b16 %v307
    %v1312 = vunpack.c.h.b16 %v307
    %v1313 = vunpack.c.l.b16 %v308
    %v1314 = vunpack.c.h.b16 %v308
    %v1315 = vunpack.c.l.b16 %v309
    %v1316 = vunpack.c.h.b16 %v309
    %v1317 = vunpack.c.l.b16 %v310
    %v1318 = vunpack.c.h.b16 %v310
    %v1319 = vunpack.c.l.b16 %v311
    %v1320 = vunpack.c.h.b16 %v311
    %v1321 = vunpack.c.l.b16 %v312
    %v1322 = vunpack.c.h.b16 %v312
    %v1323 = vunpack.c.l.b16 %v313
    %v1324 = vunpack.c.h.b16 %v313
    %v1325 = vunpack.c.l.b16 %v314
    %v1326 = vunpack.c.h.b16 %v314
    %v1327 = vunpack.c.l.b16 %v315
    %v1328 = vunpack.c.h.b16 %v315
    %v1329 = vunpack.c.l.b16 %v316
    %v1330 = vunpack.c.h.b16 %v316
    %v1331 = vunpack.c.l.b16 %v317
    %v1332 = vunpack.c.h.b16 %v317
    %v1333 = vunpack.c.l.b16 %v318
    %v1334 = vunpack.c.h.b16 %v318
    %v1335 = vunpack.c.l.b16 %v319
    %v1336 = vunpack.c.h.b16 %v319
    %v1337 = vunpack.c.l.b16 %v320
    %v1338 = vunpack.c.h.b16 %v320
    %v1339 = vunpack.c.l.b16 %v321
    %v1340 = vunpack.c.h.b16 %v321
    %v1341 = vunpack.c.l.b16 %v322
    %v1342 = vunpack.c.h.b16 %v322
    %v1343 = vunpack.c.l.b16 %v323
    %v1344 = vunpack.c.h.b16 %v323
    %v1345 = vunpack.c.l.b16 %v324
    %v1346 = vunpack.c.h.b16 %v324
    %v1347 = vunpack.c.l.b16 %v325
    %v1348 = vunpack.c.h.b16 %v325
    %v1349 = vunpack.c.l.b16 %v326
    %v1350 = vunpack.c.h.b16 %v326
    %v1351 = vunpack.c.l.b16 %v327
    %v1352 = vunpack.c.h.b16 %v327
    %v1353 = vunpack.c.l.b16 %v328
    %v1354 = vunpack.c.h.b16 %v328
    %v1355 = vunpack.c.l.b16 %v329
    %v1356 = vunpack.c.h.b16 %v329
    %v1357 = vunpack.c.l.b16 %v330
    %v1358 = vunpack.c.h.b16 %v330
    %v1359 = vunpack.c.l.b16 %v331
    %v1360 = vunpack.c.h.b16 %v331
    %v1361 = vunpack.c.l.b16 %v332
    %v1362 = vunpack.c.h.b16 %v332
    %v1363 = vunpack.c.l.b16 %v333
    %v1364 = vunpack.c.h.b16 %v333
    %v1365 = vunpack.c.l.b16 %v334
    %v1366 = vunpack.c.h.b16 %v334
    %v1367 = vunpack.c.l.b16 %v335
    %v1368 = vunpack.c.h.b16 %v335
    %v1369 = vunpack.c.l.b16 %v336
    %v1370 = vunpack.c.h.b16 %v336
    %v1371 = vunpack.c.l.b16 %v337
    %v1372 = vunpack.c.h.b16 %v337
    %v1373 = vunpack.c.l.b16 %v338
    %v1374 = vunpack.c.h.b16 %v338
    %v1375 = vunpack.c.l.b16 %v339
    %v1376 = vunpack.c.h.b16 %v339
    %v1377 = vunpack.c.l.b16 %v340
    %v1378 = vunpack.c.h.b16 %v340
    %v1379 = vunpack.c.l.b16 %v341
    %v1380 = vunpack.c.h.b16 %v341
    %v1381 = vunpack.c.l.b16 %v342
    %v1382 = vunpack.c.h.b16 %v342
    %v1383 = vunpack.c.l.b16 %v343
    %v1384 = vunpack.c.h.b16 %v343
    %v1385 = vunpack.c.l.b16 %v344
    %v1386 = vunpack.c.h.b16 %v344
    %v1387 = vunpack.c.l.b16 %v345
    %v1388 = vunpack.c.h.b16 %v345
    %v1389 = vunpack.c.l.b16 %v346
    %v1390 = vunpack.c.h.b16 %v346
    %v1391 = vunpack.c.l.b16 %v347
    %v1392 = vunpack.c.h.b16 %v347
    %v1393 = vunpack.c.l.b16 %v348
    %v1394 = vunpack.c.h.b16 %v348
    %v1395 = vunpack.c.l.b16 %v349
    %v1396 = vunpack.c.h.b16 %v349
    %v1397 = vunpack.c.l.b16 %v350
    %v1398 = vunpack.c.h.b16 %v350
    %v1399 = vunpack.c.l.b16 %v351
    %v1400 = vunpack.c.h.b16 %v351
    %v1401 = vunpack.c.l.b16 %v352
    %v1402 = vunpack.c.h.b16 %v352
    %v1403 = vunpack.c.l.b16 %v353
    %v1404 = vunpack.c.h.b16 %v353
    %v1405 = vunpack.c.l.b16 %v354
    %v1406 = vunpack.c.h.b16 %v354
    %v1407 = vunpack.c.l.b16 %v355
    %v1408 = vunpack.c.h.b16 %v355
    %v1409 = vunpack.c.l.b16 %v356
    %v1410 = vunpack.c.h.b16 %v356
    %v1411 = vunpack.c.l.b16 %v357
    %v1412 = vunpack.c.h.b16 %v357
    %v1413 = vunpack.c.l.b16 %v358
    %v1414 = vunpack.c.h.b16 %v358
    %v1415 = vunpack.c.l.b16 %v359
    %v1416 = vunpack.c.h.b16 %v359
    %v1417 = vunpack.c.l.b16 %v360
    %v1418 = vunpack.c.h.b16 %v360
    %v1419 = vunpack.c.l.b16 %v361
    %v1420 = vunpack.c.h.b16 %v361
    %v1421 = vunpack.c.l.b16 %v362
    %v1422 = vunpack.c.h.b16 %v362
    %v1423 = vunpack.c.l.b16 %v363
    %v1424 = vunpack.c.h.b16 %v363
    %v1425 = vunpack.c.l.b16 %v364
    %v1426 = vunpack.c.h.b16 %v364
    %v1427 = vunpack.c.l.b16 %v365
    %v1428 = vunpack.c.h.b16 %v365
    %v1429 = vunpack.c.l.b16 %v366
    %v1430 = vunpack.c.h.b16 %v366
    %v1431 = vunpack.c.l.b16 %v367
    %v1432 = vunpack.c.h.b16 %v367
    %v1433 = vunpack.c.l.b16 %v368
    %v1434 = vunpack.c.h.b16 %v368
    %v1435 = vunpack.c.l.b16 %v369
    %v1436 = vunpack.c.h.b16 %v369
    %v1437 = vunpack.c.l.b16 %v370
    %v1438 = vunpack.c.h.b16 %v370
    %v1439 = vunpack.c.l.b16 %v371
    %v1440 = vunpack.c.h.b16 %v371
    %v1441 = vunpack.c.l.b16 %v372
    %v1442 = vunpack.c.h.b16 %v372
    %v1443 = vunpack.c.l.b16 %v373
    %v1444 = vunpack.c.h.b16 %v373
    %v1445 = vunpack.c.l.b16 %v374
    %v1446 = vunpack.c.h.b16 %v374
    %v1447 = vunpack.c.l.b16 %v375
    %v1448 = vunpack.c.h.b16 %v375
    %v1449 = vunpack.c.l.b16 %v376
    %v1450 = vunpack.c.h.b16 %v376
    %v1451 = vunpack.c.l.b16 %v377
    %v1452 = vunpack.c.h.b16 %v377
    %v1453 = vunpack.c.l.b16 %v378
    %v1454 = vunpack.c.h.b16 %v378
    %v1455 = vunpack.c.l.b16 %v379
    %v1456 = vunpack.c.h.b16 %v379
    %v1457 = vunpack.c.l.b16 %v380
    %v1458 = vunpack.c.h.b16 %v380
    %v1459 = vunpack.c.l.b16 %v381
    %v1460 = vunpack.c.h.b16 %v381
    %v1461 = vunpack.c.l.b16 %v382
    %v1462 = vunpack.c.h.b16 %v382
    %v1463 = vunpack.c.l.b16 %v383
    %v1464 = vunpack.c.h.b16 %v383
    %v1465 = vunpack.c.l.b16 %v384
    %v1466 = vunpack.c.h.b16 %v384
    %v1467 = vunpack.c.l.b16 %v385
    %v1468 = vunpack.c.h.b16 %v385
    %v1469 = vunpack.c.l.b16 %v386
    %v1470 = vunpack.c.h.b16 %v386
    %v1471 = vunpack.c.l.b16 %v387
    %v1472 = vunpack.c.h.b16 %v387
    %v1473 = vunpack.c.l.b16 %v388
    %v1474 = vunpack.c.h.b16 %v388
    %v1475 = vunpack.c.l.b16 %v389
    %v1476 = vunpack.c.h.b16 %v389
    %v1477 = vunpack.c.l.b16 %v390
    %v1478 = vunpack.c.h.b16 %v390
    %v1479 = vunpack.c.l.b16 %v391
    %v1480 = vunpack.c.h.b16 %v391
    %v1481 = vunpack.c.l.b16 %v392
    %v1482 = vunpack.c.h.b16 %v392
    %v1483 = vunpack.c.l.b16 %v393
    %v1484 = vunpack.c.h.b16 %v393
    %v1485 = vunpack.c.l.b16 %v394
    %v1486 = vunpack.c.h.b16 %v394
    %v1487 = vunpack.c.l.b16 %v395
    %v1488 = vunpack.c.h.b16 %v395
    %v1489 = vunpack.c.l.b16 %v396
    %v1490 = vunpack.c.h.b16 %v396
    %v1491 = vunpack.c.l.b16 %v397
    %v1492 = vunpack.c.h.b16 %v397
    %v1493 = vunpack.c.l.b16 %v398
    %v1494 = vunpack.c.h.b16 %v398
    %v1495 = vunpack.c.l.b16 %v399
    %v1496 = vunpack.c.h.b16 %v399
    %v1497 = vunpack.c.l.b16 %v400
    %v1498 = vunpack.c.h.b16 %v400
    %v1499 = vunpack.c.l.b16 %v401
    %v1500 = vunpack.c.h.b16 %v401
    %v1501 = vunpack.c.l.b16 %v402
    %v1502 = vunpack.c.h.b16 %v402
    %v1503 = vunpack.c.l.b16 %v403
    %v1504 = vunpack.c.h.b16 %v403
    %v1505 = vunpack.c.l.b16 %v404
    %v1506 = vunpack.c.h.b16 %v404
    %v1507 = vunpack.c.l.b16 %v405
    %v1508 = vunpack.c.h.b16 %v405
    %v1509 = vunpack.c.l.b16 %v406
    %v1510 = vunpack.c.h.b16 %v406
    %v1511 = vunpack.c.l.b16 %v407
    %v1512 = vunpack.c.h.b16 %v407
    %v1513 = vunpack.c.l.b16 %v408
    %v1514 = vunpack.c.h.b16 %v408
    %v1515 = vunpack.c.l.b16 %v409
    %v1516 = vunpack.c.h.b16 %v409
    %v1517 = vunpack.c.l.b16 %v410
    %v1518 = vunpack.c.h.b16 %v410
    %v1519 = vunpack.c.l.b16 %v411
    %v1520 = vunpack.c.h.b16 %v411
    %v1521 = vunpack.c.l.b16 %v412
    %v1522 = vunpack.c.h.b16 %v412
    %v1523 = vunpack.c.l.b16 %v413
    %v1524 = vunpack.c.h.b16 %v413
    %v1525 = vunpack.c.l.b16 %v414
    %v1526 = vunpack.c.h.b16 %v414
    %v1527 = vunpack.c.l.b16 %v415
    %v1528 = vunpack.c.h.b16 %v415
    %v1529 = vunpack.c.l.b16 %v416
    %v1530 = vunpack.c.h.b16 %v416
    %v1531 = vunpack.c.l.b16 %v417
    %v1532 = vunpack.c.h.b16 %v417
    %v1533 = vunpack.c.l.b16 %v418
    %v1534 = vunpack.c.h.b16 %v418
    %v1535 = vunpack.c.l.b16 %v419
    %v1536 = vunpack.c.h.b16 %v419
    %v1537 = vunpack.c.l.b16 %v420
    %v1538 = vunpack.c.h.b16 %v420
    %v1539 = vunpack.c.l.b16 %v421
    %v1540 = vunpack.c.h.b16 %v421
    %v1541 = vunpack.c.l.b16 %v422
    %v1542 = vunpack.c.h.b16 %v422
    %v1543 = vunpack.c.l.b16 %v423
    %v1544 = vunpack.c.h.b16 %v423
    %v1545 = vunpack.c.l.b16 %v424
    %v1546 = vunpack.c.h.b16 %v424
    %v1547 = vunpack.c.l.b16 %v425
    %v1548 = vunpack.c.h.b16 %v425
    %v1549 = vunpack.c.l.b16 %v426
    %v1550 = vunpack.c.h.b16 %v426
    %v1551 = vunpack.c.l.b16 %v427
    %v1552 = vunpack.c.h.b16 %v427
    %v1553 = vunpack.c.l.b16 %v428
    %v1554 = vunpack.c.h.b16 %v428
    %v1555 = vunpack.c.l.b16 %v429
    %v1556 = vunpack.c.h.b16 %v429
    %v1557 = vunpack.c.l.b16 %v430
    %v1558 = vunpack.c.h.b16 %v430
    %v1559 = vunpack.c.l.b16 %v431
    %v1560 = vunpack.c.h.b16 %v431
    %v1561 = vunpack.c.l.b16 %v432
    %v1562 = vunpack.c.h.b16 %v432
    %v1563 = vunpack.c.l.b16 %v433
    %v1564 = vunpack.c.h.b16 %v433
    %v1565 = vunpack.c.l.b16 %v434
    %v1566 = vunpack.c.h.b16 %v434
    %v1567 = vunpack.c.l.b16 %v435
    %v1568 = vunpack.c.h.b16 %v435
    %v1569 = vunpack.c.l.b16 %v436
    %v1570 = vunpack.c.h.b16 %v436
    %v1571 = vunpack.c.l.b16 %v437
    %v1572 = vunpack.c.h.b16 %v437
    %v1573 = vunpack.c.l.b16 %v438
    %v1574 = vunpack.c.h.b16 %v438
    %v1575 = vunpack.c.l.b16 %v439
    %v1576 = vunpack.c.h.b16 %v439
    %v1577 = vunpack.c.l.b16 %v440
    %v1578 = vunpack.c.h.b16 %v440
    %v1579 = vunpack.c.l.b16 %v441
    %v1580 = vunpack.c.h.b16 %v441
    %v1581 = vunpack.c.l.b16 %v442
    %v1582 = vunpack.c.h.b16 %v442
    %v1583 = vunpack.c.l.b16 %v443
    %v1584 = vunpack.c.h.b16 %v443
    %v1585 = vunpack.c.l.b16 %v444
    %v1586 = vunpack.c.h.b16 %v444
    %v1587 = vunpack.c.l.b16 %v445
    %v1588 = vunpack.c.h.b16 %v445
    %v1589 = vunpack.c.l.b16 %v446
    %v1590 = vunpack.c.h.b16 %v446
    %v1591 = vunpack.c.l.b16 %v447
    %v1592 = vunpack.c.h.b16 %v447
    %v1593 = vunpack.c.l.b16 %v448
    %v1594 = vunpack.c.h.b16 %v448
    %v1595 = vunpack.c.l.b16 %v449
    %v1596 = vunpack.c.h.b16 %v449
    %v1597 = vunpack.c.l.b16 %v450
    %v1598 = vunpack.c.h.b16 %v450
    %v1599 = vunpack.c.l.b16 %v451
    %v1600 = vunpack.c.h.b16 %v451
    %v1601 = vunpack.c.l.b16 %v452
    %v1602 = vunpack.c.h.b16 %v452
    %v1603 = vunpack.c.l.b16 %v453
    %v1604 = vunpack.c.h.b16 %v453
    %v1605 = vunpack.c.l.b16 %v454
    %v1606 = vunpack.c.h.b16 %v454
    %v1607 = vunpack.c.l.b16 %v455
    %v1608 = vunpack.c.h.b16 %v455
    %v1609 = vunpack.c.l.b16 %v456
    %v1610 = vunpack.c.h.b16 %v456
    %v1611 = vunpack.c.l.b16 %v457
    %v1612 = vunpack.c.h.b16 %v457
    %v1613 = vunpack.c.l.b16 %v458
    %v1614 = vunpack.c.h.b16 %v458
    %v1615 = vunpack.c.l.b16 %v459
    %v1616 = vunpack.c.h.b16 %v459
    %v1617 = vunpack.c.l.b16 %v460
    %v1618 = vunpack.c.h.b16 %v460
    %v1619 = vunpack.c.l.b16 %v461
    %v1620 = vunpack.c.h.b16 %v461
    %v1621 = vunpack.c.l.b16 %v462
    %v1622 = vunpack.c.h.b16 %v462
    %v1623 = vunpack.c.l.b16 %v463
    %v1624 = vunpack.c.h.b16 %v463
    %v1625 = vunpack.c.l.b16 %v464
    %v1626 = vunpack.c.h.b16 %v464
    %v1627 = vunpack.c.l.b16 %v465
    %v1628 = vunpack.c.h.b16 %v465
    %v1629 = vunpack.c.l.b16 %v466
    %v1630 = vunpack.c.h.b16 %v466
    %v1631 = vunpack.c.l.b16 %v467
    %v1632 = vunpack.c.h.b16 %v467
    %v1633 = vunpack.c.l.b16 %v468
    %v1634 = vunpack.c.h.b16 %v468
    %v1635 = vunpack.c.l.b16 %v469
    %v1636 = vunpack.c.h.b16 %v469
    %v1637 = vunpack.c.l.b16 %v470
    %v1638 = vunpack.c.h.b16 %v470
    %v1639 = vunpack.c.l.b16 %v471
    %v1640 = vunpack.c.h.b16 %v471
    %v1641 = vunpack.c.l.b16 %v472
    %v1642 = vunpack.c.h.b16 %v472
    %v1643 = vunpack.c.l.b16 %v473
    %v1644 = vunpack.c.h.b16 %v473
    %v1645 = vunpack.c.l.b16 %v474
    %v1646 = vunpack.c.h.b16 %v474
    %v1647 = vunpack.c.l.b16 %v475
    %v1648 = vunpack.c.h.b16 %v475
    %v1649 = vunpack.c.l.b16 %v476
    %v1650 = vunpack.c.h.b16 %v476
    %v1651 = vunpack.c.l.b16 %v477
    %v1652 = vunpack.c.h.b16 %v477
    %v1653 = vunpack.c.l.b16 %v478
    %v1654 = vunpack.c.h.b16 %v478
    %v1655 = vunpack.c.l.b16 %v479
    %v1656 = vunpack.c.h.b16 %v479
    %v1657 = vunpack.c.l.b16 %v480
    %v1658 = vunpack.c.h.b16 %v480
    %v1659 = vunpack.c.l.b16 %v481
    %v1660 = vunpack.c.h.b16 %v481
    %v1661 = vunpack.c.l.b16 %v482
    %v1662 = vunpack.c.h.b16 %v482
    %v1663 = vunpack.c.l.b16 %v483
    %v1664 = vunpack.c.h.b16 %v483
    %v1665 = vunpack.c.l.b16 %v484
    %v1666 = vunpack.c.h.b16 %v484
    %v1667 = vunpack.c.l.b16 %v485
    %v1668 = vunpack.c.h.b16 %v485
    %v1669 = vunpack.c.l.b16 %v486
    %v1670 = vunpack.c.h.b16 %v486
    %v1671 = vunpack.c.l.b16 %v487
    %v1672 = vunpack.c.h.b16 %v487
    %v1673 = vunpack.c.l.b16 %v488
    %v1674 = vunpack.c.h.b16 %v488
    %v1675 = vunpack.c.l.b16 %v489
    %v1676 = vunpack.c.h.b16 %v489
    %v1677 = vunpack.c.l.b16 %v490
    %v1678 = vunpack.c.h.b16 %v490
    %v1679 = vunpack.c.l.b16 %v491
    %v1680 = vunpack.c.h.b16 %v491
    %v1681 = vunpack.c.l.b16 %v492
    %v1682 = vunpack.c.h.b16 %v492
    %v1683 = vunpack.c.l.b16 %v493
    %v1684 = vunpack.c.h.b16 %v493
    %v1685 = vunpack.c.l.b16 %v494
    %v1686 = vunpack.c.h.b16 %v494
    %v1687 = vunpack.c.l.b16 %v495
    %v1688 = vunpack.c.h.b16 %v495
    %v1689 = vunpack.c.l.b16 %v496
    %v1690 = vunpack.c.h.b16 %v496
    %v1691 = vunpack.c.l.b16 %v497
    %v1692 = vunpack.c.h.b16 %v497
    %v1693 = vunpack.c.l.b16 %v498
    %v1694 = vunpack.c.h.b16 %v498
    %v1695 = vunpack.c.l.b16 %v499
    %v1696 = vunpack.c.h.b16 %v499
    %v1697 = vunpack.c.l.b16 %v500
    %v1698 = vunpack.c.h.b16 %v500
    %v1699 = vunpack.c.l.b16 %v501
    %v1700 = vunpack.c.h.b16 %v501
    %v1701 = vunpack.c.l.b16 %v502
    %v1702 = vunpack.c.h.b16 %v502
    %v1703 = vunpack.c.l.b16 %v503
    %v1704 = vunpack.c.h.b16 %v503
    %v1705 = vunpack.c.l.b16 %v504
    %v1706 = vunpack.c.h.b16 %v504
    %v1707 = vunpack.c.l.b16 %v505
    %v1708 = vunpack.c.h.b16 %v505
    %v1709 = vunpack.c.l.b16 %v506
    %v1710 = vunpack.c.h.b16 %v506
    %v1711 = vunpack.c.l.b16 %v507
    %v1712 = vunpack.c.h.b16 %v507
    %v1713 = vunpack.c.l.b16 %v508
    %v1714 = vunpack.c.h.b16 %v508
    %v1715 = vunpack.c.l.b16 %v509
    %v1716 = vunpack.c.h.b16 %v509
    %v1717 = vunpack.c.l.b16 %v510
    %v1718 = vunpack.c.h.b16 %v510
    %v1719 = vunpack.c.l.b16 %v511
    %v1720 = vunpack.c.h.b16 %v511
    %v1721 = vunpack.c.l.b16 %v512
    %v1722 = vunpack.c.h.b16 %v512
    %v1723 = vunpack.c.l.b16 %v513
    %v1724 = vunpack.c.h.b16 %v513
    %v1725 = vunpack.c.l.b16 %v514
    %v1726 = vunpack.c.h.b16 %v514
    %v1727 = vunpack.c.l.b16 %v515
    %v1728 = vunpack.c.h.b16 %v515
    %v1729 = vunpack.c.l.b16 %v516
    %v1730 = vunpack.c.h.b16 %v516
    %v1731 = vunpack.c.l.b16 %v517
    %v1732 = vunpack.c.h.b16 %v517
    %v1733 = vunpack.c.l.b16 %v518
    %v1734 = vunpack.c.h.b16 %v518
    %v1735 = vunpack.c.l.b16 %v519
    %v1736 = vunpack.c.h.b16 %v519
    %v1737 = vunpack.c.l.b16 %v520
    %v1738 = vunpack.c.h.b16 %v520
    %v1739 = vpack.c.b16 %v963, %v955
    %v1740 = vpack.c.b16 %v964, %v956
    %v1741 = vpack.c.b16 %v965, %v957
    %v1742 = vpack.c.b16 %v966, %v958
    %v1743 = vpack.c.b16 %v967, %v959
    %v1744 = vpack.c.b16 %v968, %v960
    %v1745 = vpack.c.b16 %v969, %v961
    %v1746 = vpack.c.b16 %v970, %v962
    %v1747 = vpack.c.b16 %v979, %v971
    %v1748 = vpack.c.b16 %v980, %v972
    %v1749 = vpack.c.b16 %v981, %v973
    %v1750 = vpack.c.b16 %v982, %v974
    %v1751 = vpack.c.b16 %v983, %v975
    %v1752 = vpack.c.b16 %v984, %v976
    %v1753 = vpack.c.b16 %v985, %v977
    %v1754 = vpack.c.b16 %v986, %v978
    %v1755 = vpack.c.b16 %v995, %v987
    %v1756 = vpack.c.b16 %v996, %v988
    %v1757 = vpack.c.b16 %v997, %v989
    %v1758 = vpack.c.b16 %v998, %v990
    %v1759 = vpack.c.b16 %v999, %v991
    %v1760 = vpack.c.b16 %v1000, %v992
    %v1761 = vpack.c.b16 %v1001, %v993
    %v1762 = vpack.c.b16 %v1002, %v994
    %v1763 = vpack.c.b16 %v1011, %v1003
    %v1764 = vpack.c.b16 %v1012, %v1004
    %v1765 = vpack.c.b16 %v1013, %v1005
    %v1766 = vpack.c.b16 %v1014, %v1006
    %v1767 = vpack.c.b16 %v1015, %v1007
    %v1768 = vpack.c.b16 %v1016, %v1008
    %v1769 = vpack.c.b16 %v1017, %v1009
    %v1770 = vpack.c.b16 %v1018, %v1010
    %v1771 = vpack.c.b16 %v1027, %v1019
    %v1772 = vpack.c.b16 %v1028, %v1020
    %v1773 = vpack.c.b16 %v1029, %v1021
    %v1774 = vpack.c.b16 %v1030, %v1022
    %v1775 = vpack.c.b16 %v1031, %v1023
    %v1776 = vpack.c.b16 %v1032, %v1024
    %v1777 = vpack.c.b16 %v1033, %v1025
    %v1778 = vpack.c.b16 %v1034, %v1026
    %v1779 = vpack.c.b16 %v1043, %v1035
    %v1780 = vpack.c.b16 %v1044, %v1036
    %v1781 = vpack.c.b16 %v1045, %v1037
    %v1782 = vpack.c.b16 %v1046, %v1038
    %v1783 = vpack.c.b16 %v1047, %v1039
    %v1784 = vpack.c.b16 %v1048, %v1040
    %v1785 = vpack.c.b16 %v1049, %v1041
    %v1786 = vpack.c.b16 %v1050, %v1042
    %v1787 = vpack.c.b16 %v1059, %v1051
    %v1788 = vpack.c.b16 %v1060, %v1052
    %v1789 = vpack.c.b16 %v1061, %v1053
    %v1790 = vpack.c.b16 %v1062, %v1054
    %v1791 = vpack.c.b16 %v1063, %v1055
    %v1792 = vpack.c.b16 %v1064, %v1056
    %v1793 = vpack.c.b16 %v1065, %v1057
    %v1794 = vpack.c.b16 %v1066, %v1058
    %v1795 = vpack.c.b16 %v1075, %v1067
    %v1796 = vpack.c.b16 %v1076, %v1068
    %v1797 = vpack.c.b16 %v1077, %v1069
    %v1798 = vpack.c.b16 %v1078, %v1070
    %v1799 = vpack.c.b16 %v1079, %v1071
    %v1800 = vpack.c.b16 %v1080, %v1072
    %v1801 = vpack.c.b16 %v1081, %v1073
    %v1802 = vpack.c.b16 %v1082, %v1074
    %v1803 = vpack.c.b16 %v1091, %v1083
    %v1804 = vpack.c.b16 %v1092, %v1084
    %v1805 = vpack.c.b16 %v1093, %v1085
    %v1806 = vpack.c.b16 %v1094, %v1086
    %v1807 = vpack.c.b16 %v1095, %v1087
    %v1808 = vpack.c.b16 %v1096, %v1088
    %v1809 = vpack.c.b16 %v1097, %v1089
    %v1810 = vpack.c.b16 %v1098, %v1090
    %v1811 = vpack.c.b16 %v1107, %v1099
    %v1812 = vpack.c.b16 %v1108, %v1100
    %v1813 = vpack.c.b16 %v1109, %v1101
    %v1814 = vpack.c.b16 %v1110, %v1102
    %v1815 = vpack.c.b16 %v1111, %v1103
    %v1816 = vpack.c.b16 %v1112, %v1104
    %v1817 = vpack.c.b16 %v1113, %v1105
    %v1818 = vpack.c.b16 %v1114, %v1106
    %v1819 = vpack.c.b16 %v1123, %v1115
    %v1820 = vpack.c.b16 %v1124, %v1116
    %v1821 = vpack.c.b16 %v1125, %v1117
    %v1822 = vpack.c.b16 %v1126, %v1118
    %v1823 = vpack.c.b16 %v1127, %v1119
    %v1824 = vpack.c.b16 %v1128, %v1120
    %v1825 = vpack.c.b16 %v1129, %v1121
    %v1826 = vpack.c.b16 %v1130, %v1122
    %v1827 = vpack.c.b16 %v1139, %v1131
    %v1828 = vpack.c.b16 %v1140, %v1132
    %v1829 = vpack.c.b16 %v1141, %v1133
    %v1830 = vpack.c.b16 %v1142, %v1134
    %v1831 = vpack.c.b16 %v1143, %v1135
    %v1832 = vpack.c.b16 %v1144, %v1136
    %v1833 = vpack.c.b16 %v1145, %v1137
    %v1834 = vpack.c.b16 %v1146, %v1138
    %v1835 = vpack.c.b16 %v1155, %v1147
    %v1836 = vpack.c.b16 %v1156, %v1148
    %v1837 = vpack.c.b16 %v1157, %v1149
    %v1838 = vpack.c.b16 %v1158, %v1150
    %v1839 = vpack.c.b16 %v1159, %v1151
    %v1840 = vpack.c.b16 %v1160, %v1152
    %v1841 = vpack.c.b16 %v1161, %v1153
    %v1842 = vpack.c.b16 %v1162, %v1154
    %v1843 = vpack.c.b16 %v1171, %v1163
    %v1844 = vpack.c.b16 %v1172, %v1164
    %v1845 = vpack.c.b16 %v1173, %v1165
    %v1846 = vpack.c.b16 %v1174, %v1166
    %v1847 = vpack.c.b16 %v1175, %v1167
    %v1848 = vpack.c.b16 %v1176, %v1168
    %v1849 = vpack.c.b16 %v1177, %v1169
    %v1850 = vpack.c.b16 %v1178, %v1170
    %v1851 = vpack.c.b16 %v1187, %v1179
    %v1852 = vpack.c.b16 %v1188, %v1180
    %v1853 = vpack.c.b16 %v1189, %v1181
    %v1854 = vpack.c.b16 %v1190, %v1182
    %v1855 = vpack.c.b16 %v1191, %v1183
    %v1856 = vpack.c.b16 %v1192, %v1184
    %v1857 = vpack.c.b16 %v1193, %v1185
    %v1858 = vpack.c.b16 %v1194, %v1186
    %v1859 = vpack.c.b16 %v1203, %v1195
    %v1860 = vpack.c.b16 %v1204, %v1196
    %v1861 = vpack.c.b16 %v1205, %v1197
    %v1862 = vpack.c.b16 %v1206, %v1198
    %v1863 = vpack.c.b16 %v1207, %v1199
    %v1864 = vpack.c.b16 %v1208, %v1200
    %v1865 = vpack.c.b16 %v1209, %v1201
    %v1866 = vpack.c.b16 %v1210, %v1202
    %v1867 = vpack.c.b16 %v1219, %v1211
    %v1868 = vpack.c.b16 %v1220, %v1212
    %v1869 = vpack.c.b16 %v1221, %v1213
    %v1870 = vpack.c.b16 %v1222, %v1214
    %v1871 = vpack.c.b16 %v1223, %v1215
    %v1872 = vpack.c.b16 %v1224, %v1216
    %v1873 = vpack.c.b16 %v1225, %v1217
    %v1874 = vpack.c.b16 %v1226, %v1218
    %v1875 = vpack.c.b16 %v1235, %v1227
    %v1876 = vpack.c.b16 %v1236, %v1228
    %v1877 = vpack.c.b16 %v1237, %v1229
    %v1878 = vpack.c.b16 %v1238, %v1230
    %v1879 = vpack.c.b16 %v1239, %v1231
    %v1880 = vpack.c.b16 %v1240, %v1232
    %v1881 = vpack.c.b16 %v1241, %v1233
    %v1882 = vpack.c.b16 %v1242, %v1234
    %v1883 = vpack.c.b16 %v1251, %v1243
    %v1884 = vpack.c.b16 %v1252, %v1244
    %v1885 = vpack.c.b16 %v1253, %v1245
    %v1886 = vpack.c.b16 %v1254, %v1246
    %v1887 = vpack.c.b16 %v1255, %v1247
    %v1888 = vpack.c.b16 %v1256, %v1248
    %v1889 = vpack.c.b16 %v1257, %v1249
    %v1890 = vpack.c.b16 %v1258, %v1250
    %v1891 = vpack.c.b16 %v1267, %v1259
    %v1892 = vpack.c.b16 %v1268, %v1260
    %v1893 = vpack.c.b16 %v1269, %v1261
    %v1894 = vpack.c.b16 %v1270, %v1262
    %v1895 = vpack.c.b16 %v1271, %v1263
    %v1896 = vpack.c.b16 %v1272, %v1264
    %v1897 = vpack.c.b16 %v1273, %v1265
    %v1898 = vpack.c.b16 %v1274, %v1266
    %v1899 = vpack.c.b16 %v1283, %v1275
    %v1900 = vpack.c.b16 %v1284, %v1276
    %v1901 = vpack.c.b16 %v1285, %v1277
    %v1902 = vpack.c.b16 %v1286, %v1278
    %v1903 = vpack.c.b16 %v1287, %v1279
    %v1904 = vpack.c.b16 %v1288, %v1280
    %v1905 = vpack.c.b16 %v1289, %v1281
    %v1906 = vpack.c.b16 %v1290, %v1282
    %v1907 = vpack.c.b16 %v1299, %v1291
    %v1908 = vpack.c.b16 %v1300, %v1292
    %v1909 = vpack.c.b16 %v1301, %v1293
    %v1910 = vpack.c.b16 %v1302, %v1294
    %v1911 = vpack.c.b16 %v1303, %v1295
    %v1912 = vpack.c.b16 %v1304, %v1296
    %v1913 = vpack.c.b16 %v1305, %v1297
    %v1914 = vpack.c.b16 %v1306, %v1298
    %v1915 = vpack.c.b16 %v1315, %v1307
    %v1916 = vpack.c.b16 %v1316, %v1308
    %v1917 = vpack.c.b16 %v1317, %v1309
    %v1918 = vpack.c.b16 %v1318, %v1310
    %v1919 = vpack.c.b16 %v1319, %v1311
    %v1920 = vpack.c.b16 %v1320, %v1312
    %v1921 = vpack.c.b16 %v1321, %v1313
    %v1922 = vpack.c.b16 %v1322, %v1314
    %v1923 = vpack.c.b16 %v1331, %v1323
    %v1924 = vpack.c.b16 %v1332, %v1324
    %v1925 = vpack.c.b16 %v1333, %v1325
    %v1926 = vpack.c.b16 %v1334, %v1326
    %v1927 = vpack.c.b16 %v1335, %v1327
    %v1928 = vpack.c.b16 %v1336, %v1328
    %v1929 = vpack.c.b16 %v1337, %v1329
    %v1930 = vpack.c.b16 %v1338, %v1330
    %v1931 = vpack.c.b16 %v1347, %v1339
    %v1932 = vpack.c.b16 %v1348, %v1340
    %v1933 = vpack.c.b16 %v1349, %v1341
    %v1934 = vpack.c.b16 %v1350, %v1342
    %v1935 = vpack.c.b16 %v1351, %v1343
    %v1936 = vpack.c.b16 %v1352, %v1344
    %v1937 = vpack.c.b16 %v1353, %v1345
    %v1938 = vpack.c.b16 %v1354, %v1346
    %v1939 = vpack.c.b16 %v1363, %v1355
    %v1940 = vpack.c.b16 %v1364, %v1356
    %v1941 = vpack.c.b16 %v1365, %v1357
    %v1942 = vpack.c.b16 %v1366, %v1358
    %v1943 = vpack.c.b16 %v1367, %v1359
    %v1944 = vpack.c.b16 %v1368, %v1360
    %v1945 = vpack.c.b16 %v1369, %v1361
    %v1946 = vpack.c.b16 %v1370, %v1362
    %v1947 = vpack.c.b16 %v1379, %v1371
    %v1948 = vpack.c.b16 %v1380, %v1372
    %v1949 = vpack.c.b16 %v1381, %v1373
    %v1950 = vpack.c.b16 %v1382, %v1374
    %v1951 = vpack.c.b16 %v1383, %v1375
    %v1952 = vpack.c.b16 %v1384, %v1376
    %v1953 = vpack.c.b16 %v1385, %v1377
    %v1954 = vpack.c.b16 %v1386, %v1378
    %v1955 = vpack.c.b16 %v1395, %v1387
    %v1956 = vpack.c.b16 %v1396, %v1388
    %v1957 = vpack.c.b16 %v1397, %v1389
    %v1958 = vpack.c.b16 %v1398, %v1390
    %v1959 = vpack.c.b16 %v1399, %v1391
    %v1960 = vpack.c.b16 %v1400, %v1392
    %v1961 = vpack.c.b16 %v1401, %v1393
    %v1962 = vpack.c.b16 %v1402, %v1394
    %v1963 = vpack.c.b16 %v1411, %v1403
    %v1964 = vpack.c.b16 %v1412, %v1404
    %v1965 = vpack.c.b16 %v1413, %v1405
    %v1966 = vpack.c.b16 %v1414, %v1406
    %v1967 = vpack.c.b16 %v1415, %v1407
    %v1968 = vpack.c.b16 %v1416, %v1408
    %v1969 = vpack.c.b16 %v1417, %v1409
    %v1970 = vpack.c.b16 %v1418, %v1410
    %v1971 = vpack.c.b16 %v1427, %v1419
    %v1972 = vpack.c.b16 %v1428, %v1420
    %v1973 = vpack.c.b16 %v1429, %v1421
    %v1974 = vpack.c.b16 %v1430, %v1422
    %v1975 = vpack.c.b16 %v1431, %v1423
    %v1976 = vpack.c.b16 %v1432, %v1424
    %v1977 = vpack.c.b16 %v1433, %v1425
    %v1978 = vpack.c.b16 %v1434, %v1426
    %v1979 = vpack.c.b16 %v1443, %v1435
    %v1980 = vpack.c.b16 %v1444, %v1436
    %v1981 = vpack.c.b16 %v1445, %v1437
    %v1982 = vpack.c.b16 %v1446, %v1438
    %v1983 = vpack.c.b16 %v1447, %v1439
    %v1984 = vpack.c.b16 %v1448, %v1440
    %v1985 = vpack.c.b16 %v1449, %v1441
    %v1986 = vpack.c.b16 %v1450, %v1442
    %v1987 = vpack.c.b16 %v1459, %v1451
    %v1988 = vpack.c.b16 %v1460, %v1452
    %v1989 = vpack.c.b16 %v1461, %v1453
    %v1990 = vpack.c.b16 %v1462, %v1454
    %v1991 = vpack.c.b16 %v1463, %v1455
    %v1992 = vpack.c.b16 %v1464, %v1456
    %v1993 = vpack.c.b16 %v1465, %v1457
    %v1994 = vpack.c.b16 %v1466, %v1458
    %v1995 = vpack.c.b16 %v1475, %v1467
    %v1996 = vpack.c.b16 %v1476, %v1468
    %v1997 = vpack.c.b16 %v1477, %v1469
    %v1998 = vpack.c.b16 %v1478, %v1470
    %v1999 = vpack.c.b16 %v1479, %v1471
    %v2000 = vpack.c.b16 %v1480, %v1472
    %v2001 = vpack.c.b16 %v1481, %v1473
    %v2002 = vpack.c.b16 %v1482, %v1474
    %v2003 = vpack.c.b16 %v1491, %v1483
    %v2004 = vpack.c.b16 %v1492, %v1484
    %v2005 = vpack.c.b16 %v1493, %v1485
    %v2006 = vpack.c.b16 %v1494, %v1486
    %v2007 = vpack.c.b16 %v1495, %v1487
    %v2008 = vpack.c.b16 %v1496, %v1488
    %v2009 = vpack.c.b16 %v1497, %v1489
    %v2010 = vpack.c.b16 %v1498, %v1490
    %v2011 = vpack.c.b16 %v1507, %v1499
    %v2012 = vpack.c.b16 %v1508, %v1500
    %v2013 = vpack.c.b16 %v1509, %v1501
    %v2014 = vpack.c.b16 %v1510, %v1502
    %v2015 = vpack.c.b16 %v1511, %v1503
    %v2016 = vpack.c.b16 %v1512, %v1504
    %v2017 = vpack.c.b16 %v1513, %v1505
    %v2018 = vpack.c.b16 %v1514, %v1506
    %v2019 = vpack.c.b16 %v1523, %v1515
    %v2020 = vpack.c.b16 %v1524, %v1516
    %v2021 = vpack.c.b16 %v1525, %v1517
    %v2022 = vpack.c.b16 %v1526, %v1518
    %v2023 = vpack.c.b16 %v1527, %v1519
    %v2024 = vpack.c.b16 %v1528, %v1520
    %v2025 = vpack.c.b16 %v1529, %v1521
    %v2026 = vpack.c.b16 %v1530, %v1522
    %v2027 = vpack.c.b16 %v1539, %v1531
    %v2028 = vpack.c.b16 %v1540, %v1532
    %v2029 = vpack.c.b16 %v1541, %v1533
    %v2030 = vpack.c.b16 %v1542, %v1534
    %v2031 = vpack.c.b16 %v1543, %v1535
    %v2032 = vpack.c.b16 %v1544, %v1536
    %v2033 = vpack.c.b16 %v1545, %v1537
    %v2034 = vpack.c.b16 %v1546, %v1538
    %v2035 = vpack.c.b16 %v1555, %v1547
    %v2036 = vpack.c.b16 %v1556, %v1548
    %v2037 = vpack.c.b16 %v1557, %v1549
    %v2038 = vpack.c.b16 %v1558, %v1550
    %v2039 = vpack.c.b16 %v1559, %v1551
    %v2040 = vpack.c.b16 %v1560, %v1552
    %v2041 = vpack.c.b16 %v1561, %v1553
    %v2042 = vpack.c.b16 %v1562, %v1554
    %v2043 = vpack.c.b16 %v1571, %v1563
    %v2044 = vpack.c.b16 %v1572, %v1564
    %v2045 = vpack.c.b16 %v1573, %v1565
    %v2046 = vpack.c.b16 %v1574, %v1566
    %v2047 = vpack.c.b16 %v1575, %v1567
    %v2048 = vpack.c.b16 %v1576, %v1568
    %v2049 = vpack.c.b16 %v1577, %v1569
    %v2050 = vpack.c.b16 %v1578, %v1570
    %v2051 = vpack.c.b16 %v1587, %v1579
    %v2052 = vpack.c.b16 %v1588, %v1580
    %v2053 = vpack.c.b16 %v1589, %v1581
    %v2054 = vpack.c.b16 %v1590, %v1582
    %v2055 = vpack.c.b16 %v1591, %v1583
    %v2056 = vpack.c.b16 %v1592, %v1584
    %v2057 = vpack.c.b16 %v1593, %v1585
    %v2058 = vpack.c.b16 %v1594, %v1586
    %v2059 = vpack.c.b16 %v1603, %v1595
    %v2060 = vpack.c.b16 %v1604, %v1596
    %v2061 = vpack.c.b16 %v1605, %v1597
    %v2062 = vpack.c.b16 %v1606, %v1598
    %v2063 = vpack.c.b16 %v1607, %v1599
    %v2064 = vpack.c.b16 %v1608, %v1600
    %v2065 = vpack.c.b16 %v1609, %v1601
    %v2066 = vpack.c.b16 %v1610, %v1602
    %v2067 = vpack.c.b16 %v1619, %v1611
    %v2068 = vpack.c.b16 %v1620, %v1612
    %v2069 = vpack.c.b16 %v1621, %v1613
    %v2070 = vpack.c.b16 %v1622, %v1614
    %v2071 = vpack.c.b16 %v1623, %v1615
    %v2072 = vpack.c.b16 %v1624, %v1616
    %v2073 = vpack.c.b16 %v1625, %v1617
    %v2074 = vpack.c.b16 %v1626, %v1618
    %v2075 = vpack.c.b16 %v1635, %v1627
    %v2076 = vpack.c.b16 %v1636, %v1628
    %v2077 = vpack.c.b16 %v1637, %v1629
    %v2078 = vpack.c.b16 %v1638, %v1630
    %v2079 = vpack.c.b16 %v1639, %v1631
    %v2080 = vpack.c.b16 %v1640, %v1632
    %v2081 = vpack.c.b16 %v1641, %v1633
    %v2082 = vpack.c.b16 %v1642, %v1634
    %v2083 = vpack.c.b16 %v1651, %v1643
    %v2084 = vpack.c.b16 %v1652, %v1644
    %v2085 = vpack.c.b16 %v1653, %v1645
    %v2086 = vpack.c.b16 %v1654, %v1646
    %v2087 = vpack.c.b16 %v1655, %v1647
    %v2088 = vpack.c.b16 %v1656, %v1648
    %v2089 = vpack.c.b16 %v1657, %v1649
    %v2090 = vpack.c.b16 %v1658, %v1650
    %v2091 = vpack.c.b16 %v1667, %v1659
    %v2092 = vpack.c.b16 %v1668, %v1660
    %v2093 = vpack.c.b16 %v1669, %v1661
    %v2094 = vpack.c.b16 %v1670, %v1662
    %v2095 = vpack.c.b16 %v1671, %v1663
    %v2096 = vpack.c.b16 %v1672, %v1664
    %v2097 = vpack.c.b16 %v1673, %v1665
    %v2098 = vpack.c.b16 %v1674, %v1666
    %v2099 = vpack.c.b16 %v1683, %v1675
    %v2100 = vpack.c.b16 %v1684, %v1676
    %v2101 = vpack.c.b16 %v1685, %v1677
    %v2102 = vpack.c.b16 %v1686, %v1678
    %v2103 = vpack.c.b16 %v1687, %v1679
    %v2104 = vpack.c.b16 %v1688, %v1680
    %v2105 = vpack.c.b16 %v1689, %v1681
    %v2106 = vpack.c.b16 %v1690, %v1682
    %v2107 = vpack.c.b16 %v1699, %v1691
    %v2108 = vpack.c.b16 %v1700, %v1692
    %v2109 = vpack.c.b16 %v1701, %v1693
    %v2110 = vpack.c.b16 %v1702, %v1694
    %v2111 = vpack.c.b16 %v1703, %v1695
    %v2112 = vpack.c.b16 %v1704, %v1696
    %v2113 = vpack.c.b16 %v1705, %v1697
    %v2114 = vpack.c.b16 %v1706, %v1698
    %v2115 = vpack.c.b16 %v1715, %v1707
    %v2116 = vpack.c.b16 %v1716, %v1708
    %v2117 = vpack.c.b16 %v1717, %v1709
    %v2118 = vpack.c.b16 %v1718, %v1710
    %v2119 = vpack.c.b16 %v1719, %v1711
    %v2120 = vpack.c.b16 %v1720, %v1712
    %v2121 = vpack.c.b16 %v1721, %v1713
    %v2122 = vpack.c.b16 %v1722, %v1714
    %v2123 = vpack.c.b16 %v1731, %v1723
    %v2124 = vpack.c.b16 %v1732, %v1724
    %v2125 = vpack.c.b16 %v1733, %v1725
    %v2126 = vpack.c.b16 %v1734, %v1726
    %v2127 = vpack.c.b16 %v1735, %v1727
    %v2128 = vpack.c.b16 %v1736, %v1728
    %v2129 = vpack.c.b16 %v1737, %v1729
    %v2130 = vpack.c.b16 %v1738, %v1730
    %vm2523 = vcmask 130048
    %v2525 = vsel %vm2523, %v128, 0
    %2527 = vmatprep.subr.bf16.mxu0 %v1796
    %2528 = vmatpush1.bf16.msra.mxu0 %v1795
    %2529 = vmatprep.subr.bf16.mxu0 %v1788
    %2530 = vmatpush1.bf16.msra.mxu0 %v1787
    %2531 = vmatprep.subr.bf16.mxu0 %v1780
    %2532 = vmatpush1.bf16.msra.mxu0 %v1779
    %2533 = vmatprep.subr.bf16.mxu0 %v1772
    %2534 = vmatpush1.bf16.msra.mxu0 %v1771
    %2535 = vmatprep.subr.bf16.mxu0 %v1764
    %2536 = vmatpush1.bf16.msra.mxu0 %v1763
    %2537 = vmatprep.subr.bf16.mxu0 %v1756
    %2538 = vmatpush1.bf16.msra.mxu0 %v1755
    %2539 = vmatprep.subr.bf16.mxu0 %v1748
    %2540 = vmatpush1.bf16.msra.mxu0 %v1747
    %2541 = vmatprep.subr.bf16.mxu0 %v1740
    %2542 = vmatpush1.bf16.msra.mxu0 %v1739
    %2543 = vmatprep.subr.bf16.mxu0 %v1860
    %2544 = vmatpush2.bf16.msra.mxu0 %v1859
    %2545 = vmatprep.subr.bf16.mxu0 %v1852
    %2546 = vmatpush2.bf16.msra.mxu0 %v1851
    %2547 = vmatprep.subr.bf16.mxu0 %v1844
    %2548 = vmatpush2.bf16.msra.mxu0 %v1843
    %2549 = vmatprep.subr.bf16.mxu0 %v1836
    %2550 = vmatpush2.bf16.msra.mxu0 %v1835
    %2551 = vmatprep.subr.bf16.mxu0 %v1828
    %2552 = vmatpush2.bf16.msra.mxu0 %v1827
    %2553 = vmatprep.subr.bf16.mxu0 %v1820
    %2554 = vmatpush2.bf16.msra.mxu0 %v1819
    %2555 = vmatprep.subr.bf16.mxu0 %v1812
    %2556 = vmatpush2.bf16.msra.mxu0 %v1811
    %2557 = vmatprep.subr.bf16.mxu0 %v1804
    %2558 = vmatpush2.bf16.msra.mxu0 %v1803
    %2559 = vmatprep.mubr.bf16.mxu0 %v123
    %2560 = vmatmul.mubr.bf16.gmra.mxu0 %v122
    %v2561 = vpop.f32.mrf.mxu0
    %v2562 = vadd.f32 %v526, %v2561
    %v2563 = vpop.f32.mrf.mxu0
    %v2564 = vadd.f32 %v530, %v2563
    %v2565 = vpop.f32.mrf.mxu0
    %v2566 = vpop.f32.mrf.mxu0
    %2567 = vdwg.mxu0
    %2568 = vmatprep.subr.bf16.mxu0 %v1924
    %2569 = vmatpush1.bf16.msra.mxu0 %v1923
    %2570 = vmatprep.subr.bf16.mxu0 %v1916
    %2571 = vmatpush1.bf16.msra.mxu0 %v1915
    %2572 = vmatprep.subr.bf16.mxu0 %v1908
    %2573 = vmatpush1.bf16.msra.mxu0 %v1907
    %2574 = vmatprep.subr.bf16.mxu0 %v1900
    %2575 = vmatpush1.bf16.msra.mxu0 %v1899
    %2576 = vmatprep.subr.bf16.mxu0 %v1892
    %2577 = vmatpush1.bf16.msra.mxu0 %v1891
    %2578 = vmatprep.subr.bf16.mxu0 %v1884
    %2579 = vmatpush1.bf16.msra.mxu0 %v1883
    %2580 = vmatprep.subr.bf16.mxu0 %v1876
    %2581 = vmatpush1.bf16.msra.mxu0 %v1875
    %2582 = vmatprep.subr.bf16.mxu0 %v1868
    %2583 = vmatpush1.bf16.msra.mxu0 %v1867
    %2584 = vmatprep.subr.bf16.mxu0 %v1988
    %2585 = vmatpush2.bf16.msra.mxu0 %v1987
    %2586 = vmatprep.subr.bf16.mxu0 %v1980
    %2587 = vmatpush2.bf16.msra.mxu0 %v1979
    %2588 = vmatprep.subr.bf16.mxu0 %v1972
    %2589 = vmatpush2.bf16.msra.mxu0 %v1971
    %2590 = vmatprep.subr.bf16.mxu0 %v1964
    %2591 = vmatpush2.bf16.msra.mxu0 %v1963
    %2592 = vmatprep.subr.bf16.mxu0 %v1956
    %2593 = vmatpush2.bf16.msra.mxu0 %v1955
    %2594 = vmatprep.subr.bf16.mxu0 %v1948
    %2595 = vmatpush2.bf16.msra.mxu0 %v1947
    %2596 = vmatprep.subr.bf16.mxu0 %v1940
    %2597 = vmatpush2.bf16.msra.mxu0 %v1939
    %2598 = vmatprep.subr.bf16.mxu0 %v1932
    %2599 = vmatpush2.bf16.msra.mxu0 %v1931
    %2600 = vmatprep.mubr.bf16.mxu0 %v125
    %2601 = vmatmul.mubr.bf16.gmra.mxu0 %v124
    %v2602 = vpop.f32.mrf.mxu0
    %v2603 = vadd.f32 %v2562, %v2602
    %v2604 = vpop.f32.mrf.mxu0
    %v2605 = vadd.f32 %v2564, %v2604
    %v2606 = vpop.f32.mrf.mxu0
    %v2607 = vpop.f32.mrf.mxu0
    %2608 = vdwg.mxu0
    %2609 = vmatprep.subr.bf16.mxu0 %v2052
    %2610 = vmatpush1.bf16.msra.mxu0 %v2051
    %2611 = vmatprep.subr.bf16.mxu0 %v2044
    %2612 = vmatpush1.bf16.msra.mxu0 %v2043
    %2613 = vmatprep.subr.bf16.mxu0 %v2036
    %2614 = vmatpush1.bf16.msra.mxu0 %v2035
    %2615 = vmatprep.subr.bf16.mxu0 %v2028
    %2616 = vmatpush1.bf16.msra.mxu0 %v2027
    %2617 = vmatprep.subr.bf16.mxu0 %v2020
    %2618 = vmatpush1.bf16.msra.mxu0 %v2019
    %2619 = vmatprep.subr.bf16.mxu0 %v2012
    %2620 = vmatpush1.bf16.msra.mxu0 %v2011
    %2621 = vmatprep.subr.bf16.mxu0 %v2004
    %2622 = vmatpush1.bf16.msra.mxu0 %v2003
    %2623 = vmatprep.subr.bf16.mxu0 %v1996
    %2624 = vmatpush1.bf16.msra.mxu0 %v1995
    %2625 = vmatprep.subr.bf16.mxu0 %v2116
    %2626 = vmatpush2.bf16.msra.mxu0 %v2115
    %2627 = vmatprep.subr.bf16.mxu0 %v2108
    %2628 = vmatpush2.bf16.msra.mxu0 %v2107
    %2629 = vmatprep.subr.bf16.mxu0 %v2100
    %2630 = vmatpush2.bf16.msra.mxu0 %v2099
    %2631 = vmatprep.subr.bf16.mxu0 %v2092
    %2632 = vmatpush2.bf16.msra.mxu0 %v2091
    %2633 = vmatprep.subr.bf16.mxu0 %v2084
    %2634 = vmatpush2.bf16.msra.mxu0 %v2083
    %2635 = vmatprep.subr.bf16.mxu0 %v2076
    %2636 = vmatpush2.bf16.msra.mxu0 %v2075
    %2637 = vmatprep.subr.bf16.mxu0 %v2068
    %2638 = vmatpush2.bf16.msra.mxu0 %v2067
    %2639 = vmatprep.subr.bf16.mxu0 %v2060
    %2640 = vmatpush2.bf16.msra.mxu0 %v2059
    %2641 = vmatprep.mubr.bf16.mxu0 %v127
    %2642 = vmatmul.mubr.bf16.gmra.mxu0 %v126
    %v2643 = vpop.f32.mrf.mxu0
    %v2644 = vadd.f32 %v2603, %v2643
    %v2645 = vpop.f32.mrf.mxu0
    %v2646 = vadd.f32 %v2605, %v2645
    %v2647 = vpop.f32.mrf.mxu0
    %v2648 = vpop.f32.mrf.mxu0
    %2649 = vdwg.mxu0
    %2650 = vmatprep.subr.bf16.mxu0 0
    %2651 = vmatpush1.bf16.msra.mxu0 0
    %2652 = vmatprep.subr.bf16.mxu0 0
    %2653 = vmatpush1.bf16.msra.mxu0 0
    %2654 = vmatprep.subr.bf16.mxu0 0
    %2655 = vmatpush1.bf16.msra.mxu0 0
    %2656 = vmatprep.subr.bf16.mxu0 0
    %2657 = vmatpush1.bf16.msra.mxu0 0
    %2658 = vmatprep.subr.bf16.mxu0 0
    %2659 = vmatpush1.bf16.msra.mxu0 0
    %2660 = vmatprep.subr.bf16.mxu0 0
    %2661 = vmatpush1.bf16.msra.mxu0 0
    %2662 = vmatprep.subr.bf16.mxu0 0
    %2663 = vmatpush1.bf16.msra.mxu0 0
    %2664 = vmatprep.subr.bf16.mxu0 %v2124
    %2665 = vmatpush1.bf16.msra.mxu0 %v2123
    %2666 = vmatprep.subr.bf16.mxu0 0
    %2667 = vmatpush2.bf16.msra.mxu0 0
    %2668 = vmatprep.subr.bf16.mxu0 0
    %2669 = vmatpush2.bf16.msra.mxu0 0
    %2670 = vmatprep.subr.bf16.mxu0 0
    %2671 = vmatpush2.bf16.msra.mxu0 0
    %2672 = vmatprep.subr.bf16.mxu0 0
    %2673 = vmatpush2.bf16.msra.mxu0 0
    %2674 = vmatprep.subr.bf16.mxu0 0
    %2675 = vmatpush2.bf16.msra.mxu0 0
    %2676 = vmatprep.subr.bf16.mxu0 0
    %2677 = vmatpush2.bf16.msra.mxu0 0
    %2678 = vmatprep.subr.bf16.mxu0 0
    %2679 = vmatpush2.bf16.msra.mxu0 0
    %2680 = vmatprep.subr.bf16.mxu0 0
    %2681 = vmatpush2.bf16.msra.mxu0 0
    %2682 = vmatprep.mubr.bf16.mxu0 0
    %2683 = vmatmul.mubr.bf16.gmra.mxu0 %v2525
    %v2684 = vpop.f32.mrf.mxu0
    %v2685 = vadd.f32 %v2644, %v2684
    %v2686 = vpop.f32.mrf.mxu0
    %v2687 = vadd.f32 %v2646, %v2686
    %v2688 = vpop.f32.mrf.mxu0
    %v2689 = vpop.f32.mrf.mxu0
    %2690 = vdwg.mxu0
    %2691 = vmatprep.subr.bf16.mxu0 %v1798
    %2692 = vmatpush1.bf16.msra.mxu0 %v1797
    %2693 = vmatprep.subr.bf16.mxu0 %v1790
    %2694 = vmatpush1.bf16.msra.mxu0 %v1789
    %2695 = vmatprep.subr.bf16.mxu0 %v1782
    %2696 = vmatpush1.bf16.msra.mxu0 %v1781
    %2697 = vmatprep.subr.bf16.mxu0 %v1774
    %2698 = vmatpush1.bf16.msra.mxu0 %v1773
    %2699 = vmatprep.subr.bf16.mxu0 %v1766
    %2700 = vmatpush1.bf16.msra.mxu0 %v1765
    %2701 = vmatprep.subr.bf16.mxu0 %v1758
    %2702 = vmatpush1.bf16.msra.mxu0 %v1757
    %2703 = vmatprep.subr.bf16.mxu0 %v1750
    %2704 = vmatpush1.bf16.msra.mxu0 %v1749
    %2705 = vmatprep.subr.bf16.mxu0 %v1742
    %2706 = vmatpush1.bf16.msra.mxu0 %v1741
    %2707 = vmatprep.subr.bf16.mxu0 %v1862
    %2708 = vmatpush2.bf16.msra.mxu0 %v1861
    %2709 = vmatprep.subr.bf16.mxu0 %v1854
    %2710 = vmatpush2.bf16.msra.mxu0 %v1853
    %2711 = vmatprep.subr.bf16.mxu0 %v1846
    %2712 = vmatpush2.bf16.msra.mxu0 %v1845
    %2713 = vmatprep.subr.bf16.mxu0 %v1838
    %2714 = vmatpush2.bf16.msra.mxu0 %v1837
    %2715 = vmatprep.subr.bf16.mxu0 %v1830
    %2716 = vmatpush2.bf16.msra.mxu0 %v1829
    %2717 = vmatprep.subr.bf16.mxu0 %v1822
    %2718 = vmatpush2.bf16.msra.mxu0 %v1821
    %2719 = vmatprep.subr.bf16.mxu0 %v1814
    %2720 = vmatpush2.bf16.msra.mxu0 %v1813
    %2721 = vmatprep.subr.bf16.mxu0 %v1806
    %2722 = vmatpush2.bf16.msra.mxu0 %v1805
    %2723 = vmatprep.mubr.bf16.mxu0 %v123
    %2724 = vmatmul.mubr.bf16.gmra.mxu0 %v122
    %v2725 = vpop.f32.mrf.mxu0
    %v2726 = vadd.f32 %v534, %v2725
    %v2727 = vpop.f32.mrf.mxu0
    %v2728 = vadd.f32 %v538, %v2727
    %v2729 = vpop.f32.mrf.mxu0
    %v2730 = vpop.f32.mrf.mxu0
    %2731 = vdwg.mxu0
    %2732 = vmatprep.subr.bf16.mxu0 %v1926
    %2733 = vmatpush1.bf16.msra.mxu0 %v1925
    %2734 = vmatprep.subr.bf16.mxu0 %v1918
    %2735 = vmatpush1.bf16.msra.mxu0 %v1917
    %2736 = vmatprep.subr.bf16.mxu0 %v1910
    %2737 = vmatpush1.bf16.msra.mxu0 %v1909
    %2738 = vmatprep.subr.bf16.mxu0 %v1902
    %2739 = vmatpush1.bf16.msra.mxu0 %v1901
    %2740 = vmatprep.subr.bf16.mxu0 %v1894
    %2741 = vmatpush1.bf16.msra.mxu0 %v1893
    %2742 = vmatprep.subr.bf16.mxu0 %v1886
    %2743 = vmatpush1.bf16.msra.mxu0 %v1885
    %2744 = vmatprep.subr.bf16.mxu0 %v1878
    %2745 = vmatpush1.bf16.msra.mxu0 %v1877
    %2746 = vmatprep.subr.bf16.mxu0 %v1870
    %2747 = vmatpush1.bf16.msra.mxu0 %v1869
    %2748 = vmatprep.subr.bf16.mxu0 %v1990
    %2749 = vmatpush2.bf16.msra.mxu0 %v1989
    %2750 = vmatprep.subr.bf16.mxu0 %v1982
    %2751 = vmatpush2.bf16.msra.mxu0 %v1981
    %2752 = vmatprep.subr.bf16.mxu0 %v1974
    %2753 = vmatpush2.bf16.msra.mxu0 %v1973
    %2754 = vmatprep.subr.bf16.mxu0 %v1966
    %2755 = vmatpush2.bf16.msra.mxu0 %v1965
    %2756 = vmatprep.subr.bf16.mxu0 %v1958
    %2757 = vmatpush2.bf16.msra.mxu0 %v1957
    %2758 = vmatprep.subr.bf16.mxu0 %v1950
    %2759 = vmatpush2.bf16.msra.mxu0 %v1949
    %2760 = vmatprep.subr.bf16.mxu0 %v1942
    %2761 = vmatpush2.bf16.msra.mxu0 %v1941
    %2762 = vmatprep.subr.bf16.mxu0 %v1934
    %2763 = vmatpush2.bf16.msra.mxu0 %v1933
    %2764 = vmatprep.mubr.bf16.mxu0 %v125
    %2765 = vmatmul.mubr.bf16.gmra.mxu0 %v124
    %v2766 = vpop.f32.mrf.mxu0
    %v2767 = vadd.f32 %v2726, %v2766
    %v2768 = vpop.f32.mrf.mxu0
    %v2769 = vadd.f32 %v2728, %v2768
    %v2770 = vpop.f32.mrf.mxu0
    %v2771 = vpop.f32.mrf.mxu0
    %2772 = vdwg.mxu0
    %2773 = vmatprep.subr.bf16.mxu0 %v2054
    %2774 = vmatpush1.bf16.msra.mxu0 %v2053
    %2775 = vmatprep.subr.bf16.mxu0 %v2046
    %2776 = vmatpush1.bf16.msra.mxu0 %v2045
    %2777 = vmatprep.subr.bf16.mxu0 %v2038
    %2778 = vmatpush1.bf16.msra.mxu0 %v2037
    %2779 = vmatprep.subr.bf16.mxu0 %v2030
    %2780 = vmatpush1.bf16.msra.mxu0 %v2029
    %2781 = vmatprep.subr.bf16.mxu0 %v2022
    %2782 = vmatpush1.bf16.msra.mxu0 %v2021
    %2783 = vmatprep.subr.bf16.mxu0 %v2014
    %2784 = vmatpush1.bf16.msra.mxu0 %v2013
    %2785 = vmatprep.subr.bf16.mxu0 %v2006
    %2786 = vmatpush1.bf16.msra.mxu0 %v2005
    %2787 = vmatprep.subr.bf16.mxu0 %v1998
    %2788 = vmatpush1.bf16.msra.mxu0 %v1997
    %2789 = vmatprep.subr.bf16.mxu0 %v2118
    %2790 = vmatpush2.bf16.msra.mxu0 %v2117
    %2791 = vmatprep.subr.bf16.mxu0 %v2110
    %2792 = vmatpush2.bf16.msra.mxu0 %v2109
    %2793 = vmatprep.subr.bf16.mxu0 %v2102
    %2794 = vmatpush2.bf16.msra.mxu0 %v2101
    %2795 = vmatprep.subr.bf16.mxu0 %v2094
    %2796 = vmatpush2.bf16.msra.mxu0 %v2093
    %2797 = vmatprep.subr.bf16.mxu0 %v2086
    %2798 = vmatpush2.bf16.msra.mxu0 %v2085
    %2799 = vmatprep.subr.bf16.mxu0 %v2078
    %2800 = vmatpush2.bf16.msra.mxu0 %v2077
    %2801 = vmatprep.subr.bf16.mxu0 %v2070
    %2802 = vmatpush2.bf16.msra.mxu0 %v2069
    %2803 = vmatprep.subr.bf16.mxu0 %v2062
    %2804 = vmatpush2.bf16.msra.mxu0 %v2061
    %2805 = vmatprep.mubr.bf16.mxu0 %v127
    %2806 = vmatmul.mubr.bf16.gmra.mxu0 %v126
    %v2807 = vpop.f32.mrf.mxu0
    %v2808 = vadd.f32 %v2767, %v2807
    %v2809 = vpop.f32.mrf.mxu0
    %v2810 = vadd.f32 %v2769, %v2809
    %v2811 = vpop.f32.mrf.mxu0
    %v2812 = vpop.f32.mrf.mxu0
    %2813 = vdwg.mxu0
    %2814 = vmatprep.subr.bf16.mxu0 0
    %2815 = vmatpush1.bf16.msra.mxu0 0
    %2816 = vmatprep.subr.bf16.mxu0 0
    %2817 = vmatpush1.bf16.msra.mxu0 0
    %2818 = vmatprep.subr.bf16.mxu0 0
    %2819 = vmatpush1.bf16.msra.mxu0 0
    %2820 = vmatprep.subr.bf16.mxu0 0
    %2821 = vmatpush1.bf16.msra.mxu0 0
    %2822 = vmatprep.subr.bf16.mxu0 0
    %2823 = vmatpush1.bf16.msra.mxu0 0
    %2824 = vmatprep.subr.bf16.mxu0 0
    %2825 = vmatpush1.bf16.msra.mxu0 0
    %2826 = vmatprep.subr.bf16.mxu0 0
    %2827 = vmatpush1.bf16.msra.mxu0 0
    %2828 = vmatprep.subr.bf16.mxu0 %v2126
    %2829 = vmatpush1.bf16.msra.mxu0 %v2125
    %2830 = vmatprep.subr.bf16.mxu0 0
    %2831 = vmatpush2.bf16.msra.mxu0 0
    %2832 = vmatprep.subr.bf16.mxu0 0
    %2833 = vmatpush2.bf16.msra.mxu0 0
    %2834 = vmatprep.subr.bf16.mxu0 0
    %2835 = vmatpush2.bf16.msra.mxu0 0
    %2836 = vmatprep.subr.bf16.mxu0 0
    %2837 = vmatpush2.bf16.msra.mxu0 0
    %2838 = vmatprep.subr.bf16.mxu0 0
    %2839 = vmatpush2.bf16.msra.mxu0 0
    %2840 = vmatprep.subr.bf16.mxu0 0
    %2841 = vmatpush2.bf16.msra.mxu0 0
    %2842 = vmatprep.subr.bf16.mxu0 0
    %2843 = vmatpush2.bf16.msra.mxu0 0
    %2844 = vmatprep.subr.bf16.mxu0 0
    %2845 = vmatpush2.bf16.msra.mxu0 0
    %2846 = vmatprep.mubr.bf16.mxu0 0
    %2847 = vmatmul.mubr.bf16.gmra.mxu0 %v2525
    %v2848 = vpop.f32.mrf.mxu0
    %v2849 = vadd.f32 %v2808, %v2848
    %v2850 = vpop.f32.mrf.mxu0
    %v2851 = vadd.f32 %v2810, %v2850
    %v2852 = vpop.f32.mrf.mxu0
    %v2853 = vpop.f32.mrf.mxu0
    %2854 = vdwg.mxu0
    %2855 = vmatprep.subr.bf16.mxu0 %v1800
    %2856 = vmatpush1.bf16.msra.mxu0 %v1799
    %2857 = vmatprep.subr.bf16.mxu0 %v1792
    %2858 = vmatpush1.bf16.msra.mxu0 %v1791
    %2859 = vmatprep.subr.bf16.mxu0 %v1784
    %2860 = vmatpush1.bf16.msra.mxu0 %v1783
    %2861 = vmatprep.subr.bf16.mxu0 %v1776
    %2862 = vmatpush1.bf16.msra.mxu0 %v1775
    %2863 = vmatprep.subr.bf16.mxu0 %v1768
    %2864 = vmatpush1.bf16.msra.mxu0 %v1767
    %2865 = vmatprep.subr.bf16.mxu0 %v1760
    %2866 = vmatpush1.bf16.msra.mxu0 %v1759
    %2867 = vmatprep.subr.bf16.mxu0 %v1752
    %2868 = vmatpush1.bf16.msra.mxu0 %v1751
    %2869 = vmatprep.subr.bf16.mxu0 %v1744
    %2870 = vmatpush1.bf16.msra.mxu0 %v1743
    %2871 = vmatprep.subr.bf16.mxu0 %v1864
    %2872 = vmatpush2.bf16.msra.mxu0 %v1863
    %2873 = vmatprep.subr.bf16.mxu0 %v1856
    %2874 = vmatpush2.bf16.msra.mxu0 %v1855
    %2875 = vmatprep.subr.bf16.mxu0 %v1848
    %2876 = vmatpush2.bf16.msra.mxu0 %v1847
    %2877 = vmatprep.subr.bf16.mxu0 %v1840
    %2878 = vmatpush2.bf16.msra.mxu0 %v1839
    %2879 = vmatprep.subr.bf16.mxu0 %v1832
    %2880 = vmatpush2.bf16.msra.mxu0 %v1831
    %2881 = vmatprep.subr.bf16.mxu0 %v1824
    %2882 = vmatpush2.bf16.msra.mxu0 %v1823
    %2883 = vmatprep.subr.bf16.mxu0 %v1816
    %2884 = vmatpush2.bf16.msra.mxu0 %v1815
    %2885 = vmatprep.subr.bf16.mxu0 %v1808
    %2886 = vmatpush2.bf16.msra.mxu0 %v1807
    %2887 = vmatprep.mubr.bf16.mxu0 %v123
    %2888 = vmatmul.mubr.bf16.gmra.mxu0 %v122
    %v2889 = vpop.f32.mrf.mxu0
    %v2890 = vadd.f32 %v542, %v2889
    %v2891 = vpop.f32.mrf.mxu0
    %v2892 = vadd.f32 %v546, %v2891
    %v2893 = vpop.f32.mrf.mxu0
    %v2894 = vpop.f32.mrf.mxu0
    %2895 = vdwg.mxu0
    %2896 = vmatprep.subr.bf16.mxu0 %v1928
    %2897 = vmatpush1.bf16.msra.mxu0 %v1927
    %2898 = vmatprep.subr.bf16.mxu0 %v1920
    %2899 = vmatpush1.bf16.msra.mxu0 %v1919
    %2900 = vmatprep.subr.bf16.mxu0 %v1912
    %2901 = vmatpush1.bf16.msra.mxu0 %v1911
    %2902 = vmatprep.subr.bf16.mxu0 %v1904
    %2903 = vmatpush1.bf16.msra.mxu0 %v1903
    %2904 = vmatprep.subr.bf16.mxu0 %v1896
    %2905 = vmatpush1.bf16.msra.mxu0 %v1895
    %2906 = vmatprep.subr.bf16.mxu0 %v1888
    %2907 = vmatpush1.bf16.msra.mxu0 %v1887
    %2908 = vmatprep.subr.bf16.mxu0 %v1880
    %2909 = vmatpush1.bf16.msra.mxu0 %v1879
    %2910 = vmatprep.subr.bf16.mxu0 %v1872
    %2911 = vmatpush1.bf16.msra.mxu0 %v1871
    %2912 = vmatprep.subr.bf16.mxu0 %v1992
    %2913 = vmatpush2.bf16.msra.mxu0 %v1991
    %2914 = vmatprep.subr.bf16.mxu0 %v1984
    %2915 = vmatpush2.bf16.msra.mxu0 %v1983
    %2916 = vmatprep.subr.bf16.mxu0 %v1976
    %2917 = vmatpush2.bf16.msra.mxu0 %v1975
    %2918 = vmatprep.subr.bf16.mxu0 %v1968
    %2919 = vmatpush2.bf16.msra.mxu0 %v1967
    %2920 = vmatprep.subr.bf16.mxu0 %v1960
    %2921 = vmatpush2.bf16.msra.mxu0 %v1959
    %2922 = vmatprep.subr.bf16.mxu0 %v1952
    %2923 = vmatpush2.bf16.msra.mxu0 %v1951
    %2924 = vmatprep.subr.bf16.mxu0 %v1944
    %2925 = vmatpush2.bf16.msra.mxu0 %v1943
    %2926 = vmatprep.subr.bf16.mxu0 %v1936
    %2927 = vmatpush2.bf16.msra.mxu0 %v1935
    %2928 = vmatprep.mubr.bf16.mxu0 %v125
    %2929 = vmatmul.mubr.bf16.gmra.mxu0 %v124
    %v2930 = vpop.f32.mrf.mxu0
    %v2931 = vadd.f32 %v2890, %v2930
    %v2932 = vpop.f32.mrf.mxu0
    %v2933 = vadd.f32 %v2892, %v2932
    %v2934 = vpop.f32.mrf.mxu0
    %v2935 = vpop.f32.mrf.mxu0
    %2936 = vdwg.mxu0
    %2937 = vmatprep.subr.bf16.mxu0 %v2056
    %2938 = vmatpush1.bf16.msra.mxu0 %v2055
    %2939 = vmatprep.subr.bf16.mxu0 %v2048
    %2940 = vmatpush1.bf16.msra.mxu0 %v2047
    %2941 = vmatprep.subr.bf16.mxu0 %v2040
    %2942 = vmatpush1.bf16.msra.mxu0 %v2039
    %2943 = vmatprep.subr.bf16.mxu0 %v2032
    %2944 = vmatpush1.bf16.msra.mxu0 %v2031
    %2945 = vmatprep.subr.bf16.mxu0 %v2024
    %2946 = vmatpush1.bf16.msra.mxu0 %v2023
    %2947 = vmatprep.subr.bf16.mxu0 %v2016
    %2948 = vmatpush1.bf16.msra.mxu0 %v2015
    %2949 = vmatprep.subr.bf16.mxu0 %v2008
    %2950 = vmatpush1.bf16.msra.mxu0 %v2007
    %2951 = vmatprep.subr.bf16.mxu0 %v2000
    %2952 = vmatpush1.bf16.msra.mxu0 %v1999
    %2953 = vmatprep.subr.bf16.mxu0 %v2120
    %2954 = vmatpush2.bf16.msra.mxu0 %v2119
    %2955 = vmatprep.subr.bf16.mxu0 %v2112
    %2956 = vmatpush2.bf16.msra.mxu0 %v2111
    %2957 = vmatprep.subr.bf16.mxu0 %v2104
    %2958 = vmatpush2.bf16.msra.mxu0 %v2103
    %2959 = vmatprep.subr.bf16.mxu0 %v2096
    %2960 = vmatpush2.bf16.msra.mxu0 %v2095
    %2961 = vmatprep.subr.bf16.mxu0 %v2088
    %2962 = vmatpush2.bf16.msra.mxu0 %v2087
    %2963 = vmatprep.subr.bf16.mxu0 %v2080
    %2964 = vmatpush2.bf16.msra.mxu0 %v2079
    %2965 = vmatprep.subr.bf16.mxu0 %v2072
    %2966 = vmatpush2.bf16.msra.mxu0 %v2071
    %2967 = vmatprep.subr.bf16.mxu0 %v2064
    %2968 = vmatpush2.bf16.msra.mxu0 %v2063
    %2969 = vmatprep.mubr.bf16.mxu0 %v127
    %2970 = vmatmul.mubr.bf16.gmra.mxu0 %v126
    %v2971 = vpop.f32.mrf.mxu0
    %v2972 = vadd.f32 %v2931, %v2971
    %v2973 = vpop.f32.mrf.mxu0
    %v2974 = vadd.f32 %v2933, %v2973
    %v2975 = vpop.f32.mrf.mxu0
    %v2976 = vpop.f32.mrf.mxu0
    %2977 = vdwg.mxu0
    %2978 = vmatprep.subr.bf16.mxu0 0
    %2979 = vmatpush1.bf16.msra.mxu0 0
    %2980 = vmatprep.subr.bf16.mxu0 0
    %2981 = vmatpush1.bf16.msra.mxu0 0
    %2982 = vmatprep.subr.bf16.mxu0 0
    %2983 = vmatpush1.bf16.msra.mxu0 0
    %2984 = vmatprep.subr.bf16.mxu0 0
    %2985 = vmatpush1.bf16.msra.mxu0 0
    %2986 = vmatprep.subr.bf16.mxu0 0
    %2987 = vmatpush1.bf16.msra.mxu0 0
    %2988 = vmatprep.subr.bf16.mxu0 0
    %2989 = vmatpush1.bf16.msra.mxu0 0
    %2990 = vmatprep.subr.bf16.mxu0 0
    %2991 = vmatpush1.bf16.msra.mxu0 0
    %2992 = vmatprep.subr.bf16.mxu0 %v2128
    %2993 = vmatpush1.bf16.msra.mxu0 %v2127
    %2994 = vmatprep.subr.bf16.mxu0 0
    %2995 = vmatpush2.bf16.msra.mxu0 0
    %2996 = vmatprep.subr.bf16.mxu0 0
    %2997 = vmatpush2.bf16.msra.mxu0 0
    %2998 = vmatprep.subr.bf16.mxu0 0
    %2999 = vmatpush2.bf16.msra.mxu0 0
    %3000 = vmatprep.subr.bf16.mxu0 0
    %3001 = vmatpush2.bf16.msra.mxu0 0
    %3002 = vmatprep.subr.bf16.mxu0 0
    %3003 = vmatpush2.bf16.msra.mxu0 0
    %3004 = vmatprep.subr.bf16.mxu0 0
    %3005 = vmatpush2.bf16.msra.mxu0 0
    %3006 = vmatprep.subr.bf16.mxu0 0
    %3007 = vmatpush2.bf16.msra.mxu0 0
    %3008 = vmatprep.subr.bf16.mxu0 0
    %3009 = vmatpush2.bf16.msra.mxu0 0
    %3010 = vmatprep.mubr.bf16.mxu0 0
    %3011 = vmatmul.mubr.bf16.gmra.mxu0 %v2525
    %v3012 = vpop.f32.mrf.mxu0
    %v3013 = vadd.f32 %v2972, %v3012
    %v3014 = vpop.f32.mrf.mxu0
    %v3015 = vadd.f32 %v2974, %v3014
    %v3016 = vpop.f32.mrf.mxu0
    %v3017 = vpop.f32.mrf.mxu0
    %3018 = vdwg.mxu0
    %3019 = vmatprep.subr.bf16.mxu0 %v1802
    %3020 = vmatpush1.bf16.msra.mxu0 %v1801
    %3021 = vmatprep.subr.bf16.mxu0 %v1794
    %3022 = vmatpush1.bf16.msra.mxu0 %v1793
    %3023 = vmatprep.subr.bf16.mxu0 %v1786
    %3024 = vmatpush1.bf16.msra.mxu0 %v1785
    %3025 = vmatprep.subr.bf16.mxu0 %v1778
    %3026 = vmatpush1.bf16.msra.mxu0 %v1777
    %3027 = vmatprep.subr.bf16.mxu0 %v1770
    %3028 = vmatpush1.bf16.msra.mxu0 %v1769
    %3029 = vmatprep.subr.bf16.mxu0 %v1762
    %3030 = vmatpush1.bf16.msra.mxu0 %v1761
    %3031 = vmatprep.subr.bf16.mxu0 %v1754
    %3032 = vmatpush1.bf16.msra.mxu0 %v1753
    %3033 = vmatprep.subr.bf16.mxu0 %v1746
    %3034 = vmatpush1.bf16.msra.mxu0 %v1745
    %3035 = vmatprep.subr.bf16.mxu0 %v1866
    %3036 = vmatpush2.bf16.msra.mxu0 %v1865
    %3037 = vmatprep.subr.bf16.mxu0 %v1858
    %3038 = vmatpush2.bf16.msra.mxu0 %v1857
    %3039 = vmatprep.subr.bf16.mxu0 %v1850
    %3040 = vmatpush2.bf16.msra.mxu0 %v1849
    %3041 = vmatprep.subr.bf16.mxu0 %v1842
    %3042 = vmatpush2.bf16.msra.mxu0 %v1841
    %3043 = vmatprep.subr.bf16.mxu0 %v1834
    %3044 = vmatpush2.bf16.msra.mxu0 %v1833
    %3045 = vmatprep.subr.bf16.mxu0 %v1826
    %3046 = vmatpush2.bf16.msra.mxu0 %v1825
    %3047 = vmatprep.subr.bf16.mxu0 %v1818
    %3048 = vmatpush2.bf16.msra.mxu0 %v1817
    %3049 = vmatprep.subr.bf16.mxu0 %v1810
    %3050 = vmatpush2.bf16.msra.mxu0 %v1809
    %3051 = vmatprep.mubr.bf16.mxu0 %v123
    %3052 = vmatmul.mubr.bf16.gmra.mxu0 %v122
    %v3053 = vpop.f32.mrf.mxu0
    %v3054 = vadd.f32 %v550, %v3053
    %v3055 = vpop.f32.mrf.mxu0
    %v3056 = vadd.f32 %v554, %v3055
    %v3057 = vpop.f32.mrf.mxu0
    %v3058 = vpop.f32.mrf.mxu0
    %3059 = vdwg.mxu0
    %3060 = vmatprep.subr.bf16.mxu0 %v1930
    %3061 = vmatpush1.bf16.msra.mxu0 %v1929
    %3062 = vmatprep.subr.bf16.mxu0 %v1922
    %3063 = vmatpush1.bf16.msra.mxu0 %v1921
    %3064 = vmatprep.subr.bf16.mxu0 %v1914
    %3065 = vmatpush1.bf16.msra.mxu0 %v1913
    %3066 = vmatprep.subr.bf16.mxu0 %v1906
    %3067 = vmatpush1.bf16.msra.mxu0 %v1905
    %3068 = vmatprep.subr.bf16.mxu0 %v1898
    %3069 = vmatpush1.bf16.msra.mxu0 %v1897
    %3070 = vmatprep.subr.bf16.mxu0 %v1890
    %3071 = vmatpush1.bf16.msra.mxu0 %v1889
    %3072 = vmatprep.subr.bf16.mxu0 %v1882
    %3073 = vmatpush1.bf16.msra.mxu0 %v1881
    %3074 = vmatprep.subr.bf16.mxu0 %v1874
    %3075 = vmatpush1.bf16.msra.mxu0 %v1873
    %3076 = vmatprep.subr.bf16.mxu0 %v1994
    %3077 = vmatpush2.bf16.msra.mxu0 %v1993
    %3078 = vmatprep.subr.bf16.mxu0 %v1986
    %3079 = vmatpush2.bf16.msra.mxu0 %v1985
    %3080 = vmatprep.subr.bf16.mxu0 %v1978
    %3081 = vmatpush2.bf16.msra.mxu0 %v1977
    %3082 = vmatprep.subr.bf16.mxu0 %v1970
    %3083 = vmatpush2.bf16.msra.mxu0 %v1969
    %3084 = vmatprep.subr.bf16.mxu0 %v1962
    %3085 = vmatpush2.bf16.msra.mxu0 %v1961
    %3086 = vmatprep.subr.bf16.mxu0 %v1954
    %3087 = vmatpush2.bf16.msra.mxu0 %v1953
    %3088 = vmatprep.subr.bf16.mxu0 %v1946
    %3089 = vmatpush2.bf16.msra.mxu0 %v1945
    %3090 = vmatprep.subr.bf16.mxu0 %v1938
    %3091 = vmatpush2.bf16.msra.mxu0 %v1937
    %3092 = vmatprep.mubr.bf16.mxu0 %v125
    %3093 = vmatmul.mubr.bf16.gmra.mxu0 %v124
    %v3094 = vpop.f32.mrf.mxu0
    %v3095 = vadd.f32 %v3054, %v3094
    %v3096 = vpop.f32.mrf.mxu0
    %v3097 = vadd.f32 %v3056, %v3096
    %v3098 = vpop.f32.mrf.mxu0
    %v3099 = vpop.f32.mrf.mxu0
    %3100 = vdwg.mxu0
    %3101 = vmatprep.subr.bf16.mxu0 %v2058
    %3102 = vmatpush1.bf16.msra.mxu0 %v2057
    %3103 = vmatprep.subr.bf16.mxu0 %v2050
    %3104 = vmatpush1.bf16.msra.mxu0 %v2049
    %3105 = vmatprep.subr.bf16.mxu0 %v2042
    %3106 = vmatpush1.bf16.msra.mxu0 %v2041
    %3107 = vmatprep.subr.bf16.mxu0 %v2034
    %3108 = vmatpush1.bf16.msra.mxu0 %v2033
    %3109 = vmatprep.subr.bf16.mxu0 %v2026
    %3110 = vmatpush1.bf16.msra.mxu0 %v2025
    %3111 = vmatprep.subr.bf16.mxu0 %v2018
    %3112 = vmatpush1.bf16.msra.mxu0 %v2017
    %3113 = vmatprep.subr.bf16.mxu0 %v2010
    %3114 = vmatpush1.bf16.msra.mxu0 %v2009
    %3115 = vmatprep.subr.bf16.mxu0 %v2002
    %3116 = vmatpush1.bf16.msra.mxu0 %v2001
    %3117 = vmatprep.subr.bf16.mxu0 %v2122
    %3118 = vmatpush2.bf16.msra.mxu0 %v2121
    %3119 = vmatprep.subr.bf16.mxu0 %v2114
    %3120 = vmatpush2.bf16.msra.mxu0 %v2113
    %3121 = vmatprep.subr.bf16.mxu0 %v2106
    %3122 = vmatpush2.bf16.msra.mxu0 %v2105
    %3123 = vmatprep.subr.bf16.mxu0 %v2098
    %3124 = vmatpush2.bf16.msra.mxu0 %v2097
    %3125 = vmatprep.subr.bf16.mxu0 %v2090
    %3126 = vmatpush2.bf16.msra.mxu0 %v2089
    %3127 = vmatprep.subr.bf16.mxu0 %v2082
    %3128 = vmatpush2.bf16.msra.mxu0 %v2081
    %3129 = vmatprep.subr.bf16.mxu0 %v2074
    %3130 = vmatpush2.bf16.msra.mxu0 %v2073
    %3131 = vmatprep.subr.bf16.mxu0 %v2066
    %3132 = vmatpush2.bf16.msra.mxu0 %v2065
    %3133 = vmatprep.mubr.bf16.mxu0 %v127
    %3134 = vmatmul.mubr.bf16.gmra.mxu0 %v126
    %v3135 = vpop.f32.mrf.mxu0
    %v3136 = vadd.f32 %v3095, %v3135
    %v3137 = vpop.f32.mrf.mxu0
    %v3138 = vadd.f32 %v3097, %v3137
    %v3139 = vpop.f32.mrf.mxu0
    %v3140 = vpop.f32.mrf.mxu0
    %3141 = vdwg.mxu0
    %3142 = vmatprep.subr.bf16.mxu0 0
    %3143 = vmatpush1.bf16.msra.mxu0 0
    %3144 = vmatprep.subr.bf16.mxu0 0
    %3145 = vmatpush1.bf16.msra.mxu0 0
    %3146 = vmatprep.subr.bf16.mxu0 0
    %3147 = vmatpush1.bf16.msra.mxu0 0
    %3148 = vmatprep.subr.bf16.mxu0 0
    %3149 = vmatpush1.bf16.msra.mxu0 0
    %3150 = vmatprep.subr.bf16.mxu0 0
    %3151 = vmatpush1.bf16.msra.mxu0 0
    %3152 = vmatprep.subr.bf16.mxu0 0
    %3153 = vmatpush1.bf16.msra.mxu0 0
    %3154 = vmatprep.subr.bf16.mxu0 0
    %3155 = vmatpush1.bf16.msra.mxu0 0
    %3156 = vmatprep.subr.bf16.mxu0 %v2130
    %3157 = vmatpush1.bf16.msra.mxu0 %v2129
    %3158 = vmatprep.subr.bf16.mxu0 0
    %3159 = vmatpush2.bf16.msra.mxu0 0
    %3160 = vmatprep.subr.bf16.mxu0 0
    %3161 = vmatpush2.bf16.msra.mxu0 0
    %3162 = vmatprep.subr.bf16.mxu0 0
    %3163 = vmatpush2.bf16.msra.mxu0 0
    %3164 = vmatprep.subr.bf16.mxu0 0
    %3165 = vmatpush2.bf16.msra.mxu0 0
    %3166 = vmatprep.subr.bf16.mxu0 0
    %3167 = vmatpush2.bf16.msra.mxu0 0
    %3168 = vmatprep.subr.bf16.mxu0 0
    %3169 = vmatpush2.bf16.msra.mxu0 0
    %3170 = vmatprep.subr.bf16.mxu0 0
    %3171 = vmatpush2.bf16.msra.mxu0 0
    %3172 = vmatprep.subr.bf16.mxu0 0
    %3173 = vmatpush2.bf16.msra.mxu0 0
    %3174 = vmatprep.mubr.bf16.mxu0 0
    %3175 = vmatmul.mubr.bf16.gmra.mxu0 %v2525
    %v3176 = vpop.f32.mrf.mxu0
    %v3177 = vadd.f32 %v3136, %v3176
    %v3178 = vpop.f32.mrf.mxu0
    %v3179 = vadd.f32 %v3138, %v3178
    %v3180 = vpop.f32.mrf.mxu0
    %v3181 = vpop.f32.mrf.mxu0
    %3182 = vdwg.mxu0
    %v3183 = vmax.f32 %v2685, 0.0
    %v3184 = vmax.f32 %v2687, 0.0
    %v3185 = vmax.f32 %v2849, 0.0
    %v3186 = vmax.f32 %v2851, 0.0
    %v3187 = vmax.f32 %v3013, 0.0
    %v3188 = vmax.f32 %v3015, 0.0
    %v3189 = vmax.f32 %v3177, 0.0
    %v3190 = vmax.f32 %v3179, 0.0
    %v3191 = vpack.c.bf16 %v3183, %v3183
    %v3192 = vpack.c.bf16 %v3184, %v3184
    %v3193 = vpack.c.bf16 %v3185, %v3185
    %v3194 = vpack.c.bf16 %v3186, %v3186
    %v3195 = vpack.c.bf16 %v3187, %v3187
    %v3196 = vpack.c.bf16 %v3188, %v3188
    %v3197 = vpack.c.bf16 %v3189, %v3189
    %v3198 = vpack.c.bf16 %v3190, %v3190
    %v3199 = vld [vmem:[#allocation8] sm:$0xff]
    %v3200 = vld [vmem:[#allocation8 + $0x8] sm:$0xff]
    %v3201 = vld [vmem:[#allocation8 + $0x10] sm:$0xff]
    %v3202 = vld [vmem:[#allocation8 + $0x18] sm:$0xff]
    %v3203 = vld [vmem:[#allocation8 + $0x20] sm:$0xff]
    %v3204 = vld [vmem:[#allocation8 + $0x28] sm:$0xff]
    %v3205 = vld [vmem:[#allocation8 + $0x30] sm:$0xff]
    %v3206 = vld [vmem:[#allocation8 + $0x38] sm:$0xff]
    %v3207 = vld [vmem:[#allocation8 + $0x40] sm:$0xff]
    %v3208 = vld [vmem:[#allocation8 + $0x48] sm:$0xff]
    %v3209 = vld [vmem:[#allocation8 + $0x50] sm:$0xff]
    %v3210 = vld [vmem:[#allocation8 + $0x58] sm:$0xff]
    %v3211 = vld [vmem:[#allocation8 + $0x60] sm:$0xff]
    %v3212 = vld [vmem:[#allocation8 + $0x68] sm:$0xff]
    %v3213 = vld [vmem:[#allocation8 + $0x70] sm:$0xff]
    %v3214 = vld [vmem:[#allocation8 + $0x78] sm:$0xff]
    %v3215 = vld [vmem:[#allocation8 + $0x80] sm:$0xff]
    %v3216 = vld [vmem:[#allocation8 + $0x88] sm:$0xff]
    %v3217 = vld [vmem:[#allocation8 + $0x90] sm:$0xff]
    %v3218 = vld [vmem:[#allocation8 + $0x98] sm:$0xff]
    %v3219 = vld [vmem:[#allocation8 + $0xa0] sm:$0xff]
    %v3220 = vld [vmem:[#allocation8 + $0xa8] sm:$0xff]
    %v3221 = vld [vmem:[#allocation8 + $0xb0] sm:$0xff]
    %v3222 = vld [vmem:[#allocation8 + $0xb8] sm:$0xff]
    %v3223 = vld [vmem:[#allocation8 + $0xc0] sm:$0xff]
    %v3224 = vld [vmem:[#allocation8 + $0xc8] sm:$0xff]
    %v3225 = vld [vmem:[#allocation8 + $0xd0] sm:$0xff]
    %v3226 = vld [vmem:[#allocation8 + $0xd8] sm:$0xff]
    %v3227 = vld [vmem:[#allocation8 + $0xe0] sm:$0xff]
    %v3228 = vld [vmem:[#allocation8 + $0xe8] sm:$0xff]
    %v3229 = vld [vmem:[#allocation8 + $0xf0] sm:$0xff]
    %v3230 = vld [vmem:[#allocation8 + $0xf8] sm:$0xff]
    %v3231 = vld [vmem:[#allocation8 + $0x100] sm:$0xff]
    %v3232 = vld [vmem:[#allocation8 + $0x108] sm:$0xff]
    %v3233 = vld [vmem:[#allocation8 + $0x110] sm:$0xff]
    %v3234 = vld [vmem:[#allocation8 + $0x118] sm:$0xff]
    %v3235 = vld [vmem:[#allocation8 + $0x120] sm:$0xff]
    %v3236 = vld [vmem:[#allocation8 + $0x128] sm:$0xff]
    %v3237 = vld [vmem:[#allocation8 + $0x130] sm:$0xff]
    %v3238 = vld [vmem:[#allocation8 + $0x138] sm:$0xff]
    %v3239 = vld [vmem:[#allocation8 + $0x140] sm:$0xff]
    %v3240 = vld [vmem:[#allocation8 + $0x148] sm:$0xff]
    %v3241 = vld [vmem:[#allocation8 + $0x150] sm:$0xff]
    %v3242 = vld [vmem:[#allocation8 + $0x158] sm:$0xff]
    %v3243 = vld [vmem:[#allocation8 + $0x160] sm:$0xff]
    %v3244 = vld [vmem:[#allocation8 + $0x168] sm:$0xff]
    %v3245 = vld [vmem:[#allocation8 + $0x170] sm:$0xff]
    %v3246 = vld [vmem:[#allocation8 + $0x178] sm:$0xff]
    %v3247 = vld [vmem:[#allocation8 + $0x180] sm:$0xff]
    %v3248 = vld [vmem:[#allocation8 + $0x188] sm:$0xff]
    %v3249 = vld [vmem:[#allocation8 + $0x190] sm:$0xff]
    %v3250 = vld [vmem:[#allocation8 + $0x198] sm:$0xff]
    %v3251 = vld [vmem:[#allocation8 + $0x1a0] sm:$0xff]
    %v3252 = vld [vmem:[#allocation8 + $0x1a8] sm:$0xff]
    %v3253 = vld [vmem:[#allocation8 + $0x1b0] sm:$0xff]
    %v3254 = vld [vmem:[#allocation8 + $0x1b8] sm:$0xff]
    %v3255 = vld [vmem:[#allocation8 + $0x1c0] sm:$0xff]
    %v3256 = vld [vmem:[#allocation8 + $0x1c8] sm:$0xff]
    %v3257 = vld [vmem:[#allocation8 + $0x1d0] sm:$0xff]
    %v3258 = vld [vmem:[#allocation8 + $0x1d8] sm:$0xff]
    %v3259 = vld [vmem:[#allocation8 + $0x1e0] sm:$0xff]
    %v3260 = vld [vmem:[#allocation8 + $0x1e8] sm:$0xff]
    %v3261 = vld [vmem:[#allocation8 + $0x1f0] sm:$0xff]
    %v3262 = vld [vmem:[#allocation8 + $0x1f8] sm:$0xff]
    %v3263 = vld [vmem:[#allocation8 + $0x200] sm:$0xff]
    %v3264 = vld [vmem:[#allocation8 + $0x208] sm:$0xff]
    %v3265 = vld [vmem:[#allocation8 + $0x210] sm:$0xff]
    %v3266 = vld [vmem:[#allocation8 + $0x218] sm:$0xff]
    %v3267 = vld [vmem:[#allocation8 + $0x220] sm:$0xff]
    %v3268 = vld [vmem:[#allocation8 + $0x228] sm:$0xff]
    %v3269 = vld [vmem:[#allocation8 + $0x230] sm:$0xff]
    %v3270 = vld [vmem:[#allocation8 + $0x238] sm:$0xff]
    %v3271 = vld [vmem:[#allocation8 + $0x240] sm:$0xff]
    %v3272 = vld [vmem:[#allocation8 + $0x248] sm:$0xff]
    %v3273 = vld [vmem:[#allocation8 + $0x250] sm:$0xff]
    %v3274 = vld [vmem:[#allocation8 + $0x258] sm:$0xff]
    %v3275 = vld [vmem:[#allocation8 + $0x260] sm:$0xff]
    %v3276 = vld [vmem:[#allocation8 + $0x268] sm:$0xff]
    %v3277 = vld [vmem:[#allocation8 + $0x270] sm:$0xff]
    %v3278 = vld [vmem:[#allocation8 + $0x278] sm:$0xff]
    %v3279 = vld [vmem:[#allocation8 + $0x280] sm:$0xff]
    %v3280 = vld [vmem:[#allocation8 + $0x288] sm:$0xff]
    %v3281 = vld [vmem:[#allocation8 + $0x290] sm:$0xff]
    %v3282 = vld [vmem:[#allocation8 + $0x298] sm:$0xff]
    %v3283 = vld [vmem:[#allocation8 + $0x2a0] sm:$0xff]
    %v3284 = vld [vmem:[#allocation8 + $0x2a8] sm:$0xff]
    %v3285 = vld [vmem:[#allocation8 + $0x2b0] sm:$0xff]
    %v3286 = vld [vmem:[#allocation8 + $0x2b8] sm:$0xff]
    %v3287 = vld [vmem:[#allocation8 + $0x2c0] sm:$0xff]
    %v3288 = vld [vmem:[#allocation8 + $0x2c8] sm:$0xff]
    %v3289 = vld [vmem:[#allocation8 + $0x2d0] sm:$0xff]
    %v3290 = vld [vmem:[#allocation8 + $0x2d8] sm:$0xff]
    %v3291 = vld [vmem:[#allocation8 + $0x2e0] sm:$0xff]
    %v3292 = vld [vmem:[#allocation8 + $0x2e8] sm:$0xff]
    %v3293 = vld [vmem:[#allocation8 + $0x2f0] sm:$0xff]
    %v3294 = vld [vmem:[#allocation8 + $0x2f8] sm:$0xff]
    %v3295 = vld [vmem:[#allocation8 + $0x300] sm:$0xff]
    %v3296 = vld [vmem:[#allocation8 + $0x308] sm:$0xff]
    %v3297 = vld [vmem:[#allocation8 + $0x310] sm:$0xff]
    %v3298 = vld [vmem:[#allocation8 + $0x318] sm:$0xff]
    %v3299 = vld [vmem:[#allocation8 + $0x320] sm:$0xff]
    %v3300 = vld [vmem:[#allocation8 + $0x328] sm:$0xff]
    %v3301 = vld [vmem:[#allocation8 + $0x330] sm:$0xff]
    %v3302 = vld [vmem:[#allocation8 + $0x338] sm:$0xff]
    %v3303 = vld [vmem:[#allocation8 + $0x340] sm:$0xff]
    %v3304 = vld [vmem:[#allocation8 + $0x348] sm:$0xff]
    %v3305 = vld [vmem:[#allocation8 + $0x350] sm:$0xff]
    %v3306 = vld [vmem:[#allocation8 + $0x358] sm:$0xff]
    %v3307 = vld [vmem:[#allocation8 + $0x360] sm:$0xff]
    %v3308 = vld [vmem:[#allocation8 + $0x368] sm:$0xff]
    %v3309 = vld [vmem:[#allocation8 + $0x370] sm:$0xff]
    %v3310 = vld [vmem:[#allocation8 + $0x378] sm:$0xff]
    %v3311 = vld [vmem:[#allocation8 + $0x380] sm:$0xff]
    %v3312 = vld [vmem:[#allocation8 + $0x388] sm:$0xff]
    %v3313 = vld [vmem:[#allocation8 + $0x390] sm:$0xff]
    %v3314 = vld [vmem:[#allocation8 + $0x398] sm:$0xff]
    %v3315 = vld [vmem:[#allocation8 + $0x3a0] sm:$0xff]
    %v3316 = vld [vmem:[#allocation8 + $0x3a8] sm:$0xff]
    %v3317 = vld [vmem:[#allocation8 + $0x3b0] sm:$0xff]
    %v3318 = vld [vmem:[#allocation8 + $0x3b8] sm:$0xff]
    %v3319 = vld [vmem:[#allocation8 + $0x3c0] sm:$0xff]
    %v3320 = vld [vmem:[#allocation8 + $0x3c8] sm:$0xff]
    %v3321 = vld [vmem:[#allocation8 + $0x3d0] sm:$0xff]
    %v3322 = vld [vmem:[#allocation8 + $0x3d8] sm:$0xff]
    %v3323 = vld [vmem:[#allocation8 + $0x3e0] sm:$0xff]
    %v3324 = vld [vmem:[#allocation8 + $0x3e8] sm:$0xff]
    %v3325 = vld [vmem:[#allocation8 + $0x3f0] sm:$0xff]
    %v3326 = vld [vmem:[#allocation8 + $0x3f8] sm:$0xff]
    %v3327 = vld [vmem:[#allocation10] sm:$0x3]
    %v3329 = vlaneseq
    %v3330 = vshrl.u32 %v3329, 7
    %v3331 = vsub.s32 0, %v3330
    %v3332 = vrot.slane %v3327, %v3331
    %v3333 = vlaneseq
    %v3334 = vshrl.u32 %v3333, 7
    %v3335 = vsub.s32 1, %v3334
    %v3336 = vrot.slane %v3327, %v3335
    %v3467 = vunpack.c.l.b16 %v3199
    %v3468 = vunpack.c.h.b16 %v3199
    %v3469 = vunpack.c.l.b16 %v3200
    %v3470 = vunpack.c.h.b16 %v3200
    %v3471 = vunpack.c.l.b16 %v3201
    %v3472 = vunpack.c.h.b16 %v3201
    %v3473 = vunpack.c.l.b16 %v3202
    %v3474 = vunpack.c.h.b16 %v3202
    %v3475 = vunpack.c.l.b16 %v3203
    %v3476 = vunpack.c.h.b16 %v3203
    %v3477 = vunpack.c.l.b16 %v3204
    %v3478 = vunpack.c.h.b16 %v3204
    %v3479 = vunpack.c.l.b16 %v3205
    %v3480 = vunpack.c.h.b16 %v3205
    %v3481 = vunpack.c.l.b16 %v3206
    %v3482 = vunpack.c.h.b16 %v3206
    %v3483 = vunpack.c.l.b16 %v3207
    %v3484 = vunpack.c.h.b16 %v3207
    %v3485 = vunpack.c.l.b16 %v3208
    %v3486 = vunpack.c.h.b16 %v3208
    %v3487 = vunpack.c.l.b16 %v3209
    %v3488 = vunpack.c.h.b16 %v3209
    %v3489 = vunpack.c.l.b16 %v3210
    %v3490 = vunpack.c.h.b16 %v3210
    %v3491 = vunpack.c.l.b16 %v3211
    %v3492 = vunpack.c.h.b16 %v3211
    %v3493 = vunpack.c.l.b16 %v3212
    %v3494 = vunpack.c.h.b16 %v3212
    %v3495 = vunpack.c.l.b16 %v3213
    %v3496 = vunpack.c.h.b16 %v3213
    %v3497 = vunpack.c.l.b16 %v3214
    %v3498 = vunpack.c.h.b16 %v3214
    %v3499 = vunpack.c.l.b16 %v3215
    %v3500 = vunpack.c.h.b16 %v3215
    %v3501 = vunpack.c.l.b16 %v3216
    %v3502 = vunpack.c.h.b16 %v3216
    %v3503 = vunpack.c.l.b16 %v3217
    %v3504 = vunpack.c.h.b16 %v3217
    %v3505 = vunpack.c.l.b16 %v3218
    %v3506 = vunpack.c.h.b16 %v3218
    %v3507 = vunpack.c.l.b16 %v3219
    %v3508 = vunpack.c.h.b16 %v3219
    %v3509 = vunpack.c.l.b16 %v3220
    %v3510 = vunpack.c.h.b16 %v3220
    %v3511 = vunpack.c.l.b16 %v3221
    %v3512 = vunpack.c.h.b16 %v3221
    %v3513 = vunpack.c.l.b16 %v3222
    %v3514 = vunpack.c.h.b16 %v3222
    %v3515 = vunpack.c.l.b16 %v3223
    %v3516 = vunpack.c.h.b16 %v3223
    %v3517 = vunpack.c.l.b16 %v3224
    %v3518 = vunpack.c.h.b16 %v3224
    %v3519 = vunpack.c.l.b16 %v3225
    %v3520 = vunpack.c.h.b16 %v3225
    %v3521 = vunpack.c.l.b16 %v3226
    %v3522 = vunpack.c.h.b16 %v3226
    %v3523 = vunpack.c.l.b16 %v3227
    %v3524 = vunpack.c.h.b16 %v3227
    %v3525 = vunpack.c.l.b16 %v3228
    %v3526 = vunpack.c.h.b16 %v3228
    %v3527 = vunpack.c.l.b16 %v3229
    %v3528 = vunpack.c.h.b16 %v3229
    %v3529 = vunpack.c.l.b16 %v3230
    %v3530 = vunpack.c.h.b16 %v3230
    %v3531 = vunpack.c.l.b16 %v3231
    %v3532 = vunpack.c.h.b16 %v3231
    %v3533 = vunpack.c.l.b16 %v3232
    %v3534 = vunpack.c.h.b16 %v3232
    %v3535 = vunpack.c.l.b16 %v3233
    %v3536 = vunpack.c.h.b16 %v3233
    %v3537 = vunpack.c.l.b16 %v3234
    %v3538 = vunpack.c.h.b16 %v3234
    %v3539 = vunpack.c.l.b16 %v3235
    %v3540 = vunpack.c.h.b16 %v3235
    %v3541 = vunpack.c.l.b16 %v3236
    %v3542 = vunpack.c.h.b16 %v3236
    %v3543 = vunpack.c.l.b16 %v3237
    %v3544 = vunpack.c.h.b16 %v3237
    %v3545 = vunpack.c.l.b16 %v3238
    %v3546 = vunpack.c.h.b16 %v3238
    %v3547 = vunpack.c.l.b16 %v3239
    %v3548 = vunpack.c.h.b16 %v3239
    %v3549 = vunpack.c.l.b16 %v3240
    %v3550 = vunpack.c.h.b16 %v3240
    %v3551 = vunpack.c.l.b16 %v3241
    %v3552 = vunpack.c.h.b16 %v3241
    %v3553 = vunpack.c.l.b16 %v3242
    %v3554 = vunpack.c.h.b16 %v3242
    %v3555 = vunpack.c.l.b16 %v3243
    %v3556 = vunpack.c.h.b16 %v3243
    %v3557 = vunpack.c.l.b16 %v3244
    %v3558 = vunpack.c.h.b16 %v3244
    %v3559 = vunpack.c.l.b16 %v3245
    %v3560 = vunpack.c.h.b16 %v3245
    %v3561 = vunpack.c.l.b16 %v3246
    %v3562 = vunpack.c.h.b16 %v3246
    %v3563 = vunpack.c.l.b16 %v3247
    %v3564 = vunpack.c.h.b16 %v3247
    %v3565 = vunpack.c.l.b16 %v3248
    %v3566 = vunpack.c.h.b16 %v3248
    %v3567 = vunpack.c.l.b16 %v3249
    %v3568 = vunpack.c.h.b16 %v3249
    %v3569 = vunpack.c.l.b16 %v3250
    %v3570 = vunpack.c.h.b16 %v3250
    %v3571 = vunpack.c.l.b16 %v3251
    %v3572 = vunpack.c.h.b16 %v3251
    %v3573 = vunpack.c.l.b16 %v3252
    %v3574 = vunpack.c.h.b16 %v3252
    %v3575 = vunpack.c.l.b16 %v3253
    %v3576 = vunpack.c.h.b16 %v3253
    %v3577 = vunpack.c.l.b16 %v3254
    %v3578 = vunpack.c.h.b16 %v3254
    %v3579 = vunpack.c.l.b16 %v3255
    %v3580 = vunpack.c.h.b16 %v3255
    %v3581 = vunpack.c.l.b16 %v3256
    %v3582 = vunpack.c.h.b16 %v3256
    %v3583 = vunpack.c.l.b16 %v3257
    %v3584 = vunpack.c.h.b16 %v3257
    %v3585 = vunpack.c.l.b16 %v3258
    %v3586 = vunpack.c.h.b16 %v3258
    %v3587 = vunpack.c.l.b16 %v3259
    %v3588 = vunpack.c.h.b16 %v3259
    %v3589 = vunpack.c.l.b16 %v3260
    %v3590 = vunpack.c.h.b16 %v3260
    %v3591 = vunpack.c.l.b16 %v3261
    %v3592 = vunpack.c.h.b16 %v3261
    %v3593 = vunpack.c.l.b16 %v3262
    %v3594 = vunpack.c.h.b16 %v3262
    %v3595 = vunpack.c.l.b16 %v3263
    %v3596 = vunpack.c.h.b16 %v3263
    %v3597 = vunpack.c.l.b16 %v3264
    %v3598 = vunpack.c.h.b16 %v3264
    %v3599 = vunpack.c.l.b16 %v3265
    %v3600 = vunpack.c.h.b16 %v3265
    %v3601 = vunpack.c.l.b16 %v3266
    %v3602 = vunpack.c.h.b16 %v3266
    %v3603 = vunpack.c.l.b16 %v3267
    %v3604 = vunpack.c.h.b16 %v3267
    %v3605 = vunpack.c.l.b16 %v3268
    %v3606 = vunpack.c.h.b16 %v3268
    %v3607 = vunpack.c.l.b16 %v3269
    %v3608 = vunpack.c.h.b16 %v3269
    %v3609 = vunpack.c.l.b16 %v3270
    %v3610 = vunpack.c.h.b16 %v3270
    %v3611 = vunpack.c.l.b16 %v3271
    %v3612 = vunpack.c.h.b16 %v3271
    %v3613 = vunpack.c.l.b16 %v3272
    %v3614 = vunpack.c.h.b16 %v3272
    %v3615 = vunpack.c.l.b16 %v3273
    %v3616 = vunpack.c.h.b16 %v3273
    %v3617 = vunpack.c.l.b16 %v3274
    %v3618 = vunpack.c.h.b16 %v3274
    %v3619 = vunpack.c.l.b16 %v3275
    %v3620 = vunpack.c.h.b16 %v3275
    %v3621 = vunpack.c.l.b16 %v3276
    %v3622 = vunpack.c.h.b16 %v3276
    %v3623 = vunpack.c.l.b16 %v3277
    %v3624 = vunpack.c.h.b16 %v3277
    %v3625 = vunpack.c.l.b16 %v3278
    %v3626 = vunpack.c.h.b16 %v3278
    %v3627 = vunpack.c.l.b16 %v3279
    %v3628 = vunpack.c.h.b16 %v3279
    %v3629 = vunpack.c.l.b16 %v3280
    %v3630 = vunpack.c.h.b16 %v3280
    %v3631 = vunpack.c.l.b16 %v3281
    %v3632 = vunpack.c.h.b16 %v3281
    %v3633 = vunpack.c.l.b16 %v3282
    %v3634 = vunpack.c.h.b16 %v3282
    %v3635 = vunpack.c.l.b16 %v3283
    %v3636 = vunpack.c.h.b16 %v3283
    %v3637 = vunpack.c.l.b16 %v3284
    %v3638 = vunpack.c.h.b16 %v3284
    %v3639 = vunpack.c.l.b16 %v3285
    %v3640 = vunpack.c.h.b16 %v3285
    %v3641 = vunpack.c.l.b16 %v3286
    %v3642 = vunpack.c.h.b16 %v3286
    %v3643 = vunpack.c.l.b16 %v3287
    %v3644 = vunpack.c.h.b16 %v3287
    %v3645 = vunpack.c.l.b16 %v3288
    %v3646 = vunpack.c.h.b16 %v3288
    %v3647 = vunpack.c.l.b16 %v3289
    %v3648 = vunpack.c.h.b16 %v3289
    %v3649 = vunpack.c.l.b16 %v3290
    %v3650 = vunpack.c.h.b16 %v3290
    %v3651 = vunpack.c.l.b16 %v3291
    %v3652 = vunpack.c.h.b16 %v3291
    %v3653 = vunpack.c.l.b16 %v3292
    %v3654 = vunpack.c.h.b16 %v3292
    %v3655 = vunpack.c.l.b16 %v3293
    %v3656 = vunpack.c.h.b16 %v3293
    %v3657 = vunpack.c.l.b16 %v3294
    %v3658 = vunpack.c.h.b16 %v3294
    %v3659 = vunpack.c.l.b16 %v3295
    %v3660 = vunpack.c.h.b16 %v3295
    %v3661 = vunpack.c.l.b16 %v3296
    %v3662 = vunpack.c.h.b16 %v3296
    %v3663 = vunpack.c.l.b16 %v3297
    %v3664 = vunpack.c.h.b16 %v3297
    %v3665 = vunpack.c.l.b16 %v3298
    %v3666 = vunpack.c.h.b16 %v3298
    %v3667 = vunpack.c.l.b16 %v3299
    %v3668 = vunpack.c.h.b16 %v3299
    %v3669 = vunpack.c.l.b16 %v3300
    %v3670 = vunpack.c.h.b16 %v3300
    %v3671 = vunpack.c.l.b16 %v3301
    %v3672 = vunpack.c.h.b16 %v3301
    %v3673 = vunpack.c.l.b16 %v3302
    %v3674 = vunpack.c.h.b16 %v3302
    %v3675 = vunpack.c.l.b16 %v3303
    %v3676 = vunpack.c.h.b16 %v3303
    %v3677 = vunpack.c.l.b16 %v3304
    %v3678 = vunpack.c.h.b16 %v3304
    %v3679 = vunpack.c.l.b16 %v3305
    %v3680 = vunpack.c.h.b16 %v3305
    %v3681 = vunpack.c.l.b16 %v3306
    %v3682 = vunpack.c.h.b16 %v3306
    %v3683 = vunpack.c.l.b16 %v3307
    %v3684 = vunpack.c.h.b16 %v3307
    %v3685 = vunpack.c.l.b16 %v3308
    %v3686 = vunpack.c.h.b16 %v3308
    %v3687 = vunpack.c.l.b16 %v3309
    %v3688 = vunpack.c.h.b16 %v3309
    %v3689 = vunpack.c.l.b16 %v3310
    %v3690 = vunpack.c.h.b16 %v3310
    %v3691 = vunpack.c.l.b16 %v3311
    %v3692 = vunpack.c.h.b16 %v3311
    %v3693 = vunpack.c.l.b16 %v3312
    %v3694 = vunpack.c.h.b16 %v3312
    %v3695 = vunpack.c.l.b16 %v3313
    %v3696 = vunpack.c.h.b16 %v3313
    %v3697 = vunpack.c.l.b16 %v3314
    %v3698 = vunpack.c.h.b16 %v3314
    %v3699 = vunpack.c.l.b16 %v3315
    %v3700 = vunpack.c.h.b16 %v3315
    %v3701 = vunpack.c.l.b16 %v3316
    %v3702 = vunpack.c.h.b16 %v3316
    %v3703 = vunpack.c.l.b16 %v3317
    %v3704 = vunpack.c.h.b16 %v3317
    %v3705 = vunpack.c.l.b16 %v3318
    %v3706 = vunpack.c.h.b16 %v3318
    %v3707 = vunpack.c.l.b16 %v3319
    %v3708 = vunpack.c.h.b16 %v3319
    %v3709 = vunpack.c.l.b16 %v3320
    %v3710 = vunpack.c.h.b16 %v3320
    %v3711 = vunpack.c.l.b16 %v3321
    %v3712 = vunpack.c.h.b16 %v3321
    %v3713 = vunpack.c.l.b16 %v3322
    %v3714 = vunpack.c.h.b16 %v3322
    %v3715 = vunpack.c.l.b16 %v3323
    %v3716 = vunpack.c.h.b16 %v3323
    %v3717 = vunpack.c.l.b16 %v3324
    %v3718 = vunpack.c.h.b16 %v3324
    %v3719 = vunpack.c.l.b16 %v3325
    %v3720 = vunpack.c.h.b16 %v3325
    %v3721 = vunpack.c.l.b16 %v3326
    %v3722 = vunpack.c.h.b16 %v3326
    %v3723 = vpack.c.b16 %v3469, %v3467
    %v3724 = vpack.c.b16 %v3470, %v3468
    %v3725 = vpack.c.b16 %v3473, %v3471
    %v3726 = vpack.c.b16 %v3474, %v3472
    %v3727 = vpack.c.b16 %v3477, %v3475
    %v3728 = vpack.c.b16 %v3478, %v3476
    %v3729 = vpack.c.b16 %v3481, %v3479
    %v3730 = vpack.c.b16 %v3482, %v3480
    %v3731 = vpack.c.b16 %v3485, %v3483
    %v3732 = vpack.c.b16 %v3486, %v3484
    %v3733 = vpack.c.b16 %v3489, %v3487
    %v3734 = vpack.c.b16 %v3490, %v3488
    %v3735 = vpack.c.b16 %v3493, %v3491
    %v3736 = vpack.c.b16 %v3494, %v3492
    %v3737 = vpack.c.b16 %v3497, %v3495
    %v3738 = vpack.c.b16 %v3498, %v3496
    %v3739 = vpack.c.b16 %v3501, %v3499
    %v3740 = vpack.c.b16 %v3502, %v3500
    %v3741 = vpack.c.b16 %v3505, %v3503
    %v3742 = vpack.c.b16 %v3506, %v3504
    %v3743 = vpack.c.b16 %v3509, %v3507
    %v3744 = vpack.c.b16 %v3510, %v3508
    %v3745 = vpack.c.b16 %v3513, %v3511
    %v3746 = vpack.c.b16 %v3514, %v3512
    %v3747 = vpack.c.b16 %v3517, %v3515
    %v3748 = vpack.c.b16 %v3518, %v3516
    %v3749 = vpack.c.b16 %v3521, %v3519
    %v3750 = vpack.c.b16 %v3522, %v3520
    %v3751 = vpack.c.b16 %v3525, %v3523
    %v3752 = vpack.c.b16 %v3526, %v3524
    %v3753 = vpack.c.b16 %v3529, %v3527
    %v3754 = vpack.c.b16 %v3530, %v3528
    %v3755 = vpack.c.b16 %v3533, %v3531
    %v3756 = vpack.c.b16 %v3534, %v3532
    %v3757 = vpack.c.b16 %v3537, %v3535
    %v3758 = vpack.c.b16 %v3538, %v3536
    %v3759 = vpack.c.b16 %v3541, %v3539
    %v3760 = vpack.c.b16 %v3542, %v3540
    %v3761 = vpack.c.b16 %v3545, %v3543
    %v3762 = vpack.c.b16 %v3546, %v3544
    %v3763 = vpack.c.b16 %v3549, %v3547
    %v3764 = vpack.c.b16 %v3550, %v3548
    %v3765 = vpack.c.b16 %v3553, %v3551
    %v3766 = vpack.c.b16 %v3554, %v3552
    %v3767 = vpack.c.b16 %v3557, %v3555
    %v3768 = vpack.c.b16 %v3558, %v3556
    %v3769 = vpack.c.b16 %v3561, %v3559
    %v3770 = vpack.c.b16 %v3562, %v3560
    %v3771 = vpack.c.b16 %v3565, %v3563
    %v3772 = vpack.c.b16 %v3566, %v3564
    %v3773 = vpack.c.b16 %v3569, %v3567
    %v3774 = vpack.c.b16 %v3570, %v3568
    %v3775 = vpack.c.b16 %v3573, %v3571
    %v3776 = vpack.c.b16 %v3574, %v3572
    %v3777 = vpack.c.b16 %v3577, %v3575
    %v3778 = vpack.c.b16 %v3578, %v3576
    %v3779 = vpack.c.b16 %v3581, %v3579
    %v3780 = vpack.c.b16 %v3582, %v3580
    %v3781 = vpack.c.b16 %v3585, %v3583
    %v3782 = vpack.c.b16 %v3586, %v3584
    %v3783 = vpack.c.b16 %v3589, %v3587
    %v3784 = vpack.c.b16 %v3590, %v3588
    %v3785 = vpack.c.b16 %v3593, %v3591
    %v3786 = vpack.c.b16 %v3594, %v3592
    %v3787 = vpack.c.b16 %v3597, %v3595
    %v3788 = vpack.c.b16 %v3598, %v3596
    %v3789 = vpack.c.b16 %v3601, %v3599
    %v3790 = vpack.c.b16 %v3602, %v3600
    %v3791 = vpack.c.b16 %v3605, %v3603
    %v3792 = vpack.c.b16 %v3606, %v3604
    %v3793 = vpack.c.b16 %v3609, %v3607
    %v3794 = vpack.c.b16 %v3610, %v3608
    %v3795 = vpack.c.b16 %v3613, %v3611
    %v3796 = vpack.c.b16 %v3614, %v3612
    %v3797 = vpack.c.b16 %v3617, %v3615
    %v3798 = vpack.c.b16 %v3618, %v3616
    %v3799 = vpack.c.b16 %v3621, %v3619
    %v3800 = vpack.c.b16 %v3622, %v3620
    %v3801 = vpack.c.b16 %v3625, %v3623
    %v3802 = vpack.c.b16 %v3626, %v3624
    %v3803 = vpack.c.b16 %v3629, %v3627
    %v3804 = vpack.c.b16 %v3630, %v3628
    %v3805 = vpack.c.b16 %v3633, %v3631
    %v3806 = vpack.c.b16 %v3634, %v3632
    %v3807 = vpack.c.b16 %v3637, %v3635
    %v3808 = vpack.c.b16 %v3638, %v3636
    %v3809 = vpack.c.b16 %v3641, %v3639
    %v3810 = vpack.c.b16 %v3642, %v3640
    %v3811 = vpack.c.b16 %v3645, %v3643
    %v3812 = vpack.c.b16 %v3646, %v3644
    %v3813 = vpack.c.b16 %v3649, %v3647
    %v3814 = vpack.c.b16 %v3650, %v3648
    %v3815 = vpack.c.b16 %v3653, %v3651
    %v3816 = vpack.c.b16 %v3654, %v3652
    %v3817 = vpack.c.b16 %v3657, %v3655
    %v3818 = vpack.c.b16 %v3658, %v3656
    %v3819 = vpack.c.b16 %v3661, %v3659
    %v3820 = vpack.c.b16 %v3662, %v3660
    %v3821 = vpack.c.b16 %v3665, %v3663
    %v3822 = vpack.c.b16 %v3666, %v3664
    %v3823 = vpack.c.b16 %v3669, %v3667
    %v3824 = vpack.c.b16 %v3670, %v3668
    %v3825 = vpack.c.b16 %v3673, %v3671
    %v3826 = vpack.c.b16 %v3674, %v3672
    %v3827 = vpack.c.b16 %v3677, %v3675
    %v3828 = vpack.c.b16 %v3678, %v3676
    %v3829 = vpack.c.b16 %v3681, %v3679
    %v3830 = vpack.c.b16 %v3682, %v3680
    %v3831 = vpack.c.b16 %v3685, %v3683
    %v3832 = vpack.c.b16 %v3686, %v3684
    %v3833 = vpack.c.b16 %v3689, %v3687
    %v3834 = vpack.c.b16 %v3690, %v3688
    %v3835 = vpack.c.b16 %v3693, %v3691
    %v3836 = vpack.c.b16 %v3694, %v3692
    %v3837 = vpack.c.b16 %v3697, %v3695
    %v3838 = vpack.c.b16 %v3698, %v3696
    %v3839 = vpack.c.b16 %v3701, %v3699
    %v3840 = vpack.c.b16 %v3702, %v3700
    %v3841 = vpack.c.b16 %v3705, %v3703
    %v3842 = vpack.c.b16 %v3706, %v3704
    %v3843 = vpack.c.b16 %v3709, %v3707
    %v3844 = vpack.c.b16 %v3710, %v3708
    %v3845 = vpack.c.b16 %v3713, %v3711
    %v3846 = vpack.c.b16 %v3714, %v3712
    %v3847 = vpack.c.b16 %v3717, %v3715
    %v3848 = vpack.c.b16 %v3718, %v3716
    %v3849 = vpack.c.b16 %v3721, %v3719
    %v3850 = vpack.c.b16 %v3722, %v3720
    %3979 = vmatprep.subr.bf16.mxu0 %v3738
    %3980 = vmatpush1.bf16.msra.mxu0 %v3737
    %3981 = vmatprep.subr.bf16.mxu0 %v3736
    %3982 = vmatpush1.bf16.msra.mxu0 %v3735
    %3983 = vmatprep.subr.bf16.mxu0 %v3734
    %3984 = vmatpush1.bf16.msra.mxu0 %v3733
    %3985 = vmatprep.subr.bf16.mxu0 %v3732
    %3986 = vmatpush1.bf16.msra.mxu0 %v3731
    %3987 = vmatprep.subr.bf16.mxu0 %v3730
    %3988 = vmatpush1.bf16.msra.mxu0 %v3729
    %3989 = vmatprep.subr.bf16.mxu0 %v3728
    %3990 = vmatpush1.bf16.msra.mxu0 %v3727
    %3991 = vmatprep.subr.bf16.mxu0 %v3726
    %3992 = vmatpush1.bf16.msra.mxu0 %v3725
    %3993 = vmatprep.subr.bf16.mxu0 %v3724
    %3994 = vmatpush1.bf16.msra.mxu0 %v3723
    %3995 = vmatprep.subr.bf16.mxu0 %v3754
    %3996 = vmatpush2.bf16.msra.mxu0 %v3753
    %3997 = vmatprep.subr.bf16.mxu0 %v3752
    %3998 = vmatpush2.bf16.msra.mxu0 %v3751
    %3999 = vmatprep.subr.bf16.mxu0 %v3750
    %4000 = vmatpush2.bf16.msra.mxu0 %v3749
    %4001 = vmatprep.subr.bf16.mxu0 %v3748
    %4002 = vmatpush2.bf16.msra.mxu0 %v3747
    %4003 = vmatprep.subr.bf16.mxu0 %v3746
    %4004 = vmatpush2.bf16.msra.mxu0 %v3745
    %4005 = vmatprep.subr.bf16.mxu0 %v3744
    %4006 = vmatpush2.bf16.msra.mxu0 %v3743
    %4007 = vmatprep.subr.bf16.mxu0 %v3742
    %4008 = vmatpush2.bf16.msra.mxu0 %v3741
    %4009 = vmatprep.subr.bf16.mxu0 %v3740
    %4010 = vmatpush2.bf16.msra.mxu0 %v3739
    %4011 = vmatprep.mubr.bf16.mxu0 %v3192
    %4012 = vmatmul.mubr.bf16.gmra.mxu0 %v3191
    %v4013 = vpop.f32.mrf.mxu0
    %v4014 = vadd.f32 %v3332, %v4013
    %v4015 = vpop.f32.mrf.mxu0
    %v4016 = vadd.f32 %v3336, %v4015
    %v4017 = vpop.f32.mrf.mxu0
    %v4018 = vpop.f32.mrf.mxu0
    %4019 = vdwg.mxu0
    %4020 = vmatprep.subr.bf16.mxu0 %v3770
    %4021 = vmatpush1.bf16.msra.mxu0 %v3769
    %4022 = vmatprep.subr.bf16.mxu0 %v3768
    %4023 = vmatpush1.bf16.msra.mxu0 %v3767
    %4024 = vmatprep.subr.bf16.mxu0 %v3766
    %4025 = vmatpush1.bf16.msra.mxu0 %v3765
    %4026 = vmatprep.subr.bf16.mxu0 %v3764
    %4027 = vmatpush1.bf16.msra.mxu0 %v3763
    %4028 = vmatprep.subr.bf16.mxu0 %v3762
    %4029 = vmatpush1.bf16.msra.mxu0 %v3761
    %4030 = vmatprep.subr.bf16.mxu0 %v3760
    %4031 = vmatpush1.bf16.msra.mxu0 %v3759
    %4032 = vmatprep.subr.bf16.mxu0 %v3758
    %4033 = vmatpush1.bf16.msra.mxu0 %v3757
    %4034 = vmatprep.subr.bf16.mxu0 %v3756
    %4035 = vmatpush1.bf16.msra.mxu0 %v3755
    %4036 = vmatprep.subr.bf16.mxu0 %v3786
    %4037 = vmatpush2.bf16.msra.mxu0 %v3785
    %4038 = vmatprep.subr.bf16.mxu0 %v3784
    %4039 = vmatpush2.bf16.msra.mxu0 %v3783
    %4040 = vmatprep.subr.bf16.mxu0 %v3782
    %4041 = vmatpush2.bf16.msra.mxu0 %v3781
    %4042 = vmatprep.subr.bf16.mxu0 %v3780
    %4043 = vmatpush2.bf16.msra.mxu0 %v3779
    %4044 = vmatprep.subr.bf16.mxu0 %v3778
    %4045 = vmatpush2.bf16.msra.mxu0 %v3777
    %4046 = vmatprep.subr.bf16.mxu0 %v3776
    %4047 = vmatpush2.bf16.msra.mxu0 %v3775
    %4048 = vmatprep.subr.bf16.mxu0 %v3774
    %4049 = vmatpush2.bf16.msra.mxu0 %v3773
    %4050 = vmatprep.subr.bf16.mxu0 %v3772
    %4051 = vmatpush2.bf16.msra.mxu0 %v3771
    %4052 = vmatprep.mubr.bf16.mxu0 %v3194
    %4053 = vmatmul.mubr.bf16.gmra.mxu0 %v3193
    %v4054 = vpop.f32.mrf.mxu0
    %v4055 = vadd.f32 %v4014, %v4054
    %v4056 = vpop.f32.mrf.mxu0
    %v4057 = vadd.f32 %v4016, %v4056
    %v4058 = vpop.f32.mrf.mxu0
    %v4059 = vpop.f32.mrf.mxu0
    %4060 = vdwg.mxu0
    %4061 = vmatprep.subr.bf16.mxu0 %v3802
    %4062 = vmatpush1.bf16.msra.mxu0 %v3801
    %4063 = vmatprep.subr.bf16.mxu0 %v3800
    %4064 = vmatpush1.bf16.msra.mxu0 %v3799
    %4065 = vmatprep.subr.bf16.mxu0 %v3798
    %4066 = vmatpush1.bf16.msra.mxu0 %v3797
    %4067 = vmatprep.subr.bf16.mxu0 %v3796
    %4068 = vmatpush1.bf16.msra.mxu0 %v3795
    %4069 = vmatprep.subr.bf16.mxu0 %v3794
    %4070 = vmatpush1.bf16.msra.mxu0 %v3793
    %4071 = vmatprep.subr.bf16.mxu0 %v3792
    %4072 = vmatpush1.bf16.msra.mxu0 %v3791
    %4073 = vmatprep.subr.bf16.mxu0 %v3790
    %4074 = vmatpush1.bf16.msra.mxu0 %v3789
    %4075 = vmatprep.subr.bf16.mxu0 %v3788
    %4076 = vmatpush1.bf16.msra.mxu0 %v3787
    %4077 = vmatprep.subr.bf16.mxu0 %v3818
    %4078 = vmatpush2.bf16.msra.mxu0 %v3817
    %4079 = vmatprep.subr.bf16.mxu0 %v3816
    %4080 = vmatpush2.bf16.msra.mxu0 %v3815
    %4081 = vmatprep.subr.bf16.mxu0 %v3814
    %4082 = vmatpush2.bf16.msra.mxu0 %v3813
    %4083 = vmatprep.subr.bf16.mxu0 %v3812
    %4084 = vmatpush2.bf16.msra.mxu0 %v3811
    %4085 = vmatprep.subr.bf16.mxu0 %v3810
    %4086 = vmatpush2.bf16.msra.mxu0 %v3809
    %4087 = vmatprep.subr.bf16.mxu0 %v3808
    %4088 = vmatpush2.bf16.msra.mxu0 %v3807
    %4089 = vmatprep.subr.bf16.mxu0 %v3806
    %4090 = vmatpush2.bf16.msra.mxu0 %v3805
    %4091 = vmatprep.subr.bf16.mxu0 %v3804
    %4092 = vmatpush2.bf16.msra.mxu0 %v3803
    %4093 = vmatprep.mubr.bf16.mxu0 %v3196
    %4094 = vmatmul.mubr.bf16.gmra.mxu0 %v3195
    %v4095 = vpop.f32.mrf.mxu0
    %v4096 = vadd.f32 %v4055, %v4095
    %v4097 = vpop.f32.mrf.mxu0
    %v4098 = vadd.f32 %v4057, %v4097
    %v4099 = vpop.f32.mrf.mxu0
    %v4100 = vpop.f32.mrf.mxu0
    %4101 = vdwg.mxu0
    %4102 = vmatprep.subr.bf16.mxu0 %v3834
    %4103 = vmatpush1.bf16.msra.mxu0 %v3833
    %4104 = vmatprep.subr.bf16.mxu0 %v3832
    %4105 = vmatpush1.bf16.msra.mxu0 %v3831
    %4106 = vmatprep.subr.bf16.mxu0 %v3830
    %4107 = vmatpush1.bf16.msra.mxu0 %v3829
    %4108 = vmatprep.subr.bf16.mxu0 %v3828
    %4109 = vmatpush1.bf16.msra.mxu0 %v3827
    %4110 = vmatprep.subr.bf16.mxu0 %v3826
    %4111 = vmatpush1.bf16.msra.mxu0 %v3825
    %4112 = vmatprep.subr.bf16.mxu0 %v3824
    %4113 = vmatpush1.bf16.msra.mxu0 %v3823
    %4114 = vmatprep.subr.bf16.mxu0 %v3822
    %4115 = vmatpush1.bf16.msra.mxu0 %v3821
    %4116 = vmatprep.subr.bf16.mxu0 %v3820
    %4117 = vmatpush1.bf16.msra.mxu0 %v3819
    %4118 = vmatprep.subr.bf16.mxu0 %v3850
    %4119 = vmatpush2.bf16.msra.mxu0 %v3849
    %4120 = vmatprep.subr.bf16.mxu0 %v3848
    %4121 = vmatpush2.bf16.msra.mxu0 %v3847
    %4122 = vmatprep.subr.bf16.mxu0 %v3846
    %4123 = vmatpush2.bf16.msra.mxu0 %v3845
    %4124 = vmatprep.subr.bf16.mxu0 %v3844
    %4125 = vmatpush2.bf16.msra.mxu0 %v3843
    %4126 = vmatprep.subr.bf16.mxu0 %v3842
    %4127 = vmatpush2.bf16.msra.mxu0 %v3841
    %4128 = vmatprep.subr.bf16.mxu0 %v3840
    %4129 = vmatpush2.bf16.msra.mxu0 %v3839
    %4130 = vmatprep.subr.bf16.mxu0 %v3838
    %4131 = vmatpush2.bf16.msra.mxu0 %v3837
    %4132 = vmatprep.subr.bf16.mxu0 %v3836
    %4133 = vmatpush2.bf16.msra.mxu0 %v3835
    %4134 = vmatprep.mubr.bf16.mxu0 %v3198
    %4135 = vmatmul.mubr.bf16.gmra.mxu0 %v3197
    %v4136 = vpop.f32.mrf.mxu0
    %v4137 = vadd.f32 %v4096, %v4136
    %v4138 = vpop.f32.mrf.mxu0
    %v4139 = vadd.f32 %v4098, %v4138
    %v4140 = vpop.f32.mrf.mxu0
    %v4141 = vpop.f32.mrf.mxu0
    %4142 = vdwg.mxu0
    %v4143 = vmax.f32 %v4137, 0.0
    %v4144 = vmax.f32 %v4139, 0.0
    %v4145 = vpack.c.bf16 %v4143, %v4143
    %v4146 = vpack.c.bf16 %v4144, %v4144
    %v4147 = vld [vmem:[#allocation11] sm:$0xf]
    %v4148 = vld [vmem:[#allocation11 + $0x4] sm:$0xf]
    %v4149 = vld [vmem:[#allocation11 + $0x8] sm:$0xf]
    %v4150 = vld [vmem:[#allocation11 + $0xc] sm:$0xf]
    %v4151 = vld [vmem:[#allocation11 + $0x10] sm:$0xf]
    %v4152 = vld [vmem:[#allocation11 + $0x14] sm:$0xf]
    %v4153 = vld [vmem:[#allocation11 + $0x18] sm:$0xf]
    %v4154 = vld [vmem:[#allocation11 + $0x1c] sm:$0xf]
    %v4155 = vld [vmem:[#allocation11 + $0x20] sm:$0xf]
    %v4156 = vld [vmem:[#allocation11 + $0x24] sm:$0xf]
    %v4157 = vld [vmem:[#allocation11 + $0x28] sm:$0xf]
    %v4158 = vld [vmem:[#allocation11 + $0x2c] sm:$0xf]
    %v4159 = vld [vmem:[#allocation11 + $0x30] sm:$0xf]
    %v4160 = vld [vmem:[#allocation11 + $0x34] sm:$0xf]
    %v4161 = vld [vmem:[#allocation11 + $0x38] sm:$0xf]
    %v4162 = vld [vmem:[#allocation11 + $0x3c] sm:$0xf]
    %v4163 = vld [vmem:[#allocation11 + $0x40] sm:$0xf]
    %v4164 = vld [vmem:[#allocation11 + $0x44] sm:$0xf]
    %v4165 = vld [vmem:[#allocation11 + $0x48] sm:$0xf]
    %v4166 = vld [vmem:[#allocation11 + $0x4c] sm:$0xf]
    %v4167 = vld [vmem:[#allocation11 + $0x50] sm:$0xf]
    %v4168 = vld [vmem:[#allocation11 + $0x54] sm:$0xf]
    %v4169 = vld [vmem:[#allocation11 + $0x58] sm:$0xf]
    %v4170 = vld [vmem:[#allocation11 + $0x5c] sm:$0xf]
    %v4171 = vld [vmem:[#allocation11 + $0x60] sm:$0xf]
    %v4172 = vld [vmem:[#allocation11 + $0x64] sm:$0xf]
    %v4173 = vld [vmem:[#allocation11 + $0x68] sm:$0xf]
    %v4174 = vld [vmem:[#allocation11 + $0x6c] sm:$0xf]
    %v4175 = vld [vmem:[#allocation11 + $0x70] sm:$0xf]
    %v4176 = vld [vmem:[#allocation11 + $0x74] sm:$0xf]
    %v4177 = vld [vmem:[#allocation11 + $0x78] sm:$0xf]
    %v4178 = vld [vmem:[#allocation11 + $0x7c] sm:$0xf]
    %v4179 = vld [vmem:[#allocation13] sm:$0x1]
    %v4181 = vlaneseq
    %v4182 = vshrl.u32 %v4181, 7
    %v4183 = vsub.s32 0, %v4182
    %v4184 = vrot.slane %v4179, %v4183
    %v4218 = vunpack.c.l.b16 %v4147
    %v4219 = vunpack.c.l.b16 %v4148
    %v4220 = vunpack.c.l.b16 %v4149
    %v4221 = vunpack.c.l.b16 %v4150
    %v4222 = vunpack.c.l.b16 %v4151
    %v4223 = vunpack.c.l.b16 %v4152
    %v4224 = vunpack.c.l.b16 %v4153
    %v4225 = vunpack.c.l.b16 %v4154
    %v4226 = vunpack.c.l.b16 %v4155
    %v4227 = vunpack.c.l.b16 %v4156
    %v4228 = vunpack.c.l.b16 %v4157
    %v4229 = vunpack.c.l.b16 %v4158
    %v4230 = vunpack.c.l.b16 %v4159
    %v4231 = vunpack.c.l.b16 %v4160
    %v4232 = vunpack.c.l.b16 %v4161
    %v4233 = vunpack.c.l.b16 %v4162
    %v4234 = vunpack.c.l.b16 %v4163
    %v4235 = vunpack.c.l.b16 %v4164
    %v4236 = vunpack.c.l.b16 %v4165
    %v4237 = vunpack.c.l.b16 %v4166
    %v4238 = vunpack.c.l.b16 %v4167
    %v4239 = vunpack.c.l.b16 %v4168
    %v4240 = vunpack.c.l.b16 %v4169
    %v4241 = vunpack.c.l.b16 %v4170
    %v4242 = vunpack.c.l.b16 %v4171
    %v4243 = vunpack.c.l.b16 %v4172
    %v4244 = vunpack.c.l.b16 %v4173
    %v4245 = vunpack.c.l.b16 %v4174
    %v4246 = vunpack.c.l.b16 %v4175
    %v4247 = vunpack.c.l.b16 %v4176
    %v4248 = vunpack.c.l.b16 %v4177
    %v4249 = vunpack.c.l.b16 %v4178
    %v4250 = vpack.c.b16 %v4219, %v4218
    %v4251 = vpack.c.b16 %v4221, %v4220
    %v4252 = vpack.c.b16 %v4223, %v4222
    %v4253 = vpack.c.b16 %v4225, %v4224
    %v4254 = vpack.c.b16 %v4227, %v4226
    %v4255 = vpack.c.b16 %v4229, %v4228
    %v4256 = vpack.c.b16 %v4231, %v4230
    %v4257 = vpack.c.b16 %v4233, %v4232
    %v4258 = vpack.c.b16 %v4235, %v4234
    %v4259 = vpack.c.b16 %v4237, %v4236
    %v4260 = vpack.c.b16 %v4239, %v4238
    %v4261 = vpack.c.b16 %v4241, %v4240
    %v4262 = vpack.c.b16 %v4243, %v4242
    %v4263 = vpack.c.b16 %v4245, %v4244
    %v4264 = vpack.c.b16 %v4247, %v4246
    %v4265 = vpack.c.b16 %v4249, %v4248
    %4282 = vmatprep.subr.bf16.mxu0 0
    %4283 = vmatpush1.bf16.msra.mxu0 %v4257
    %4284 = vmatprep.subr.bf16.mxu0 0
    %4285 = vmatpush1.bf16.msra.mxu0 %v4256
    %4286 = vmatprep.subr.bf16.mxu0 0
    %4287 = vmatpush1.bf16.msra.mxu0 %v4255
    %4288 = vmatprep.subr.bf16.mxu0 0
    %4289 = vmatpush1.bf16.msra.mxu0 %v4254
    %4290 = vmatprep.subr.bf16.mxu0 0
    %4291 = vmatpush1.bf16.msra.mxu0 %v4253
    %4292 = vmatprep.subr.bf16.mxu0 0
    %4293 = vmatpush1.bf16.msra.mxu0 %v4252
    %4294 = vmatprep.subr.bf16.mxu0 0
    %4295 = vmatpush1.bf16.msra.mxu0 %v4251
    %4296 = vmatprep.subr.bf16.mxu0 0
    %4297 = vmatpush1.bf16.msra.mxu0 %v4250
    %4298 = vmatprep.subr.bf16.mxu0 0
    %4299 = vmatpush2.bf16.msra.mxu0 %v4265
    %4300 = vmatprep.subr.bf16.mxu0 0
    %4301 = vmatpush2.bf16.msra.mxu0 %v4264
    %4302 = vmatprep.subr.bf16.mxu0 0
    %4303 = vmatpush2.bf16.msra.mxu0 %v4263
    %4304 = vmatprep.subr.bf16.mxu0 0
    %4305 = vmatpush2.bf16.msra.mxu0 %v4262
    %4306 = vmatprep.subr.bf16.mxu0 0
    %4307 = vmatpush2.bf16.msra.mxu0 %v4261
    %4308 = vmatprep.subr.bf16.mxu0 0
    %4309 = vmatpush2.bf16.msra.mxu0 %v4260
    %4310 = vmatprep.subr.bf16.mxu0 0
    %4311 = vmatpush2.bf16.msra.mxu0 %v4259
    %4312 = vmatprep.subr.bf16.mxu0 0
    %4313 = vmatpush2.bf16.msra.mxu0 %v4258
    %4314 = vmatprep.mubr.bf16.mxu0 %v4146
    %4315 = vmatmul.mubr.bf16.gmra.mxu0 %v4145
    %v4316 = vpop.f32.mrf.mxu0
    %v4317 = vadd.f32 %v4184, %v4316
    %v4318 = vpop.f32.mrf.mxu0
    %v4319 = vpop.f32.mrf.mxu0
    %v4320 = vpop.f32.mrf.mxu0
    %4321 = vdwg.mxu0
    %4322 = vst [vmem:[#allocation14] sm:$0xff] %v4317
    // Predicated region
    $region58: #{tpu_custom_call.1} parent=1 // pred_check
      _
    $region59: #{tpu_custom_call.1} parent=1 // pred_check_branch
      %4324 = sbr.rel (0) target = $region61
    $region60: #{tpu_custom_call.1} parent=1 // pred_region
      %s4326 = ssub.s32 128, 128
      %4327 = vsyncadd [#allocation4], %s4326
      %s4329 = sshll.u32 [#allocation14], 4
      %s4330 = int_to_ptr.vmem [resolvable:$true] %s4329
      %4332 = dma.vmem_to_hbm [thread:$0]  %s4330, 128, %s7, [#allocation4]
    $region61: #{tpu_custom_call.1} parent=1 // pred_fallthru
      _
    // Predicated region
    $region62: #{tpu_custom_call.1} parent=1 // pred_check
      _
    $region63: #{tpu_custom_call.1} parent=1 // pred_check_branch
      %4334 = sbr.rel (0) target = $region65
    $region64: #{tpu_custom_call.1} parent=1 // pred_region
      %4335 = dma.done [#allocation4], 128
    $region65: #{tpu_custom_call.1} parent=1 // pred_fallthru
      _
    %4336 = vsyncpa [#allocation3], 1
    %4337 = vsyncpa [#allocation6], 1
    %4338 = vsyncpa [#allocation9], 1
    %4339 = vsyncpa [#allocation12], 1
    %4340 = vsyncpa [#allocation4], 1

</llo_original>
